<compile_context>
chip_gen: v6e
topology: v6e:2x2x1
jax: 0.10.0
libtpu: 0.0.40
codegen_flags: <defaults>
</compile_context>

<pallas_src>
import functools

import jax
import jax.numpy as jnp
from jax.experimental import pallas as pl


# ----------------------------- config ---------------------------------------
class GPTConfig:
    vocab_size = 65
    block_size = 8          # max sequence length
    n_embd = 32
    n_head = 4
    n_layer = 2
    dropout = 0.0
    bias = True


VOCAB_PAD = 128             # lane-dense lm_head output width (>= vocab_size)


# --------------------------- Pallas kernel -----------------------------------
def _layernorm(x, w, b, eps=1e-5):
    mu = jnp.mean(x, axis=-1, keepdims=True)
    xc = x - mu
    var = jnp.mean(xc * xc, axis=-1, keepdims=True)
    return xc * jax.lax.rsqrt(var + eps) * w + b


def gpt_kernel(x_ref, w1_ref, w2_ref, pv_ref, wlm_ref, pf_ref, o_ref,
               *, B, T, C, H, L):
    """Fused GPT forward: L transformer blocks + final LN + lm_head.

    x_ref   : (N, C)        f32   flattened activations, N = B*T
    w1_ref  : (L, C, 8C)    bf16  per-layer [w_qkv | w_proj | w_fc] slab
    w2_ref  : (L, 4C, C)    bf16  per-layer w_fc2
    pv_ref  : (L, 8, 128)   f32   per-layer LN params + biases (lane-padded)
    wlm_ref : (C, 128)      bf16  lm_head weight (vocab lane-padded)
    pf_ref  : (8, 128)      f32   [lnf_w, lnf_b, b_lm, 0...]
    o_ref   : (N, 128)      f32   lane-dense logits
    """
    N = B * T
    D = C // H
    scale = float(D) ** -0.5

    x = x_ref[...]                                           # (N, C) f32

    row = jax.lax.broadcasted_iota(jnp.int32, (T, T), 0)
    col = jax.lax.broadcasted_iota(jnp.int32, (T, T), 1)
    causal = (col <= row)[None, :, :]                        # (1, T, T)

    for l in range(L):                                       # static unroll
        w1 = w1_ref[l]                                       # (C, 8C) bf16
        w2 = w2_ref[l]                                       # (4C, C) bf16
        pv = pv_ref[l]                                       # (8, 128) f32

        ln1_w, ln1_b = pv[0:1, :C], pv[1:2, :C]
        ln2_w, ln2_b = pv[2:3, :C], pv[3:4, :C]
        b_qkv = pv[4:5, :3 * C]
        b_proj = pv[5:6, :C]
        b_fc = pv[6:7, :4 * C]
        b_fc2 = pv[7:8, :C]

        w_qkv = w1[:, 0:3 * C]                               # (C, 3C)
        w_proj = w1[:, 3 * C:4 * C]                          # (C, C)
        w_fc = w1[:, 4 * C:8 * C]                            # (C, 4C)

        # ---- ln1 + causal multi-head self-attention ----
        xn = _layernorm(x, ln1_w, ln1_b).astype(jnp.bfloat16)
        qkv = jnp.dot(xn, w_qkv,
                      preferred_element_type=jnp.float32) + b_qkv   # (N, 3C)
        # PyTorch reference splits as k, q, v (in that order).
        k3 = qkv[:, 0 * C:1 * C].reshape(B, T, C).astype(jnp.bfloat16)
        q3 = qkv[:, 1 * C:2 * C].reshape(B, T, C).astype(jnp.bfloat16)
        v3 = qkv[:, 2 * C:3 * C].reshape(B, T, C).astype(jnp.bfloat16)

        sa = jnp.zeros((N, C), jnp.float32)
        for h in range(H):                                   # static unroll
            qh = q3[:, :, h * D:(h + 1) * D]                 # (B, T, D)
            kh = k3[:, :, h * D:(h + 1) * D]
            vh = v3[:, :, h * D:(h + 1) * D]
            s = jnp.einsum('bid,bjd->bij', qh, kh,
                           preferred_element_type=jnp.float32) * scale
            s = jnp.where(causal, s, -1e30)                  # finite mask value
            m = jnp.max(s, axis=-1, keepdims=True)
            p = jnp.exp(s - m)                               # f32 softmax
            p = p * pl.reciprocal(jnp.sum(p, axis=-1, keepdims=True),
                                  approx=True)
            oh = jnp.einsum('bij,bjd->bid', p.astype(jnp.bfloat16), vh,
                            preferred_element_type=jnp.float32)      # (B, T, D)
            # Fold the output projection per head (avoids concatenating heads).
            sa = sa + jnp.dot(oh.reshape(N, D).astype(jnp.bfloat16),
                              w_proj[h * D:(h + 1) * D, :],
                              preferred_element_type=jnp.float32)
        x = x + sa + b_proj                                  # residual

        # ---- ln2 + feed-forward (ReLU) ----
        xn2 = _layernorm(x, ln2_w, ln2_b).astype(jnp.bfloat16)
        hidden = jnp.dot(xn2, w_fc,
                         preferred_element_type=jnp.float32) + b_fc  # (N, 4C)
        hidden = jnp.maximum(hidden, 0.0)
        ff = jnp.dot(hidden.astype(jnp.bfloat16), w2,
                     preferred_element_type=jnp.float32) + b_fc2
        x = x + ff                                           # residual

    # ---- final LayerNorm + lm_head (lane-padded, dense 128-wide stores) ----
    pf = pf_ref[...]
    lnf_w, lnf_b = pf[0:1, :C], pf[1:2, :C]
    b_lm = pf[2:3, :]
    xnf = _layernorm(x, lnf_w, lnf_b).astype(jnp.bfloat16)
    logits = jnp.dot(xnf, wlm_ref[...],
                     preferred_element_type=jnp.float32) + b_lm      # (N, 128)
    o_ref[...] = logits


# --------------------------- wrapper ------------------------------------------
def gpt_forward(idx, packed, config):
    """idx: (B, T) int32 token ids.  Returns logits (B, T, vocab_size)."""
    B, T = idx.shape
    C, H, L, V = (config.n_embd, config.n_head, config.n_layer,
                  config.vocab_size)

    # Embedding gathers (plain-JAX glue).
    tok_emb = jnp.take(packed["tok_emb"], idx, axis=0)       # (B, T, C)
    pos_emb = packed["pos_emb"][:T]                          # (T, C)
    x = (tok_emb + pos_emb[None, :, :]).reshape(B * T, C)

    kernel = functools.partial(gpt_kernel, B=B, T=T, C=C, H=H, L=L)
    logits_pad = pl.pallas_call(
        kernel,
        out_shape=jax.ShapeDtypeStruct((B * T, VOCAB_PAD), jnp.float32),
    )(x, packed["w1"], packed["w2"], packed["pv"],
      packed["w_lm"], packed["pf"])

    # TODO(synk): cross-entropy loss path (targets is not None) and the
    # autoregressive generate() loop are left to plain-JAX callers.
    return logits_pad[:, :V].reshape(B, T, V)


# --------------------------- parameter init / packing -------------------------
def init_params(key, config):
    C, V, BS, L = (config.n_embd, config.vocab_size, config.block_size,
                   config.n_layer)

    def normal(k, shape, scale=0.02):
        return (scale * jax.random.normal(k, shape)).astype(jnp.float32)

    keys = jax.random.split(key, 4 + L)
    params = {
        "tok_emb": normal(keys[0], (V, C)),
        "pos_emb": normal(keys[1], (BS, C)),
        "lnf_w": jnp.ones((1, C), jnp.float32),
        "lnf_b": jnp.zeros((1, C), jnp.float32),
        "w_lm": normal(keys[2], (C, V)),
        "b_lm": jnp.zeros((1, V), jnp.float32),
        "blocks": [],
    }
    for l in range(L):
        bk = jax.random.split(keys[4 + l], 8)
        params["blocks"].append({
            "ln1_w": jnp.ones((1, C), jnp.float32),
            "ln1_b": jnp.zeros((1, C), jnp.float32),
            "w_qkv": normal(bk[0], (C, 3 * C)),
            "b_qkv": normal(bk[1], (1, 3 * C)),
            "w_proj": normal(bk[2], (C, C)),
            "b_proj": normal(bk[3], (1, C)),
            "ln2_w": jnp.ones((1, C), jnp.float32),
            "ln2_b": jnp.zeros((1, C), jnp.float32),
            "w_fc": normal(bk[4], (C, 4 * C)),
            "b_fc": normal(bk[5], (1, 4 * C)),
            "w_fc2": normal(bk[6], (4 * C, C)),
            "b_fc2": normal(bk[7], (1, C)),
        })
    return params


def _pad_row(v, width=VOCAB_PAD):
    v = jnp.asarray(v, jnp.float32).reshape(-1)
    return jnp.pad(v, (0, width - v.shape[0]))


def pack_params(params, config):
    """Pack per-layer weights into stacked slabs for the fused kernel."""
    C, V = config.n_embd, config.vocab_size
    w1, w2, pv = [], [], []
    for bp in params["blocks"]:
        w1.append(jnp.concatenate(
            [bp["w_qkv"], bp["w_proj"], bp["w_fc"]], axis=1
        ).astype(jnp.bfloat16))                              # (C, 8C)
        w2.append(bp["w_fc2"].astype(jnp.bfloat16))          # (4C, C)
        pv.append(jnp.stack([
            _pad_row(bp["ln1_w"]), _pad_row(bp["ln1_b"]),
            _pad_row(bp["ln2_w"]), _pad_row(bp["ln2_b"]),
            _pad_row(bp["b_qkv"]), _pad_row(bp["b_proj"]),
            _pad_row(bp["b_fc"]), _pad_row(bp["b_fc2"]),
        ]))                                                  # (8, 128)
    pf = jnp.stack([_pad_row(params["lnf_w"]), _pad_row(params["lnf_b"]),
                    _pad_row(params["b_lm"])]
                   + [jnp.zeros((VOCAB_PAD,), jnp.float32)] * 5)   # (8, 128)
    w_lm = jnp.pad(params["w_lm"],
                   ((0, 0), (0, VOCAB_PAD - V))).astype(jnp.bfloat16)  # (C,128)
    return {
        "tok_emb": params["tok_emb"],
        "pos_emb": params["pos_emb"],
        "w1": jnp.stack(w1),        # (L, C, 8C)   bf16
        "w2": jnp.stack(w2),        # (L, 4C, C)   bf16
        "pv": jnp.stack(pv),        # (L, 8, 128)  f32
        "w_lm": w_lm,               # (C, 128)     bf16
        "pf": pf,                   # (8, 128)     f32
    }


# ------------------------------- main ------------------------------------------
if __name__ == "__main__":
    config = GPTConfig()
    key = jax.random.PRNGKey(0)
    pkey, dkey = jax.random.split(key)

    params = init_params(pkey, config)
    packed = pack_params(params, config)

    B, T = 2, config.block_size                  # idx: (2, 8) int32 tokens
    idx = jax.random.randint(dkey, (B, T), 0, config.vocab_size,
                             dtype=jnp.int32)

    logits = gpt_forward(idx, packed, config)
    jax.block_until_ready(logits)

    assert logits.shape == (B, T, config.vocab_size)
    assert bool(jnp.all(jnp.isfinite(logits)))
    print("KERNEL_OK")
</pallas_src>

<mosaic_0001>
module attributes {stable_mosaic.version = 11 : i64} {
  func.func @gpt_kernel(%arg0: memref<16x32xf32, #tpu.memory_space<vmem>>, %arg1: memref<2x32x256xbf16, #tpu.memory_space<vmem>>, %arg2: memref<2x128x32xbf16, #tpu.memory_space<vmem>>, %arg3: memref<2x8x128xf32, #tpu.memory_space<vmem>>, %arg4: memref<32x128xbf16, #tpu.memory_space<vmem>>, %arg5: memref<8x128xf32, #tpu.memory_space<vmem>>, %arg6: memref<16x128xf32, #tpu.memory_space<vmem>>) attributes {dimension_semantics = [], scalar_prefetch = 0 : i64, scratch_operands = 0 : i64, tpu.core_type = #tpu.core_type<tc>} {
    %c0 = arith.constant 0 : index
    %c0_0 = arith.constant 0 : index
    %0 = vector.load %arg0[%c0, %c0_0] : memref<16x32xf32, #tpu.memory_space<vmem>>, vector<16x32xf32>
    %1 = tpu.iota {dimensions = array<i32: 0>} : vector<8x8xi32>
    %2 = tpu.iota {dimensions = array<i32: 1>} : vector<8x8xi32>
    %3 = arith.cmpi sle, %2, %1 : vector<8x8xi32>
    %4 = vector.shape_cast %3 : vector<8x8xi1> to vector<1x8x8xi1>
    %c0_1 = arith.constant 0 : index
    %c0_2 = arith.constant 0 : index
    %c0_3 = arith.constant 0 : index
    %5 = vector.load %arg1[%c0_1, %c0_2, %c0_3] : memref<2x32x256xbf16, #tpu.memory_space<vmem>>, vector<1x32x256xbf16>
    %6 = vector.shape_cast %5 : vector<1x32x256xbf16> to vector<32x256xbf16>
    %c0_4 = arith.constant 0 : index
    %c0_5 = arith.constant 0 : index
    %c0_6 = arith.constant 0 : index
    %7 = vector.load %arg2[%c0_4, %c0_5, %c0_6] : memref<2x128x32xbf16, #tpu.memory_space<vmem>>, vector<1x128x32xbf16>
    %8 = vector.shape_cast %7 : vector<1x128x32xbf16> to vector<128x32xbf16>
    %c0_7 = arith.constant 0 : index
    %c0_8 = arith.constant 0 : index
    %c0_9 = arith.constant 0 : index
    %9 = vector.load %arg3[%c0_7, %c0_8, %c0_9] : memref<2x8x128xf32, #tpu.memory_space<vmem>>, vector<1x8x128xf32>
    %10 = vector.shape_cast %9 : vector<1x8x128xf32> to vector<8x128xf32>
    %11 = vector.extract_strided_slice %10 {offsets = [0, 0], sizes = [1, 32], strides = [1, 1]} : vector<8x128xf32> to vector<1x32xf32>
    %12 = vector.extract_strided_slice %10 {offsets = [1, 0], sizes = [1, 32], strides = [1, 1]} : vector<8x128xf32> to vector<1x32xf32>
    %13 = vector.extract_strided_slice %10 {offsets = [2, 0], sizes = [1, 32], strides = [1, 1]} : vector<8x128xf32> to vector<1x32xf32>
    %14 = vector.extract_strided_slice %10 {offsets = [3, 0], sizes = [1, 32], strides = [1, 1]} : vector<8x128xf32> to vector<1x32xf32>
    %15 = vector.extract_strided_slice %10 {offsets = [4, 0], sizes = [1, 96], strides = [1, 1]} : vector<8x128xf32> to vector<1x96xf32>
    %16 = vector.extract_strided_slice %10 {offsets = [5, 0], sizes = [1, 32], strides = [1, 1]} : vector<8x128xf32> to vector<1x32xf32>
    %17 = vector.extract_strided_slice %10 {offsets = [6, 0], sizes = [1, 128], strides = [1, 1]} : vector<8x128xf32> to vector<1x128xf32>
    %18 = vector.extract_strided_slice %10 {offsets = [7, 0], sizes = [1, 32], strides = [1, 1]} : vector<8x128xf32> to vector<1x32xf32>
    %19 = vector.extract_strided_slice %6 {offsets = [0, 0], sizes = [32, 96], strides = [1, 1]} : vector<32x256xbf16> to vector<32x96xbf16>
    %20 = vector.extract_strided_slice %6 {offsets = [0, 96], sizes = [32, 32], strides = [1, 1]} : vector<32x256xbf16> to vector<32x32xbf16>
    %21 = vector.extract_strided_slice %6 {offsets = [0, 128], sizes = [32, 128], strides = [1, 1]} : vector<32x256xbf16> to vector<32x128xbf16>
    %cst = arith.constant dense<0.000000e+00> : vector<16xf32>
    %22 = vector.multi_reduction <add>, %0, %cst [1] : vector<16x32xf32> to vector<16xf32>
    %23 = vector.shape_cast %22 : vector<16xf32> to vector<16x1xf32>
    %cst_10 = arith.constant 3.200000e+01 : f32
    %24 = vector.broadcast %cst_10 : f32 to vector<16x1xf32>
    %25 = arith.divf %23, %24 : vector<16x1xf32>
    %26 = vector.broadcast %25 : vector<16x1xf32> to vector<16x32xf32>
    %27 = arith.subf %0, %26 : vector<16x32xf32>
    %28 = arith.mulf %27, %27 : vector<16x32xf32>
    %cst_11 = arith.constant dense<0.000000e+00> : vector<16xf32>
    %29 = vector.multi_reduction <add>, %28, %cst_11 [1] : vector<16x32xf32> to vector<16xf32>
    %30 = vector.shape_cast %29 : vector<16xf32> to vector<16x1xf32>
    %cst_12 = arith.constant 3.200000e+01 : f32
    %31 = vector.broadcast %cst_12 : f32 to vector<16x1xf32>
    %32 = arith.divf %30, %31 : vector<16x1xf32>
    %cst_13 = arith.constant 9.99999974E-6 : f32
    %33 = vector.broadcast %cst_13 : f32 to vector<16x1xf32>
    %34 = arith.addf %32, %33 : vector<16x1xf32>
    %35 = math.rsqrt %34 : vector<16x1xf32>
    %36 = vector.broadcast %35 : vector<16x1xf32> to vector<16x32xf32>
    %37 = arith.mulf %27, %36 : vector<16x32xf32>
    %38 = vector.broadcast %11 : vector<1x32xf32> to vector<16x32xf32>
    %39 = arith.mulf %37, %38 : vector<16x32xf32>
    %40 = vector.broadcast %12 : vector<1x32xf32> to vector<16x32xf32>
    %41 = arith.addf %39, %40 : vector<16x32xf32>
    %42 = arith.truncf %41 : vector<16x32xf32> to vector<16x32xbf16>
    %cst_14 = arith.constant dense<0.000000e+00> : vector<16x96xf32>
    %43 = tpu.matmul %42, %19, %cst_14 {dimension_numbers = #tpu.dot_dimension_numbers<[1], [0], [0], [1], [0, 0, 1, 1], [], []>} : vector<16x32xbf16>, vector<32x96xbf16>, vector<16x96xf32> -> vector<16x96xf32>
    %44 = vector.broadcast %15 : vector<1x96xf32> to vector<16x96xf32>
    %45 = arith.addf %43, %44 : vector<16x96xf32>
    %46 = vector.extract_strided_slice %45 {offsets = [0, 0], sizes = [16, 32], strides = [1, 1]} : vector<16x96xf32> to vector<16x32xf32>
    %47 = vector.shape_cast %46 : vector<16x32xf32> to vector<2x8x32xf32>
    %48 = arith.truncf %47 : vector<2x8x32xf32> to vector<2x8x32xbf16>
    %49 = vector.extract_strided_slice %45 {offsets = [0, 32], sizes = [16, 32], strides = [1, 1]} : vector<16x96xf32> to vector<16x32xf32>
    %50 = vector.shape_cast %49 : vector<16x32xf32> to vector<2x8x32xf32>
    %51 = arith.truncf %50 : vector<2x8x32xf32> to vector<2x8x32xbf16>
    %52 = vector.extract_strided_slice %45 {offsets = [0, 64], sizes = [16, 32], strides = [1, 1]} : vector<16x96xf32> to vector<16x32xf32>
    %53 = vector.shape_cast %52 : vector<16x32xf32> to vector<2x8x32xf32>
    %54 = arith.truncf %53 : vector<2x8x32xf32> to vector<2x8x32xbf16>
    %cst_15 = arith.constant 0.000000e+00 : f32
    %55 = vector.broadcast %cst_15 : f32 to vector<16x32xf32>
    %56 = vector.extract_strided_slice %51 {offsets = [0, 0, 0], sizes = [2, 8, 8], strides = [1, 1, 1]} : vector<2x8x32xbf16> to vector<2x8x8xbf16>
    %57 = vector.extract_strided_slice %48 {offsets = [0, 0, 0], sizes = [2, 8, 8], strides = [1, 1, 1]} : vector<2x8x32xbf16> to vector<2x8x8xbf16>
    %58 = vector.extract_strided_slice %54 {offsets = [0, 0, 0], sizes = [2, 8, 8], strides = [1, 1, 1]} : vector<2x8x32xbf16> to vector<2x8x8xbf16>
    "tpu.trace_start"() <{level = 10 : i32, message = "bid,bjd->bij"}> : () -> ()
    %cst_16 = arith.constant dense<0.000000e+00> : vector<2x8x8xf32>
    %59 = tpu.matmul %56, %57, %cst_16 {dimension_numbers = #tpu.dot_dimension_numbers<[2], [2], [1], [1], [0, 0, 0, 1, 1, 1], [0], [0]>} : vector<2x8x8xbf16>, vector<2x8x8xbf16>, vector<2x8x8xf32> -> vector<2x8x8xf32>
    "tpu.trace_stop"() : () -> ()
    %cst_17 = arith.constant 0.353553385 : f32
    %60 = vector.broadcast %cst_17 : f32 to vector<2x8x8xf32>
    %61 = arith.mulf %59, %60 : vector<2x8x8xf32>
    %cst_18 = arith.constant -1.000000e+30 : f32
    %62 = vector.shape_cast %4 : vector<1x8x8xi1> to vector<1x8x8xi1>
    %63 = vector.broadcast %62 : vector<1x8x8xi1> to vector<2x8x8xi1>
    %64 = vector.broadcast %cst_18 : f32 to vector<2x8x8xf32>
    %65 = arith.select %63, %61, %64 : vector<2x8x8xi1>, vector<2x8x8xf32>
    %cst_19 = arith.constant dense<0xFF800000> : vector<2x8xf32>
    %66 = vector.multi_reduction <maximumf>, %65, %cst_19 [2] : vector<2x8x8xf32> to vector<2x8xf32>
    %67 = vector.shape_cast %66 : vector<2x8xf32> to vector<2x8x1xf32>
    %68 = vector.broadcast %67 : vector<2x8x1xf32> to vector<2x8x8xf32>
    %69 = arith.subf %65, %68 : vector<2x8x8xf32>
    %70 = math.exp %69 : vector<2x8x8xf32>
    %cst_20 = arith.constant dense<0.000000e+00> : vector<2x8xf32>
    %71 = vector.multi_reduction <add>, %70, %cst_20 [2] : vector<2x8x8xf32> to vector<2x8xf32>
    %72 = vector.shape_cast %71 : vector<2x8xf32> to vector<2x8x1xf32>
    %73 = tpu.reciprocal %72 {approx = true} : vector<2x8x1xf32> -> vector<2x8x1xf32>
    %74 = vector.broadcast %73 : vector<2x8x1xf32> to vector<2x8x8xf32>
    %75 = arith.mulf %70, %74 : vector<2x8x8xf32>
    %76 = arith.truncf %75 : vector<2x8x8xf32> to vector<2x8x8xbf16>
    "tpu.trace_start"() <{level = 10 : i32, message = "bij,bjd->bid"}> : () -> ()
    %cst_21 = arith.constant dense<0.000000e+00> : vector<2x8x8xf32>
    %77 = tpu.matmul %76, %58, %cst_21 {dimension_numbers = #tpu.dot_dimension_numbers<[2], [1], [1], [2], [0, 0, 0, 1, 1, 2], [0], [0]>} : vector<2x8x8xbf16>, vector<2x8x8xbf16>, vector<2x8x8xf32> -> vector<2x8x8xf32>
    "tpu.trace_stop"() : () -> ()
    %78 = vector.shape_cast %77 : vector<2x8x8xf32> to vector<16x8xf32>
    %79 = arith.truncf %78 : vector<16x8xf32> to vector<16x8xbf16>
    %80 = vector.extract_strided_slice %20 {offsets = [0, 0], sizes = [8, 32], strides = [1, 1]} : vector<32x32xbf16> to vector<8x32xbf16>
    %cst_22 = arith.constant dense<0.000000e+00> : vector<16x32xf32>
    %81 = tpu.matmul %79, %80, %cst_22 {dimension_numbers = #tpu.dot_dimension_numbers<[1], [0], [0], [1], [0, 0, 1, 1], [], []>} : vector<16x8xbf16>, vector<8x32xbf16>, vector<16x32xf32> -> vector<16x32xf32>
    %82 = arith.addf %55, %81 : vector<16x32xf32>
    %83 = vector.extract_strided_slice %51 {offsets = [0, 0, 8], sizes = [2, 8, 8], strides = [1, 1, 1]} : vector<2x8x32xbf16> to vector<2x8x8xbf16>
    %84 = vector.extract_strided_slice %48 {offsets = [0, 0, 8], sizes = [2, 8, 8], strides = [1, 1, 1]} : vector<2x8x32xbf16> to vector<2x8x8xbf16>
    %85 = vector.extract_strided_slice %54 {offsets = [0, 0, 8], sizes = [2, 8, 8], strides = [1, 1, 1]} : vector<2x8x32xbf16> to vector<2x8x8xbf16>
    "tpu.trace_start"() <{level = 10 : i32, message = "bid,bjd->bij"}> : () -> ()
    %cst_23 = arith.constant dense<0.000000e+00> : vector<2x8x8xf32>
    %86 = tpu.matmul %83, %84, %cst_23 {dimension_numbers = #tpu.dot_dimension_numbers<[2], [2], [1], [1], [0, 0, 0, 1, 1, 1], [0], [0]>} : vector<2x8x8xbf16>, vector<2x8x8xbf16>, vector<2x8x8xf32> -> vector<2x8x8xf32>
    "tpu.trace_stop"() : () -> ()
    %cst_24 = arith.constant 0.353553385 : f32
    %87 = vector.broadcast %cst_24 : f32 to vector<2x8x8xf32>
    %88 = arith.mulf %86, %87 : vector<2x8x8xf32>
    %cst_25 = arith.constant -1.000000e+30 : f32
    %89 = vector.shape_cast %4 : vector<1x8x8xi1> to vector<1x8x8xi1>
    %90 = vector.broadcast %89 : vector<1x8x8xi1> to vector<2x8x8xi1>
    %91 = vector.broadcast %cst_25 : f32 to vector<2x8x8xf32>
    %92 = arith.select %90, %88, %91 : vector<2x8x8xi1>, vector<2x8x8xf32>
    %cst_26 = arith.constant dense<0xFF800000> : vector<2x8xf32>
    %93 = vector.multi_reduction <maximumf>, %92, %cst_26 [2] : vector<2x8x8xf32> to vector<2x8xf32>
    %94 = vector.shape_cast %93 : vector<2x8xf32> to vector<2x8x1xf32>
    %95 = vector.broadcast %94 : vector<2x8x1xf32> to vector<2x8x8xf32>
    %96 = arith.subf %92, %95 : vector<2x8x8xf32>
    %97 = math.exp %96 : vector<2x8x8xf32>
    %cst_27 = arith.constant dense<0.000000e+00> : vector<2x8xf32>
    %98 = vector.multi_reduction <add>, %97, %cst_27 [2] : vector<2x8x8xf32> to vector<2x8xf32>
    %99 = vector.shape_cast %98 : vector<2x8xf32> to vector<2x8x1xf32>
    %100 = tpu.reciprocal %99 {approx = true} : vector<2x8x1xf32> -> vector<2x8x1xf32>
    %101 = vector.broadcast %100 : vector<2x8x1xf32> to vector<2x8x8xf32>
    %102 = arith.mulf %97, %101 : vector<2x8x8xf32>
    %103 = arith.truncf %102 : vector<2x8x8xf32> to vector<2x8x8xbf16>
    "tpu.trace_start"() <{level = 10 : i32, message = "bij,bjd->bid"}> : () -> ()
    %cst_28 = arith.constant dense<0.000000e+00> : vector<2x8x8xf32>
    %104 = tpu.matmul %103, %85, %cst_28 {dimension_numbers = #tpu.dot_dimension_numbers<[2], [1], [1], [2], [0, 0, 0, 1, 1, 2], [0], [0]>} : vector<2x8x8xbf16>, vector<2x8x8xbf16>, vector<2x8x8xf32> -> vector<2x8x8xf32>
    "tpu.trace_stop"() : () -> ()
    %105 = vector.shape_cast %104 : vector<2x8x8xf32> to vector<16x8xf32>
    %106 = arith.truncf %105 : vector<16x8xf32> to vector<16x8xbf16>
    %107 = vector.extract_strided_slice %20 {offsets = [8, 0], sizes = [8, 32], strides = [1, 1]} : vector<32x32xbf16> to vector<8x32xbf16>
    %cst_29 = arith.constant dense<0.000000e+00> : vector<16x32xf32>
    %108 = tpu.matmul %106, %107, %cst_29 {dimension_numbers = #tpu.dot_dimension_numbers<[1], [0], [0], [1], [0, 0, 1, 1], [], []>} : vector<16x8xbf16>, vector<8x32xbf16>, vector<16x32xf32> -> vector<16x32xf32>
    %109 = arith.addf %82, %108 : vector<16x32xf32>
    %110 = vector.extract_strided_slice %51 {offsets = [0, 0, 16], sizes = [2, 8, 8], strides = [1, 1, 1]} : vector<2x8x32xbf16> to vector<2x8x8xbf16>
    %111 = vector.extract_strided_slice %48 {offsets = [0, 0, 16], sizes = [2, 8, 8], strides = [1, 1, 1]} : vector<2x8x32xbf16> to vector<2x8x8xbf16>
    %112 = vector.extract_strided_slice %54 {offsets = [0, 0, 16], sizes = [2, 8, 8], strides = [1, 1, 1]} : vector<2x8x32xbf16> to vector<2x8x8xbf16>
    "tpu.trace_start"() <{level = 10 : i32, message = "bid,bjd->bij"}> : () -> ()
    %cst_30 = arith.constant dense<0.000000e+00> : vector<2x8x8xf32>
    %113 = tpu.matmul %110, %111, %cst_30 {dimension_numbers = #tpu.dot_dimension_numbers<[2], [2], [1], [1], [0, 0, 0, 1, 1, 1], [0], [0]>} : vector<2x8x8xbf16>, vector<2x8x8xbf16>, vector<2x8x8xf32> -> vector<2x8x8xf32>
    "tpu.trace_stop"() : () -> ()
    %cst_31 = arith.constant 0.353553385 : f32
    %114 = vector.broadcast %cst_31 : f32 to vector<2x8x8xf32>
    %115 = arith.mulf %113, %114 : vector<2x8x8xf32>
    %cst_32 = arith.constant -1.000000e+30 : f32
    %116 = vector.shape_cast %4 : vector<1x8x8xi1> to vector<1x8x8xi1>
    %117 = vector.broadcast %116 : vector<1x8x8xi1> to vector<2x8x8xi1>
    %118 = vector.broadcast %cst_32 : f32 to vector<2x8x8xf32>
    %119 = arith.select %117, %115, %118 : vector<2x8x8xi1>, vector<2x8x8xf32>
    %cst_33 = arith.constant dense<0xFF800000> : vector<2x8xf32>
    %120 = vector.multi_reduction <maximumf>, %119, %cst_33 [2] : vector<2x8x8xf32> to vector<2x8xf32>
    %121 = vector.shape_cast %120 : vector<2x8xf32> to vector<2x8x1xf32>
    %122 = vector.broadcast %121 : vector<2x8x1xf32> to vector<2x8x8xf32>
    %123 = arith.subf %119, %122 : vector<2x8x8xf32>
    %124 = math.exp %123 : vector<2x8x8xf32>
    %cst_34 = arith.constant dense<0.000000e+00> : vector<2x8xf32>
    %125 = vector.multi_reduction <add>, %124, %cst_34 [2] : vector<2x8x8xf32> to vector<2x8xf32>
    %126 = vector.shape_cast %125 : vector<2x8xf32> to vector<2x8x1xf32>
    %127 = tpu.reciprocal %126 {approx = true} : vector<2x8x1xf32> -> vector<2x8x1xf32>
    %128 = vector.broadcast %127 : vector<2x8x1xf32> to vector<2x8x8xf32>
    %129 = arith.mulf %124, %128 : vector<2x8x8xf32>
    %130 = arith.truncf %129 : vector<2x8x8xf32> to vector<2x8x8xbf16>
    "tpu.trace_start"() <{level = 10 : i32, message = "bij,bjd->bid"}> : () -> ()
    %cst_35 = arith.constant dense<0.000000e+00> : vector<2x8x8xf32>
    %131 = tpu.matmul %130, %112, %cst_35 {dimension_numbers = #tpu.dot_dimension_numbers<[2], [1], [1], [2], [0, 0, 0, 1, 1, 2], [0], [0]>} : vector<2x8x8xbf16>, vector<2x8x8xbf16>, vector<2x8x8xf32> -> vector<2x8x8xf32>
    "tpu.trace_stop"() : () -> ()
    %132 = vector.shape_cast %131 : vector<2x8x8xf32> to vector<16x8xf32>
    %133 = arith.truncf %132 : vector<16x8xf32> to vector<16x8xbf16>
    %134 = vector.extract_strided_slice %20 {offsets = [16, 0], sizes = [8, 32], strides = [1, 1]} : vector<32x32xbf16> to vector<8x32xbf16>
    %cst_36 = arith.constant dense<0.000000e+00> : vector<16x32xf32>
    %135 = tpu.matmul %133, %134, %cst_36 {dimension_numbers = #tpu.dot_dimension_numbers<[1], [0], [0], [1], [0, 0, 1, 1], [], []>} : vector<16x8xbf16>, vector<8x32xbf16>, vector<16x32xf32> -> vector<16x32xf32>
    %136 = arith.addf %109, %135 : vector<16x32xf32>
    %137 = vector.extract_strided_slice %51 {offsets = [0, 0, 24], sizes = [2, 8, 8], strides = [1, 1, 1]} : vector<2x8x32xbf16> to vector<2x8x8xbf16>
    %138 = vector.extract_strided_slice %48 {offsets = [0, 0, 24], sizes = [2, 8, 8], strides = [1, 1, 1]} : vector<2x8x32xbf16> to vector<2x8x8xbf16>
    %139 = vector.extract_strided_slice %54 {offsets = [0, 0, 24], sizes = [2, 8, 8], strides = [1, 1, 1]} : vector<2x8x32xbf16> to vector<2x8x8xbf16>
    "tpu.trace_start"() <{level = 10 : i32, message = "bid,bjd->bij"}> : () -> ()
    %cst_37 = arith.constant dense<0.000000e+00> : vector<2x8x8xf32>
    %140 = tpu.matmul %137, %138, %cst_37 {dimension_numbers = #tpu.dot_dimension_numbers<[2], [2], [1], [1], [0, 0, 0, 1, 1, 1], [0], [0]>} : vector<2x8x8xbf16>, vector<2x8x8xbf16>, vector<2x8x8xf32> -> vector<2x8x8xf32>
    "tpu.trace_stop"() : () -> ()
    %cst_38 = arith.constant 0.353553385 : f32
    %141 = vector.broadcast %cst_38 : f32 to vector<2x8x8xf32>
    %142 = arith.mulf %140, %141 : vector<2x8x8xf32>
    %cst_39 = arith.constant -1.000000e+30 : f32
    %143 = vector.shape_cast %4 : vector<1x8x8xi1> to vector<1x8x8xi1>
    %144 = vector.broadcast %143 : vector<1x8x8xi1> to vector<2x8x8xi1>
    %145 = vector.broadcast %cst_39 : f32 to vector<2x8x8xf32>
    %146 = arith.select %144, %142, %145 : vector<2x8x8xi1>, vector<2x8x8xf32>
    %cst_40 = arith.constant dense<0xFF800000> : vector<2x8xf32>
    %147 = vector.multi_reduction <maximumf>, %146, %cst_40 [2] : vector<2x8x8xf32> to vector<2x8xf32>
    %148 = vector.shape_cast %147 : vector<2x8xf32> to vector<2x8x1xf32>
    %149 = vector.broadcast %148 : vector<2x8x1xf32> to vector<2x8x8xf32>
    %150 = arith.subf %146, %149 : vector<2x8x8xf32>
    %151 = math.exp %150 : vector<2x8x8xf32>
    %cst_41 = arith.constant dense<0.000000e+00> : vector<2x8xf32>
    %152 = vector.multi_reduction <add>, %151, %cst_41 [2] : vector<2x8x8xf32> to vector<2x8xf32>
    %153 = vector.shape_cast %152 : vector<2x8xf32> to vector<2x8x1xf32>
    %154 = tpu.reciprocal %153 {approx = true} : vector<2x8x1xf32> -> vector<2x8x1xf32>
    %155 = vector.broadcast %154 : vector<2x8x1xf32> to vector<2x8x8xf32>
    %156 = arith.mulf %151, %155 : vector<2x8x8xf32>
    %157 = arith.truncf %156 : vector<2x8x8xf32> to vector<2x8x8xbf16>
    "tpu.trace_start"() <{level = 10 : i32, message = "bij,bjd->bid"}> : () -> ()
    %cst_42 = arith.constant dense<0.000000e+00> : vector<2x8x8xf32>
    %158 = tpu.matmul %157, %139, %cst_42 {dimension_numbers = #tpu.dot_dimension_numbers<[2], [1], [1], [2], [0, 0, 0, 1, 1, 2], [0], [0]>} : vector<2x8x8xbf16>, vector<2x8x8xbf16>, vector<2x8x8xf32> -> vector<2x8x8xf32>
    "tpu.trace_stop"() : () -> ()
    %159 = vector.shape_cast %158 : vector<2x8x8xf32> to vector<16x8xf32>
    %160 = arith.truncf %159 : vector<16x8xf32> to vector<16x8xbf16>
    %161 = vector.extract_strided_slice %20 {offsets = [24, 0], sizes = [8, 32], strides = [1, 1]} : vector<32x32xbf16> to vector<8x32xbf16>
    %cst_43 = arith.constant dense<0.000000e+00> : vector<16x32xf32>
    %162 = tpu.matmul %160, %161, %cst_43 {dimension_numbers = #tpu.dot_dimension_numbers<[1], [0], [0], [1], [0, 0, 1, 1], [], []>} : vector<16x8xbf16>, vector<8x32xbf16>, vector<16x32xf32> -> vector<16x32xf32>
    %163 = arith.addf %136, %162 : vector<16x32xf32>
    %164 = arith.addf %0, %163 : vector<16x32xf32>
    %165 = vector.broadcast %16 : vector<1x32xf32> to vector<16x32xf32>
    %166 = arith.addf %164, %165 : vector<16x32xf32>
    %cst_44 = arith.constant dense<0.000000e+00> : vector<16xf32>
    %167 = vector.multi_reduction <add>, %166, %cst_44 [1] : vector<16x32xf32> to vector<16xf32>
    %168 = vector.shape_cast %167 : vector<16xf32> to vector<16x1xf32>
    %cst_45 = arith.constant 3.200000e+01 : f32
    %169 = vector.broadcast %cst_45 : f32 to vector<16x1xf32>
    %170 = arith.divf %168, %169 : vector<16x1xf32>
    %171 = vector.broadcast %170 : vector<16x1xf32> to vector<16x32xf32>
    %172 = arith.subf %166, %171 : vector<16x32xf32>
    %173 = arith.mulf %172, %172 : vector<16x32xf32>
    %cst_46 = arith.constant dense<0.000000e+00> : vector<16xf32>
    %174 = vector.multi_reduction <add>, %173, %cst_46 [1] : vector<16x32xf32> to vector<16xf32>
    %175 = vector.shape_cast %174 : vector<16xf32> to vector<16x1xf32>
    %cst_47 = arith.constant 3.200000e+01 : f32
    %176 = vector.broadcast %cst_47 : f32 to vector<16x1xf32>
    %177 = arith.divf %175, %176 : vector<16x1xf32>
    %cst_48 = arith.constant 9.99999974E-6 : f32
    %178 = vector.broadcast %cst_48 : f32 to vector<16x1xf32>
    %179 = arith.addf %177, %178 : vector<16x1xf32>
    %180 = math.rsqrt %179 : vector<16x1xf32>
    %181 = vector.broadcast %180 : vector<16x1xf32> to vector<16x32xf32>
    %182 = arith.mulf %172, %181 : vector<16x32xf32>
    %183 = vector.broadcast %13 : vector<1x32xf32> to vector<16x32xf32>
    %184 = arith.mulf %182, %183 : vector<16x32xf32>
    %185 = vector.broadcast %14 : vector<1x32xf32> to vector<16x32xf32>
    %186 = arith.addf %184, %185 : vector<16x32xf32>
    %187 = arith.truncf %186 : vector<16x32xf32> to vector<16x32xbf16>
    %cst_49 = arith.constant dense<0.000000e+00> : vector<16x128xf32>
    %188 = tpu.matmul %187, %21, %cst_49 {dimension_numbers = #tpu.dot_dimension_numbers<[1], [0], [0], [1], [0, 0, 1, 1], [], []>} : vector<16x32xbf16>, vector<32x128xbf16>, vector<16x128xf32> -> vector<16x128xf32>
    %189 = vector.broadcast %17 : vector<1x128xf32> to vector<16x128xf32>
    %190 = arith.addf %188, %189 : vector<16x128xf32>
    %cst_50 = arith.constant 0.000000e+00 : f32
    %191 = vector.broadcast %cst_50 : f32 to vector<16x128xf32>
    %192 = arith.maximumf %190, %191 : vector<16x128xf32>
    %193 = arith.truncf %192 : vector<16x128xf32> to vector<16x128xbf16>
    %cst_51 = arith.constant dense<0.000000e+00> : vector<16x32xf32>
    %194 = tpu.matmul %193, %8, %cst_51 {dimension_numbers = #tpu.dot_dimension_numbers<[1], [0], [0], [1], [0, 0, 1, 1], [], []>} : vector<16x128xbf16>, vector<128x32xbf16>, vector<16x32xf32> -> vector<16x32xf32>
    %195 = vector.broadcast %18 : vector<1x32xf32> to vector<16x32xf32>
    %196 = arith.addf %194, %195 : vector<16x32xf32>
    %197 = arith.addf %166, %196 : vector<16x32xf32>
    %c1 = arith.constant 1 : index
    %c0_52 = arith.constant 0 : index
    %c0_53 = arith.constant 0 : index
    %198 = vector.load %arg1[%c1, %c0_52, %c0_53] : memref<2x32x256xbf16, #tpu.memory_space<vmem>>, vector<1x32x256xbf16>
    %199 = vector.shape_cast %198 : vector<1x32x256xbf16> to vector<32x256xbf16>
    %c1_54 = arith.constant 1 : index
    %c0_55 = arith.constant 0 : index
    %c0_56 = arith.constant 0 : index
    %200 = vector.load %arg2[%c1_54, %c0_55, %c0_56] : memref<2x128x32xbf16, #tpu.memory_space<vmem>>, vector<1x128x32xbf16>
    %201 = vector.shape_cast %200 : vector<1x128x32xbf16> to vector<128x32xbf16>
    %c1_57 = arith.constant 1 : index
    %c0_58 = arith.constant 0 : index
    %c0_59 = arith.constant 0 : index
    %202 = vector.load %arg3[%c1_57, %c0_58, %c0_59] : memref<2x8x128xf32, #tpu.memory_space<vmem>>, vector<1x8x128xf32>
    %203 = vector.shape_cast %202 : vector<1x8x128xf32> to vector<8x128xf32>
    %204 = vector.extract_strided_slice %203 {offsets = [0, 0], sizes = [1, 32], strides = [1, 1]} : vector<8x128xf32> to vector<1x32xf32>
    %205 = vector.extract_strided_slice %203 {offsets = [1, 0], sizes = [1, 32], strides = [1, 1]} : vector<8x128xf32> to vector<1x32xf32>
    %206 = vector.extract_strided_slice %203 {offsets = [2, 0], sizes = [1, 32], strides = [1, 1]} : vector<8x128xf32> to vector<1x32xf32>
    %207 = vector.extract_strided_slice %203 {offsets = [3, 0], sizes = [1, 32], strides = [1, 1]} : vector<8x128xf32> to vector<1x32xf32>
    %208 = vector.extract_strided_slice %203 {offsets = [4, 0], sizes = [1, 96], strides = [1, 1]} : vector<8x128xf32> to vector<1x96xf32>
    %209 = vector.extract_strided_slice %203 {offsets = [5, 0], sizes = [1, 32], strides = [1, 1]} : vector<8x128xf32> to vector<1x32xf32>
    %210 = vector.extract_strided_slice %203 {offsets = [6, 0], sizes = [1, 128], strides = [1, 1]} : vector<8x128xf32> to vector<1x128xf32>
    %211 = vector.extract_strided_slice %203 {offsets = [7, 0], sizes = [1, 32], strides = [1, 1]} : vector<8x128xf32> to vector<1x32xf32>
    %212 = vector.extract_strided_slice %199 {offsets = [0, 0], sizes = [32, 96], strides = [1, 1]} : vector<32x256xbf16> to vector<32x96xbf16>
    %213 = vector.extract_strided_slice %199 {offsets = [0, 96], sizes = [32, 32], strides = [1, 1]} : vector<32x256xbf16> to vector<32x32xbf16>
    %214 = vector.extract_strided_slice %199 {offsets = [0, 128], sizes = [32, 128], strides = [1, 1]} : vector<32x256xbf16> to vector<32x128xbf16>
    %cst_60 = arith.constant dense<0.000000e+00> : vector<16xf32>
    %215 = vector.multi_reduction <add>, %197, %cst_60 [1] : vector<16x32xf32> to vector<16xf32>
    %216 = vector.shape_cast %215 : vector<16xf32> to vector<16x1xf32>
    %cst_61 = arith.constant 3.200000e+01 : f32
    %217 = vector.broadcast %cst_61 : f32 to vector<16x1xf32>
    %218 = arith.divf %216, %217 : vector<16x1xf32>
    %219 = vector.broadcast %218 : vector<16x1xf32> to vector<16x32xf32>
    %220 = arith.subf %197, %219 : vector<16x32xf32>
    %221 = arith.mulf %220, %220 : vector<16x32xf32>
    %cst_62 = arith.constant dense<0.000000e+00> : vector<16xf32>
    %222 = vector.multi_reduction <add>, %221, %cst_62 [1] : vector<16x32xf32> to vector<16xf32>
    %223 = vector.shape_cast %222 : vector<16xf32> to vector<16x1xf32>
    %cst_63 = arith.constant 3.200000e+01 : f32
    %224 = vector.broadcast %cst_63 : f32 to vector<16x1xf32>
    %225 = arith.divf %223, %224 : vector<16x1xf32>
    %cst_64 = arith.constant 9.99999974E-6 : f32
    %226 = vector.broadcast %cst_64 : f32 to vector<16x1xf32>
    %227 = arith.addf %225, %226 : vector<16x1xf32>
    %228 = math.rsqrt %227 : vector<16x1xf32>
    %229 = vector.broadcast %228 : vector<16x1xf32> to vector<16x32xf32>
    %230 = arith.mulf %220, %229 : vector<16x32xf32>
    %231 = vector.broadcast %204 : vector<1x32xf32> to vector<16x32xf32>
    %232 = arith.mulf %230, %231 : vector<16x32xf32>
    %233 = vector.broadcast %205 : vector<1x32xf32> to vector<16x32xf32>
    %234 = arith.addf %232, %233 : vector<16x32xf32>
    %235 = arith.truncf %234 : vector<16x32xf32> to vector<16x32xbf16>
    %cst_65 = arith.constant dense<0.000000e+00> : vector<16x96xf32>
    %236 = tpu.matmul %235, %212, %cst_65 {dimension_numbers = #tpu.dot_dimension_numbers<[1], [0], [0], [1], [0, 0, 1, 1], [], []>} : vector<16x32xbf16>, vector<32x96xbf16>, vector<16x96xf32> -> vector<16x96xf32>
    %237 = vector.broadcast %208 : vector<1x96xf32> to vector<16x96xf32>
    %238 = arith.addf %236, %237 : vector<16x96xf32>
    %239 = vector.extract_strided_slice %238 {offsets = [0, 0], sizes = [16, 32], strides = [1, 1]} : vector<16x96xf32> to vector<16x32xf32>
    %240 = vector.shape_cast %239 : vector<16x32xf32> to vector<2x8x32xf32>
    %241 = arith.truncf %240 : vector<2x8x32xf32> to vector<2x8x32xbf16>
    %242 = vector.extract_strided_slice %238 {offsets = [0, 32], sizes = [16, 32], strides = [1, 1]} : vector<16x96xf32> to vector<16x32xf32>
    %243 = vector.shape_cast %242 : vector<16x32xf32> to vector<2x8x32xf32>
    %244 = arith.truncf %243 : vector<2x8x32xf32> to vector<2x8x32xbf16>
    %245 = vector.extract_strided_slice %238 {offsets = [0, 64], sizes = [16, 32], strides = [1, 1]} : vector<16x96xf32> to vector<16x32xf32>
    %246 = vector.shape_cast %245 : vector<16x32xf32> to vector<2x8x32xf32>
    %247 = arith.truncf %246 : vector<2x8x32xf32> to vector<2x8x32xbf16>
    %cst_66 = arith.constant 0.000000e+00 : f32
    %248 = vector.broadcast %cst_66 : f32 to vector<16x32xf32>
    %249 = vector.extract_strided_slice %244 {offsets = [0, 0, 0], sizes = [2, 8, 8], strides = [1, 1, 1]} : vector<2x8x32xbf16> to vector<2x8x8xbf16>
    %250 = vector.extract_strided_slice %241 {offsets = [0, 0, 0], sizes = [2, 8, 8], strides = [1, 1, 1]} : vector<2x8x32xbf16> to vector<2x8x8xbf16>
    %251 = vector.extract_strided_slice %247 {offsets = [0, 0, 0], sizes = [2, 8, 8], strides = [1, 1, 1]} : vector<2x8x32xbf16> to vector<2x8x8xbf16>
    "tpu.trace_start"() <{level = 10 : i32, message = "bid,bjd->bij"}> : () -> ()
    %cst_67 = arith.constant dense<0.000000e+00> : vector<2x8x8xf32>
    %252 = tpu.matmul %249, %250, %cst_67 {dimension_numbers = #tpu.dot_dimension_numbers<[2], [2], [1], [1], [0, 0, 0, 1, 1, 1], [0], [0]>} : vector<2x8x8xbf16>, vector<2x8x8xbf16>, vector<2x8x8xf32> -> vector<2x8x8xf32>
    "tpu.trace_stop"() : () -> ()
    %cst_68 = arith.constant 0.353553385 : f32
    %253 = vector.broadcast %cst_68 : f32 to vector<2x8x8xf32>
    %254 = arith.mulf %252, %253 : vector<2x8x8xf32>
    %cst_69 = arith.constant -1.000000e+30 : f32
    %255 = vector.shape_cast %4 : vector<1x8x8xi1> to vector<1x8x8xi1>
    %256 = vector.broadcast %255 : vector<1x8x8xi1> to vector<2x8x8xi1>
    %257 = vector.broadcast %cst_69 : f32 to vector<2x8x8xf32>
    %258 = arith.select %256, %254, %257 : vector<2x8x8xi1>, vector<2x8x8xf32>
    %cst_70 = arith.constant dense<0xFF800000> : vector<2x8xf32>
    %259 = vector.multi_reduction <maximumf>, %258, %cst_70 [2] : vector<2x8x8xf32> to vector<2x8xf32>
    %260 = vector.shape_cast %259 : vector<2x8xf32> to vector<2x8x1xf32>
    %261 = vector.broadcast %260 : vector<2x8x1xf32> to vector<2x8x8xf32>
    %262 = arith.subf %258, %261 : vector<2x8x8xf32>
    %263 = math.exp %262 : vector<2x8x8xf32>
    %cst_71 = arith.constant dense<0.000000e+00> : vector<2x8xf32>
    %264 = vector.multi_reduction <add>, %263, %cst_71 [2] : vector<2x8x8xf32> to vector<2x8xf32>
    %265 = vector.shape_cast %264 : vector<2x8xf32> to vector<2x8x1xf32>
    %266 = tpu.reciprocal %265 {approx = true} : vector<2x8x1xf32> -> vector<2x8x1xf32>
    %267 = vector.broadcast %266 : vector<2x8x1xf32> to vector<2x8x8xf32>
    %268 = arith.mulf %263, %267 : vector<2x8x8xf32>
    %269 = arith.truncf %268 : vector<2x8x8xf32> to vector<2x8x8xbf16>
    "tpu.trace_start"() <{level = 10 : i32, message = "bij,bjd->bid"}> : () -> ()
    %cst_72 = arith.constant dense<0.000000e+00> : vector<2x8x8xf32>
    %270 = tpu.matmul %269, %251, %cst_72 {dimension_numbers = #tpu.dot_dimension_numbers<[2], [1], [1], [2], [0, 0, 0, 1, 1, 2], [0], [0]>} : vector<2x8x8xbf16>, vector<2x8x8xbf16>, vector<2x8x8xf32> -> vector<2x8x8xf32>
    "tpu.trace_stop"() : () -> ()
    %271 = vector.shape_cast %270 : vector<2x8x8xf32> to vector<16x8xf32>
    %272 = arith.truncf %271 : vector<16x8xf32> to vector<16x8xbf16>
    %273 = vector.extract_strided_slice %213 {offsets = [0, 0], sizes = [8, 32], strides = [1, 1]} : vector<32x32xbf16> to vector<8x32xbf16>
    %cst_73 = arith.constant dense<0.000000e+00> : vector<16x32xf32>
    %274 = tpu.matmul %272, %273, %cst_73 {dimension_numbers = #tpu.dot_dimension_numbers<[1], [0], [0], [1], [0, 0, 1, 1], [], []>} : vector<16x8xbf16>, vector<8x32xbf16>, vector<16x32xf32> -> vector<16x32xf32>
    %275 = arith.addf %248, %274 : vector<16x32xf32>
    %276 = vector.extract_strided_slice %244 {offsets = [0, 0, 8], sizes = [2, 8, 8], strides = [1, 1, 1]} : vector<2x8x32xbf16> to vector<2x8x8xbf16>
    %277 = vector.extract_strided_slice %241 {offsets = [0, 0, 8], sizes = [2, 8, 8], strides = [1, 1, 1]} : vector<2x8x32xbf16> to vector<2x8x8xbf16>
    %278 = vector.extract_strided_slice %247 {offsets = [0, 0, 8], sizes = [2, 8, 8], strides = [1, 1, 1]} : vector<2x8x32xbf16> to vector<2x8x8xbf16>
    "tpu.trace_start"() <{level = 10 : i32, message = "bid,bjd->bij"}> : () -> ()
    %cst_74 = arith.constant dense<0.000000e+00> : vector<2x8x8xf32>
    %279 = tpu.matmul %276, %277, %cst_74 {dimension_numbers = #tpu.dot_dimension_numbers<[2], [2], [1], [1], [0, 0, 0, 1, 1, 1], [0], [0]>} : vector<2x8x8xbf16>, vector<2x8x8xbf16>, vector<2x8x8xf32> -> vector<2x8x8xf32>
    "tpu.trace_stop"() : () -> ()
    %cst_75 = arith.constant 0.353553385 : f32
    %280 = vector.broadcast %cst_75 : f32 to vector<2x8x8xf32>
    %281 = arith.mulf %279, %280 : vector<2x8x8xf32>
    %cst_76 = arith.constant -1.000000e+30 : f32
    %282 = vector.shape_cast %4 : vector<1x8x8xi1> to vector<1x8x8xi1>
    %283 = vector.broadcast %282 : vector<1x8x8xi1> to vector<2x8x8xi1>
    %284 = vector.broadcast %cst_76 : f32 to vector<2x8x8xf32>
    %285 = arith.select %283, %281, %284 : vector<2x8x8xi1>, vector<2x8x8xf32>
    %cst_77 = arith.constant dense<0xFF800000> : vector<2x8xf32>
    %286 = vector.multi_reduction <maximumf>, %285, %cst_77 [2] : vector<2x8x8xf32> to vector<2x8xf32>
    %287 = vector.shape_cast %286 : vector<2x8xf32> to vector<2x8x1xf32>
    %288 = vector.broadcast %287 : vector<2x8x1xf32> to vector<2x8x8xf32>
    %289 = arith.subf %285, %288 : vector<2x8x8xf32>
    %290 = math.exp %289 : vector<2x8x8xf32>
    %cst_78 = arith.constant dense<0.000000e+00> : vector<2x8xf32>
    %291 = vector.multi_reduction <add>, %290, %cst_78 [2] : vector<2x8x8xf32> to vector<2x8xf32>
    %292 = vector.shape_cast %291 : vector<2x8xf32> to vector<2x8x1xf32>
    %293 = tpu.reciprocal %292 {approx = true} : vector<2x8x1xf32> -> vector<2x8x1xf32>
    %294 = vector.broadcast %293 : vector<2x8x1xf32> to vector<2x8x8xf32>
    %295 = arith.mulf %290, %294 : vector<2x8x8xf32>
    %296 = arith.truncf %295 : vector<2x8x8xf32> to vector<2x8x8xbf16>
    "tpu.trace_start"() <{level = 10 : i32, message = "bij,bjd->bid"}> : () -> ()
    %cst_79 = arith.constant dense<0.000000e+00> : vector<2x8x8xf32>
    %297 = tpu.matmul %296, %278, %cst_79 {dimension_numbers = #tpu.dot_dimension_numbers<[2], [1], [1], [2], [0, 0, 0, 1, 1, 2], [0], [0]>} : vector<2x8x8xbf16>, vector<2x8x8xbf16>, vector<2x8x8xf32> -> vector<2x8x8xf32>
    "tpu.trace_stop"() : () -> ()
    %298 = vector.shape_cast %297 : vector<2x8x8xf32> to vector<16x8xf32>
    %299 = arith.truncf %298 : vector<16x8xf32> to vector<16x8xbf16>
    %300 = vector.extract_strided_slice %213 {offsets = [8, 0], sizes = [8, 32], strides = [1, 1]} : vector<32x32xbf16> to vector<8x32xbf16>
    %cst_80 = arith.constant dense<0.000000e+00> : vector<16x32xf32>
    %301 = tpu.matmul %299, %300, %cst_80 {dimension_numbers = #tpu.dot_dimension_numbers<[1], [0], [0], [1], [0, 0, 1, 1], [], []>} : vector<16x8xbf16>, vector<8x32xbf16>, vector<16x32xf32> -> vector<16x32xf32>
    %302 = arith.addf %275, %301 : vector<16x32xf32>
    %303 = vector.extract_strided_slice %244 {offsets = [0, 0, 16], sizes = [2, 8, 8], strides = [1, 1, 1]} : vector<2x8x32xbf16> to vector<2x8x8xbf16>
    %304 = vector.extract_strided_slice %241 {offsets = [0, 0, 16], sizes = [2, 8, 8], strides = [1, 1, 1]} : vector<2x8x32xbf16> to vector<2x8x8xbf16>
    %305 = vector.extract_strided_slice %247 {offsets = [0, 0, 16], sizes = [2, 8, 8], strides = [1, 1, 1]} : vector<2x8x32xbf16> to vector<2x8x8xbf16>
    "tpu.trace_start"() <{level = 10 : i32, message = "bid,bjd->bij"}> : () -> ()
    %cst_81 = arith.constant dense<0.000000e+00> : vector<2x8x8xf32>
    %306 = tpu.matmul %303, %304, %cst_81 {dimension_numbers = #tpu.dot_dimension_numbers<[2], [2], [1], [1], [0, 0, 0, 1, 1, 1], [0], [0]>} : vector<2x8x8xbf16>, vector<2x8x8xbf16>, vector<2x8x8xf32> -> vector<2x8x8xf32>
    "tpu.trace_stop"() : () -> ()
    %cst_82 = arith.constant 0.353553385 : f32
    %307 = vector.broadcast %cst_82 : f32 to vector<2x8x8xf32>
    %308 = arith.mulf %306, %307 : vector<2x8x8xf32>
    %cst_83 = arith.constant -1.000000e+30 : f32
    %309 = vector.shape_cast %4 : vector<1x8x8xi1> to vector<1x8x8xi1>
    %310 = vector.broadcast %309 : vector<1x8x8xi1> to vector<2x8x8xi1>
    %311 = vector.broadcast %cst_83 : f32 to vector<2x8x8xf32>
    %312 = arith.select %310, %308, %311 : vector<2x8x8xi1>, vector<2x8x8xf32>
    %cst_84 = arith.constant dense<0xFF800000> : vector<2x8xf32>
    %313 = vector.multi_reduction <maximumf>, %312, %cst_84 [2] : vector<2x8x8xf32> to vector<2x8xf32>
    %314 = vector.shape_cast %313 : vector<2x8xf32> to vector<2x8x1xf32>
    %315 = vector.broadcast %314 : vector<2x8x1xf32> to vector<2x8x8xf32>
    %316 = arith.subf %312, %315 : vector<2x8x8xf32>
    %317 = math.exp %316 : vector<2x8x8xf32>
    %cst_85 = arith.constant dense<0.000000e+00> : vector<2x8xf32>
    %318 = vector.multi_reduction <add>, %317, %cst_85 [2] : vector<2x8x8xf32> to vector<2x8xf32>
    %319 = vector.shape_cast %318 : vector<2x8xf32> to vector<2x8x1xf32>
    %320 = tpu.reciprocal %319 {approx = true} : vector<2x8x1xf32> -> vector<2x8x1xf32>
    %321 = vector.broadcast %320 : vector<2x8x1xf32> to vector<2x8x8xf32>
    %322 = arith.mulf %317, %321 : vector<2x8x8xf32>
    %323 = arith.truncf %322 : vector<2x8x8xf32> to vector<2x8x8xbf16>
    "tpu.trace_start"() <{level = 10 : i32, message = "bij,bjd->bid"}> : () -> ()
    %cst_86 = arith.constant dense<0.000000e+00> : vector<2x8x8xf32>
    %324 = tpu.matmul %323, %305, %cst_86 {dimension_numbers = #tpu.dot_dimension_numbers<[2], [1], [1], [2], [0, 0, 0, 1, 1, 2], [0], [0]>} : vector<2x8x8xbf16>, vector<2x8x8xbf16>, vector<2x8x8xf32> -> vector<2x8x8xf32>
    "tpu.trace_stop"() : () -> ()
    %325 = vector.shape_cast %324 : vector<2x8x8xf32> to vector<16x8xf32>
    %326 = arith.truncf %325 : vector<16x8xf32> to vector<16x8xbf16>
    %327 = vector.extract_strided_slice %213 {offsets = [16, 0], sizes = [8, 32], strides = [1, 1]} : vector<32x32xbf16> to vector<8x32xbf16>
    %cst_87 = arith.constant dense<0.000000e+00> : vector<16x32xf32>
    %328 = tpu.matmul %326, %327, %cst_87 {dimension_numbers = #tpu.dot_dimension_numbers<[1], [0], [0], [1], [0, 0, 1, 1], [], []>} : vector<16x8xbf16>, vector<8x32xbf16>, vector<16x32xf32> -> vector<16x32xf32>
    %329 = arith.addf %302, %328 : vector<16x32xf32>
    %330 = vector.extract_strided_slice %244 {offsets = [0, 0, 24], sizes = [2, 8, 8], strides = [1, 1, 1]} : vector<2x8x32xbf16> to vector<2x8x8xbf16>
    %331 = vector.extract_strided_slice %241 {offsets = [0, 0, 24], sizes = [2, 8, 8], strides = [1, 1, 1]} : vector<2x8x32xbf16> to vector<2x8x8xbf16>
    %332 = vector.extract_strided_slice %247 {offsets = [0, 0, 24], sizes = [2, 8, 8], strides = [1, 1, 1]} : vector<2x8x32xbf16> to vector<2x8x8xbf16>
    "tpu.trace_start"() <{level = 10 : i32, message = "bid,bjd->bij"}> : () -> ()
    %cst_88 = arith.constant dense<0.000000e+00> : vector<2x8x8xf32>
    %333 = tpu.matmul %330, %331, %cst_88 {dimension_numbers = #tpu.dot_dimension_numbers<[2], [2], [1], [1], [0, 0, 0, 1, 1, 1], [0], [0]>} : vector<2x8x8xbf16>, vector<2x8x8xbf16>, vector<2x8x8xf32> -> vector<2x8x8xf32>
    "tpu.trace_stop"() : () -> ()
    %cst_89 = arith.constant 0.353553385 : f32
    %334 = vector.broadcast %cst_89 : f32 to vector<2x8x8xf32>
    %335 = arith.mulf %333, %334 : vector<2x8x8xf32>
    %cst_90 = arith.constant -1.000000e+30 : f32
    %336 = vector.shape_cast %4 : vector<1x8x8xi1> to vector<1x8x8xi1>
    %337 = vector.broadcast %336 : vector<1x8x8xi1> to vector<2x8x8xi1>
    %338 = vector.broadcast %cst_90 : f32 to vector<2x8x8xf32>
    %339 = arith.select %337, %335, %338 : vector<2x8x8xi1>, vector<2x8x8xf32>
    %cst_91 = arith.constant dense<0xFF800000> : vector<2x8xf32>
    %340 = vector.multi_reduction <maximumf>, %339, %cst_91 [2] : vector<2x8x8xf32> to vector<2x8xf32>
    %341 = vector.shape_cast %340 : vector<2x8xf32> to vector<2x8x1xf32>
    %342 = vector.broadcast %341 : vector<2x8x1xf32> to vector<2x8x8xf32>
    %343 = arith.subf %339, %342 : vector<2x8x8xf32>
    %344 = math.exp %343 : vector<2x8x8xf32>
    %cst_92 = arith.constant dense<0.000000e+00> : vector<2x8xf32>
    %345 = vector.multi_reduction <add>, %344, %cst_92 [2] : vector<2x8x8xf32> to vector<2x8xf32>
    %346 = vector.shape_cast %345 : vector<2x8xf32> to vector<2x8x1xf32>
    %347 = tpu.reciprocal %346 {approx = true} : vector<2x8x1xf32> -> vector<2x8x1xf32>
    %348 = vector.broadcast %347 : vector<2x8x1xf32> to vector<2x8x8xf32>
    %349 = arith.mulf %344, %348 : vector<2x8x8xf32>
    %350 = arith.truncf %349 : vector<2x8x8xf32> to vector<2x8x8xbf16>
    "tpu.trace_start"() <{level = 10 : i32, message = "bij,bjd->bid"}> : () -> ()
    %cst_93 = arith.constant dense<0.000000e+00> : vector<2x8x8xf32>
    %351 = tpu.matmul %350, %332, %cst_93 {dimension_numbers = #tpu.dot_dimension_numbers<[2], [1], [1], [2], [0, 0, 0, 1, 1, 2], [0], [0]>} : vector<2x8x8xbf16>, vector<2x8x8xbf16>, vector<2x8x8xf32> -> vector<2x8x8xf32>
    "tpu.trace_stop"() : () -> ()
    %352 = vector.shape_cast %351 : vector<2x8x8xf32> to vector<16x8xf32>
    %353 = arith.truncf %352 : vector<16x8xf32> to vector<16x8xbf16>
    %354 = vector.extract_strided_slice %213 {offsets = [24, 0], sizes = [8, 32], strides = [1, 1]} : vector<32x32xbf16> to vector<8x32xbf16>
    %cst_94 = arith.constant dense<0.000000e+00> : vector<16x32xf32>
    %355 = tpu.matmul %353, %354, %cst_94 {dimension_numbers = #tpu.dot_dimension_numbers<[1], [0], [0], [1], [0, 0, 1, 1], [], []>} : vector<16x8xbf16>, vector<8x32xbf16>, vector<16x32xf32> -> vector<16x32xf32>
    %356 = arith.addf %329, %355 : vector<16x32xf32>
    %357 = arith.addf %197, %356 : vector<16x32xf32>
    %358 = vector.broadcast %209 : vector<1x32xf32> to vector<16x32xf32>
    %359 = arith.addf %357, %358 : vector<16x32xf32>
    %cst_95 = arith.constant dense<0.000000e+00> : vector<16xf32>
    %360 = vector.multi_reduction <add>, %359, %cst_95 [1] : vector<16x32xf32> to vector<16xf32>
    %361 = vector.shape_cast %360 : vector<16xf32> to vector<16x1xf32>
    %cst_96 = arith.constant 3.200000e+01 : f32
    %362 = vector.broadcast %cst_96 : f32 to vector<16x1xf32>
    %363 = arith.divf %361, %362 : vector<16x1xf32>
    %364 = vector.broadcast %363 : vector<16x1xf32> to vector<16x32xf32>
    %365 = arith.subf %359, %364 : vector<16x32xf32>
    %366 = arith.mulf %365, %365 : vector<16x32xf32>
    %cst_97 = arith.constant dense<0.000000e+00> : vector<16xf32>
    %367 = vector.multi_reduction <add>, %366, %cst_97 [1] : vector<16x32xf32> to vector<16xf32>
    %368 = vector.shape_cast %367 : vector<16xf32> to vector<16x1xf32>
    %cst_98 = arith.constant 3.200000e+01 : f32
    %369 = vector.broadcast %cst_98 : f32 to vector<16x1xf32>
    %370 = arith.divf %368, %369 : vector<16x1xf32>
    %cst_99 = arith.constant 9.99999974E-6 : f32
    %371 = vector.broadcast %cst_99 : f32 to vector<16x1xf32>
    %372 = arith.addf %370, %371 : vector<16x1xf32>
    %373 = math.rsqrt %372 : vector<16x1xf32>
    %374 = vector.broadcast %373 : vector<16x1xf32> to vector<16x32xf32>
    %375 = arith.mulf %365, %374 : vector<16x32xf32>
    %376 = vector.broadcast %206 : vector<1x32xf32> to vector<16x32xf32>
    %377 = arith.mulf %375, %376 : vector<16x32xf32>
    %378 = vector.broadcast %207 : vector<1x32xf32> to vector<16x32xf32>
    %379 = arith.addf %377, %378 : vector<16x32xf32>
    %380 = arith.truncf %379 : vector<16x32xf32> to vector<16x32xbf16>
    %cst_100 = arith.constant dense<0.000000e+00> : vector<16x128xf32>
    %381 = tpu.matmul %380, %214, %cst_100 {dimension_numbers = #tpu.dot_dimension_numbers<[1], [0], [0], [1], [0, 0, 1, 1], [], []>} : vector<16x32xbf16>, vector<32x128xbf16>, vector<16x128xf32> -> vector<16x128xf32>
    %382 = vector.broadcast %210 : vector<1x128xf32> to vector<16x128xf32>
    %383 = arith.addf %381, %382 : vector<16x128xf32>
    %cst_101 = arith.constant 0.000000e+00 : f32
    %384 = vector.broadcast %cst_101 : f32 to vector<16x128xf32>
    %385 = arith.maximumf %383, %384 : vector<16x128xf32>
    %386 = arith.truncf %385 : vector<16x128xf32> to vector<16x128xbf16>
    %cst_102 = arith.constant dense<0.000000e+00> : vector<16x32xf32>
    %387 = tpu.matmul %386, %201, %cst_102 {dimension_numbers = #tpu.dot_dimension_numbers<[1], [0], [0], [1], [0, 0, 1, 1], [], []>} : vector<16x128xbf16>, vector<128x32xbf16>, vector<16x32xf32> -> vector<16x32xf32>
    %388 = vector.broadcast %211 : vector<1x32xf32> to vector<16x32xf32>
    %389 = arith.addf %387, %388 : vector<16x32xf32>
    %390 = arith.addf %359, %389 : vector<16x32xf32>
    %c0_103 = arith.constant 0 : index
    %c0_104 = arith.constant 0 : index
    %391 = vector.load %arg5[%c0_103, %c0_104] : memref<8x128xf32, #tpu.memory_space<vmem>>, vector<8x128xf32>
    %392 = vector.extract_strided_slice %391 {offsets = [0, 0], sizes = [1, 32], strides = [1, 1]} : vector<8x128xf32> to vector<1x32xf32>
    %393 = vector.extract_strided_slice %391 {offsets = [1, 0], sizes = [1, 32], strides = [1, 1]} : vector<8x128xf32> to vector<1x32xf32>
    %394 = vector.extract_strided_slice %391 {offsets = [2, 0], sizes = [1, 128], strides = [1, 1]} : vector<8x128xf32> to vector<1x128xf32>
    %cst_105 = arith.constant dense<0.000000e+00> : vector<16xf32>
    %395 = vector.multi_reduction <add>, %390, %cst_105 [1] : vector<16x32xf32> to vector<16xf32>
    %396 = vector.shape_cast %395 : vector<16xf32> to vector<16x1xf32>
    %cst_106 = arith.constant 3.200000e+01 : f32
    %397 = vector.broadcast %cst_106 : f32 to vector<16x1xf32>
    %398 = arith.divf %396, %397 : vector<16x1xf32>
    %399 = vector.broadcast %398 : vector<16x1xf32> to vector<16x32xf32>
    %400 = arith.subf %390, %399 : vector<16x32xf32>
    %401 = arith.mulf %400, %400 : vector<16x32xf32>
    %cst_107 = arith.constant dense<0.000000e+00> : vector<16xf32>
    %402 = vector.multi_reduction <add>, %401, %cst_107 [1] : vector<16x32xf32> to vector<16xf32>
    %403 = vector.shape_cast %402 : vector<16xf32> to vector<16x1xf32>
    %cst_108 = arith.constant 3.200000e+01 : f32
    %404 = vector.broadcast %cst_108 : f32 to vector<16x1xf32>
    %405 = arith.divf %403, %404 : vector<16x1xf32>
    %cst_109 = arith.constant 9.99999974E-6 : f32
    %406 = vector.broadcast %cst_109 : f32 to vector<16x1xf32>
    %407 = arith.addf %405, %406 : vector<16x1xf32>
    %408 = math.rsqrt %407 : vector<16x1xf32>
    %409 = vector.broadcast %408 : vector<16x1xf32> to vector<16x32xf32>
    %410 = arith.mulf %400, %409 : vector<16x32xf32>
    %411 = vector.broadcast %392 : vector<1x32xf32> to vector<16x32xf32>
    %412 = arith.mulf %410, %411 : vector<16x32xf32>
    %413 = vector.broadcast %393 : vector<1x32xf32> to vector<16x32xf32>
    %414 = arith.addf %412, %413 : vector<16x32xf32>
    %415 = arith.truncf %414 : vector<16x32xf32> to vector<16x32xbf16>
    %c0_110 = arith.constant 0 : index
    %c0_111 = arith.constant 0 : index
    %416 = vector.load %arg4[%c0_110, %c0_111] : memref<32x128xbf16, #tpu.memory_space<vmem>>, vector<32x128xbf16>
    %cst_112 = arith.constant dense<0.000000e+00> : vector<16x128xf32>
    %417 = tpu.matmul %415, %416, %cst_112 {dimension_numbers = #tpu.dot_dimension_numbers<[1], [0], [0], [1], [0, 0, 1, 1], [], []>} : vector<16x32xbf16>, vector<32x128xbf16>, vector<16x128xf32> -> vector<16x128xf32>
    %418 = vector.broadcast %394 : vector<1x128xf32> to vector<16x128xf32>
    %419 = arith.addf %417, %418 : vector<16x128xf32>
    %c0_113 = arith.constant 0 : index
    %c0_114 = arith.constant 0 : index
    %420 = vector.load %arg6[%c0_113, %c0_114] : memref<16x128xf32, #tpu.memory_space<vmem>>, vector<16x128xf32>
    tpu.vector_store %arg6[%c0_113, %c0_114], %419 {strides = array<i32>} : memref<16x128xf32, #tpu.memory_space<vmem>>, vector<16x128xf32>,
    return
  }
}

</mosaic_0001>

<llo_original>
// kernel: tpu_custom_call.1
$region0: #{tpu_custom_call.1}
  #allocation0 [shape = 'u32[]', space=smem, size = 0x4, offset = 0x4, fixed_abs, tag = 'smem constant byte address 0x4 - core index']
  #allocation1 [shape = 'u32[144,128]{1,0:T(1,128)}', space=vmem, size = 0x12000, scoped, tag = 'internal scratch']
  %s0 = inlined_call_operand.vmem [shape: f32[16,32], index: 0, kind: input, shape index: {}]
  %s1 = inlined_call_operand.vmem [shape: bf16[2,32,256], index: 1, kind: input, shape index: {}]
  %s2 = inlined_call_operand.vmem [shape: bf16[2,128,32], index: 2, kind: input, shape index: {}]
  %s3 = inlined_call_operand.vmem [shape: f32[2,8,128], index: 3, kind: input, shape index: {}]
  %s4 = inlined_call_operand.vmem [shape: bf16[32,128], index: 4, kind: input, shape index: {}]
  %s5 = inlined_call_operand.vmem [shape: f32[8,128], index: 5, kind: input, shape index: {}]
  %s6 = inlined_call_operand.hbm [shape: f32[16,128], index: 6, kind: output, shape index: {}]
  %s7 = sld [smem:[#allocation0]]
  $region34: #{tpu_custom_call.1} parent=0
    _
  %s9 = ssub.s32 1, %s7
  %s10 = scalar_select 0, %s9, %s7
  $region1: #{tpu_custom_call.1} parent=0
    #allocation2 [shape = 'u8[8192]{0}', space=vmem, size = 0x2000, scoped, tag = 'output window, operand 0, single buffered']
    #allocation3 [shape = 's32[1]{0}', space=sflag, size = 0x4, scoped, tag = 'scoped memory for tpu_custom_call.1']
    %11 = vsyncpa [#allocation3], 0
    // Predicated region
    $region2: #{tpu_custom_call.1} parent=1 // pred_check
      _
    $region3: #{tpu_custom_call.1} parent=1 // pred_check_branch
      %13 = sbr.rel (0) target = $region5
    $region4: #{tpu_custom_call.1} parent=1 // pred_region
      _
    $region5: #{tpu_custom_call.1} parent=1 // pred_fallthru
      _
    // Predicated region
    $region6: #{tpu_custom_call.1} parent=1 // pred_check
      _
    $region7: #{tpu_custom_call.1} parent=1 // pred_check_branch
      %15 = sbr.rel (0) target = $region9
    $region8: #{tpu_custom_call.1} parent=1 // pred_region
      _
    $region9: #{tpu_custom_call.1} parent=1 // pred_fallthru
      _
    // Predicated region
    $region10: #{tpu_custom_call.1} parent=1 // pred_check
      _
    $region11: #{tpu_custom_call.1} parent=1 // pred_check_branch
      %17 = sbr.rel (0) target = $region13
    $region12: #{tpu_custom_call.1} parent=1 // pred_region
      _
    $region13: #{tpu_custom_call.1} parent=1 // pred_fallthru
      _
    // Predicated region
    $region14: #{tpu_custom_call.1} parent=1 // pred_check
      _
    $region15: #{tpu_custom_call.1} parent=1 // pred_check_branch
      %19 = sbr.rel (0) target = $region17
    $region16: #{tpu_custom_call.1} parent=1 // pred_region
      _
    $region17: #{tpu_custom_call.1} parent=1 // pred_fallthru
      _
    // Predicated region
    $region18: #{tpu_custom_call.1} parent=1 // pred_check
      _
    $region19: #{tpu_custom_call.1} parent=1 // pred_check_branch
      %21 = sbr.rel (0) target = $region21
    $region20: #{tpu_custom_call.1} parent=1 // pred_region
      _
    $region21: #{tpu_custom_call.1} parent=1 // pred_fallthru
      _
    // Predicated region
    $region22: #{tpu_custom_call.1} parent=1 // pred_check
      _
    $region23: #{tpu_custom_call.1} parent=1 // pred_check_branch
      %23 = sbr.rel (0) target = $region25
    $region24: #{tpu_custom_call.1} parent=1 // pred_region
      _
    $region25: #{tpu_custom_call.1} parent=1 // pred_fallthru
      _
    %v25 = vld [vmem:[%s0] sm:$0xff]
    %v26 = vld [vmem:[%s0 + $0x8] sm:$0xff]
    %v27 = vlaneseq
    %v28 = vshrl.u32 %v27, 7
    %v29 = vlaneseq
    %v30 = vand.u32 %v29, 127
    %vm31 = vcmp.le.s32.totalorder %v30, %v28
    %v32 = vld [vmem:[%s1] sm:$0xff]
    %v33 = vld [vmem:[%s1 + $0x8] sm:$0xff]
    %v34 = vld [vmem:[%s1 + $0x10] sm:$0xff]
    %v35 = vld [vmem:[%s1 + $0x18] sm:$0xff]
    %v36 = vld [vmem:[%s2] sm:$0xf]
    %v37 = vld [vmem:[%s2 + $0x4] sm:$0xf]
    %v38 = vld [vmem:[%s2 + $0x8] sm:$0xf]
    %v39 = vld [vmem:[%s2 + $0xc] sm:$0xf]
    %v40 = vld [vmem:[%s2 + $0x10] sm:$0xf]
    %v41 = vld [vmem:[%s2 + $0x14] sm:$0xf]
    %v42 = vld [vmem:[%s2 + $0x18] sm:$0xf]
    %v43 = vld [vmem:[%s2 + $0x1c] sm:$0xf]
    %v44 = vld [vmem:[%s2 + $0x20] sm:$0xf]
    %v45 = vld [vmem:[%s2 + $0x24] sm:$0xf]
    %v46 = vld [vmem:[%s2 + $0x28] sm:$0xf]
    %v47 = vld [vmem:[%s2 + $0x2c] sm:$0xf]
    %v48 = vld [vmem:[%s2 + $0x30] sm:$0xf]
    %v49 = vld [vmem:[%s2 + $0x34] sm:$0xf]
    %v50 = vld [vmem:[%s2 + $0x38] sm:$0xf]
    %v51 = vld [vmem:[%s2 + $0x3c] sm:$0xf]
    %v52 = vld [vmem:[%s3] sm:$0xff]
    %vm53 = vcmask 261120
    %v54 = vsel %vm53, %v25, 0.0
    %55 = vadd.xlane.f32.xlu0 %v54
    %v56 = vpop.xlane.xlu0 %55
    %v57 = vsel %vm53, %v26, 0.0
    %58 = vadd.xlane.f32.xlu0 %v57
    %v59 = vpop.xlane.xlu0 %58
    %v60 = vrcp.pop 32.0
    %v61 = vmul.f32 %v56, %v60
    %v62 = vmul.f32 %v59, %v60
    %v63 = vsub.f32 %v25, %v61
    %v64 = vsub.f32 %v26, %v62
    %v65 = vmul.f32 %v63, %v63
    %v66 = vmul.f32 %v64, %v64
    %v67 = vsel %vm53, %v65, 0.0
    %68 = vadd.xlane.f32.xlu0 %v67
    %v69 = vpop.xlane.xlu0 %68
    %v70 = vsel %vm53, %v66, 0.0
    %71 = vadd.xlane.f32.xlu0 %v70
    %v72 = vpop.xlane.xlu0 %71
    %v73 = vmul.f32 %v69, %v60
    %v74 = vmul.f32 %v72, %v60
    %v75 = vadd.f32 %v73, 1e-05
    %v76 = vadd.f32 %v74, 1e-05
    %v77 = vrsqrt.pop %v75
    %v78 = vrsqrt.pop %v76
    %v79 = vmul.f32 %v63, %v77
    %v80 = vmul.f32 %v64, %v78
    %v81 = vlaneseq
    %v82 = vshrl.u32 %v81, 7
    %v83 = vsub.s32 0, %v82
    %v84 = vrot.slane %v52, %v83
    %v85 = vmul.f32 %v79, %v84
    %v86 = vmul.f32 %v80, %v84
    %v87 = vlaneseq
    %v88 = vshrl.u32 %v87, 7
    %v89 = vsub.s32 1, %v88
    %v90 = vrot.slane %v52, %v89
    %v91 = vadd.f32 %v85, %v90
    %v92 = vadd.f32 %v86, %v90
    %v93 = vpack.c.bf16 %v92, %v91
    %v94 = vlaneseq
    %v95 = vshrl.u32 %v94, 7
    %v96 = vsub.s32 4, %v95
    %v97 = vrot.slane %v52, %v96
    %v102 = vunpack.c.l.b16 %v32
    %v103 = vunpack.c.l.b16 %v33
    %v104 = vunpack.c.l.b16 %v34
    %v105 = vunpack.c.l.b16 %v35
    %v106 = vpack.c.b16 %v103, %v102
    %v107 = vpack.c.b16 %v105, %v104
    %v111 = vsel %vm53, %v93, 0
    %113 = vmatprep.subr.bf16.mxu0 0
    %114 = vmatpush1.bf16.msra.mxu0 0
    %115 = vmatprep.subr.bf16.mxu0 0
    %116 = vmatpush1.bf16.msra.mxu0 0
    %117 = vmatprep.subr.bf16.mxu0 0
    %118 = vmatpush1.bf16.msra.mxu0 0
    %119 = vmatprep.subr.bf16.mxu0 0
    %120 = vmatpush1.bf16.msra.mxu0 0
    %121 = vmatprep.subr.bf16.mxu0 0
    %122 = vmatpush1.bf16.msra.mxu0 0
    %123 = vmatprep.subr.bf16.mxu0 0
    %124 = vmatpush1.bf16.msra.mxu0 0
    %125 = vmatprep.subr.bf16.mxu0 0
    %126 = vmatpush1.bf16.msra.mxu0 %v107
    %127 = vmatprep.subr.bf16.mxu0 0
    %128 = vmatpush1.bf16.msra.mxu0 %v106
    %129 = vmatprep.subr.bf16.mxu0 0
    %130 = vmatpush2.bf16.msra.mxu0 0
    %131 = vmatprep.subr.bf16.mxu0 0
    %132 = vmatpush2.bf16.msra.mxu0 0
    %133 = vmatprep.subr.bf16.mxu0 0
    %134 = vmatpush2.bf16.msra.mxu0 0
    %135 = vmatprep.subr.bf16.mxu0 0
    %136 = vmatpush2.bf16.msra.mxu0 0
    %137 = vmatprep.subr.bf16.mxu0 0
    %138 = vmatpush2.bf16.msra.mxu0 0
    %139 = vmatprep.subr.bf16.mxu0 0
    %140 = vmatpush2.bf16.msra.mxu0 0
    %141 = vmatprep.subr.bf16.mxu0 0
    %142 = vmatpush2.bf16.msra.mxu0 0
    %143 = vmatprep.subr.bf16.mxu0 0
    %144 = vmatpush2.bf16.msra.mxu0 0
    %145 = vmatprep.mubr.bf16.mxu0 0
    %146 = vmatmul.mubr.bf16.gmra.mxu0 %v111
    %v147 = vpop.f32.mrf.mxu0
    %v148 = vadd.f32 %v97, %v147
    %v149 = vpop.f32.mrf.mxu0
    %v150 = vpop.f32.mrf.mxu0
    %v151 = vadd.f32 %v97, %v150
    %v152 = vpop.f32.mrf.mxu0
    %153 = vdwg.mxu0
    %v154 = vpack.c.bf16 %v148, %v148
    %v155 = vpack.c.bf16 %v151, %v151
    %157 = vrot.lane.b32.xlu0 %v154, 96
    %v158 = vpop.permute.xlu0 %157
    %vm159 = vcmask 64512
    %v161 = vsel %vm159, %v158, 0
    %v164 = vsel %vm159, %v154, 0
    %166 = vmatprep.subr.bf16.mxu0 0
    %167 = vmatpush1.bf16.xpose.msra.mxu0 0
    %168 = vmatprep.subr.bf16.mxu0 0
    %169 = vmatpush1.bf16.xpose.msra.mxu0 0
    %170 = vmatprep.subr.bf16.mxu0 0
    %171 = vmatpush1.bf16.xpose.msra.mxu0 0
    %172 = vmatprep.subr.bf16.mxu0 0
    %173 = vmatpush1.bf16.xpose.msra.mxu0 0
    %174 = vmatprep.subr.bf16.mxu0 0
    %175 = vmatpush1.bf16.xpose.msra.mxu0 0
    %176 = vmatprep.subr.bf16.mxu0 0
    %177 = vmatpush1.bf16.xpose.msra.mxu0 0
    %178 = vmatprep.subr.bf16.mxu0 0
    %179 = vmatpush1.bf16.xpose.msra.mxu0 0
    %180 = vmatprep.subr.bf16.mxu0 0
    %181 = vmatpush1.bf16.xpose.msra.mxu0 %v164
    %182 = vmatprep.subr.bf16.mxu0 0
    %183 = vmatpush2.bf16.xpose.msra.mxu0 0
    %184 = vmatprep.subr.bf16.mxu0 0
    %185 = vmatpush2.bf16.xpose.msra.mxu0 0
    %186 = vmatprep.subr.bf16.mxu0 0
    %187 = vmatpush2.bf16.xpose.msra.mxu0 0
    %188 = vmatprep.subr.bf16.mxu0 0
    %189 = vmatpush2.bf16.xpose.msra.mxu0 0
    %190 = vmatprep.subr.bf16.mxu0 0
    %191 = vmatpush2.bf16.xpose.msra.mxu0 0
    %192 = vmatprep.subr.bf16.mxu0 0
    %193 = vmatpush2.bf16.xpose.msra.mxu0 0
    %194 = vmatprep.subr.bf16.mxu0 0
    %195 = vmatpush2.bf16.xpose.msra.mxu0 0
    %196 = vmatprep.subr.bf16.mxu0 0
    %197 = vmatpush2.bf16.xpose.msra.mxu0 0
    %198 = vmatprep.mubr.bf16.mxu0 0
    %199 = vmatmul.mubr.bf16.gmra.mxu0 %v161
    %v200 = vpop.f32.mrf.mxu0
    %v201 = vadd.f32 0.0, %v200
    %v202 = vpop.f32.mrf.mxu0
    %v203 = vpop.f32.mrf.mxu0
    %v204 = vpop.f32.mrf.mxu0
    %205 = vdwg.mxu0
    %207 = vrot.lane.b32.xlu0 %v155, 96
    %v208 = vpop.permute.xlu0 %207
    %v210 = vsel %vm159, %v208, 0
    %v213 = vsel %vm159, %v155, 0
    %215 = vmatprep.subr.bf16.mxu0 0
    %216 = vmatpush1.bf16.xpose.msra.mxu0 0
    %217 = vmatprep.subr.bf16.mxu0 0
    %218 = vmatpush1.bf16.xpose.msra.mxu0 0
    %219 = vmatprep.subr.bf16.mxu0 0
    %220 = vmatpush1.bf16.xpose.msra.mxu0 0
    %221 = vmatprep.subr.bf16.mxu0 0
    %222 = vmatpush1.bf16.xpose.msra.mxu0 0
    %223 = vmatprep.subr.bf16.mxu0 0
    %224 = vmatpush1.bf16.xpose.msra.mxu0 0
    %225 = vmatprep.subr.bf16.mxu0 0
    %226 = vmatpush1.bf16.xpose.msra.mxu0 0
    %227 = vmatprep.subr.bf16.mxu0 0
    %228 = vmatpush1.bf16.xpose.msra.mxu0 0
    %229 = vmatprep.subr.bf16.mxu0 0
    %230 = vmatpush1.bf16.xpose.msra.mxu0 %v213
    %231 = vmatprep.subr.bf16.mxu0 0
    %232 = vmatpush2.bf16.xpose.msra.mxu0 0
    %233 = vmatprep.subr.bf16.mxu0 0
    %234 = vmatpush2.bf16.xpose.msra.mxu0 0
    %235 = vmatprep.subr.bf16.mxu0 0
    %236 = vmatpush2.bf16.xpose.msra.mxu0 0
    %237 = vmatprep.subr.bf16.mxu0 0
    %238 = vmatpush2.bf16.xpose.msra.mxu0 0
    %239 = vmatprep.subr.bf16.mxu0 0
    %240 = vmatpush2.bf16.xpose.msra.mxu0 0
    %241 = vmatprep.subr.bf16.mxu0 0
    %242 = vmatpush2.bf16.xpose.msra.mxu0 0
    %243 = vmatprep.subr.bf16.mxu0 0
    %244 = vmatpush2.bf16.xpose.msra.mxu0 0
    %245 = vmatprep.subr.bf16.mxu0 0
    %246 = vmatpush2.bf16.xpose.msra.mxu0 0
    %247 = vmatprep.mubr.bf16.mxu0 0
    %248 = vmatmul.mubr.bf16.gmra.mxu0 %v210
    %v249 = vpop.f32.mrf.mxu0
    %v250 = vadd.f32 0.0, %v249
    %v251 = vpop.f32.mrf.mxu0
    %v252 = vpop.f32.mrf.mxu0
    %v253 = vpop.f32.mrf.mxu0
    %254 = vdwg.mxu0
    %v255 = vmul.f32 %v201, 0.35355338
    %v256 = vmul.f32 %v250, 0.35355338
    %v257 = vsel %vm31, 1, 0
    %vm258 = vcmp.eq.s32.totalorder %v257, 1
    %v259 = vsel %vm258, %v255, -1e+30
    %v260 = vsel %vm258, %v256, -1e+30
    %v261 = vsel %vm159, %v259, -inf
    %262 = vmax.xlane.f32.xlu0 %v261
    %v263 = vpop.xlane.xlu0 %262
    %v264 = vsel %vm159, %v260, -inf
    %265 = vmax.xlane.f32.xlu0 %v264
    %v266 = vpop.xlane.xlu0 %265
    %v267 = vsub.f32 %v259, %v263
    %v268 = vsub.f32 %v260, %v266
    %v269 = vmul.f32 %v267, 1.442695
    %v270 = vpow.pop %v269
    %v271 = vmul.f32 %v268, 1.442695
    %v272 = vpow.pop %v271
    %v273 = vsel %vm159, %v270, 0.0
    %274 = vadd.xlane.f32.xlu0 %v273
    %v275 = vpop.xlane.xlu0 %274
    %v276 = vsel %vm159, %v272, 0.0
    %277 = vadd.xlane.f32.xlu0 %v276
    %v278 = vpop.xlane.xlu0 %277
    %v279 = vrcp.pop %v275
    %v280 = vrcp.pop %v278
    %v281 = vmul.f32 %v270, %v279
    %v282 = vmul.f32 %v272, %v280
    %v283 = vpack.c.bf16 %v281, %v281
    %v284 = vpack.c.bf16 %v282, %v282
    %285 = vrot.lane.b32.xlu0 %v154, 64
    %v286 = vpop.permute.xlu0 %285
    %v288 = vsel %vm159, %v283, 0
    %vm290 = vcmask 1043456
    %v292 = vsel %vm290, %v286, 0
    %294 = vmatprep.subr.bf16.mxu0 0
    %295 = vmatpush1.bf16.msra.mxu0 0
    %296 = vmatprep.subr.bf16.mxu0 0
    %297 = vmatpush1.bf16.msra.mxu0 0
    %298 = vmatprep.subr.bf16.mxu0 0
    %299 = vmatpush1.bf16.msra.mxu0 0
    %300 = vmatprep.subr.bf16.mxu0 0
    %301 = vmatpush1.bf16.msra.mxu0 0
    %302 = vmatprep.subr.bf16.mxu0 0
    %303 = vmatpush1.bf16.msra.mxu0 0
    %304 = vmatprep.subr.bf16.mxu0 0
    %305 = vmatpush1.bf16.msra.mxu0 0
    %306 = vmatprep.subr.bf16.mxu0 0
    %307 = vmatpush1.bf16.msra.mxu0 0
    %308 = vmatprep.subr.bf16.mxu0 0
    %309 = vmatpush1.bf16.msra.mxu0 %v292
    %310 = vmatprep.subr.bf16.mxu0 0
    %311 = vmatpush2.bf16.msra.mxu0 0
    %312 = vmatprep.subr.bf16.mxu0 0
    %313 = vmatpush2.bf16.msra.mxu0 0
    %314 = vmatprep.subr.bf16.mxu0 0
    %315 = vmatpush2.bf16.msra.mxu0 0
    %316 = vmatprep.subr.bf16.mxu0 0
    %317 = vmatpush2.bf16.msra.mxu0 0
    %318 = vmatprep.subr.bf16.mxu0 0
    %319 = vmatpush2.bf16.msra.mxu0 0
    %320 = vmatprep.subr.bf16.mxu0 0
    %321 = vmatpush2.bf16.msra.mxu0 0
    %322 = vmatprep.subr.bf16.mxu0 0
    %323 = vmatpush2.bf16.msra.mxu0 0
    %324 = vmatprep.subr.bf16.mxu0 0
    %325 = vmatpush2.bf16.msra.mxu0 0
    %326 = vmatprep.mubr.bf16.mxu0 0
    %327 = vmatmul.mubr.bf16.gmra.mxu0 %v288
    %v328 = vpop.f32.mrf.mxu0
    %v329 = vadd.f32 0.0, %v328
    %v330 = vpop.f32.mrf.mxu0
    %v331 = vpop.f32.mrf.mxu0
    %v332 = vpop.f32.mrf.mxu0
    %333 = vdwg.mxu0
    %334 = vrot.lane.b32.xlu0 %v155, 64
    %v335 = vpop.permute.xlu0 %334
    %v337 = vsel %vm159, %v284, 0
    %v340 = vsel %vm290, %v335, 0
    %342 = vmatprep.subr.bf16.mxu0 0
    %343 = vmatpush1.bf16.msra.mxu0 0
    %344 = vmatprep.subr.bf16.mxu0 0
    %345 = vmatpush1.bf16.msra.mxu0 0
    %346 = vmatprep.subr.bf16.mxu0 0
    %347 = vmatpush1.bf16.msra.mxu0 0
    %348 = vmatprep.subr.bf16.mxu0 0
    %349 = vmatpush1.bf16.msra.mxu0 0
    %350 = vmatprep.subr.bf16.mxu0 0
    %351 = vmatpush1.bf16.msra.mxu0 0
    %352 = vmatprep.subr.bf16.mxu0 0
    %353 = vmatpush1.bf16.msra.mxu0 0
    %354 = vmatprep.subr.bf16.mxu0 0
    %355 = vmatpush1.bf16.msra.mxu0 0
    %356 = vmatprep.subr.bf16.mxu0 0
    %357 = vmatpush1.bf16.msra.mxu0 %v340
    %358 = vmatprep.subr.bf16.mxu0 0
    %359 = vmatpush2.bf16.msra.mxu0 0
    %360 = vmatprep.subr.bf16.mxu0 0
    %361 = vmatpush2.bf16.msra.mxu0 0
    %362 = vmatprep.subr.bf16.mxu0 0
    %363 = vmatpush2.bf16.msra.mxu0 0
    %364 = vmatprep.subr.bf16.mxu0 0
    %365 = vmatpush2.bf16.msra.mxu0 0
    %366 = vmatprep.subr.bf16.mxu0 0
    %367 = vmatpush2.bf16.msra.mxu0 0
    %368 = vmatprep.subr.bf16.mxu0 0
    %369 = vmatpush2.bf16.msra.mxu0 0
    %370 = vmatprep.subr.bf16.mxu0 0
    %371 = vmatpush2.bf16.msra.mxu0 0
    %372 = vmatprep.subr.bf16.mxu0 0
    %373 = vmatpush2.bf16.msra.mxu0 0
    %374 = vmatprep.mubr.bf16.mxu0 0
    %375 = vmatmul.mubr.bf16.gmra.mxu0 %v337
    %v376 = vpop.f32.mrf.mxu0
    %v377 = vadd.f32 0.0, %v376
    %v378 = vpop.f32.mrf.mxu0
    %v379 = vpop.f32.mrf.mxu0
    %v380 = vpop.f32.mrf.mxu0
    %381 = vdwg.mxu0
    %v382 = vpack.c.bf16 %v377, %v329
    %383 = vrot.lane.b32.xlu0 %v154, 88
    %v384 = vpop.permute.xlu0 %383
    %385 = vrot.lane.b32.xlu0 %v154, 120
    %v386 = vpop.permute.xlu0 %385
    %v388 = vsel %vm159, %v384, 0
    %v391 = vsel %vm159, %v386, 0
    %393 = vmatprep.subr.bf16.mxu0 0
    %394 = vmatpush1.bf16.xpose.msra.mxu0 0
    %395 = vmatprep.subr.bf16.mxu0 0
    %396 = vmatpush1.bf16.xpose.msra.mxu0 0
    %397 = vmatprep.subr.bf16.mxu0 0
    %398 = vmatpush1.bf16.xpose.msra.mxu0 0
    %399 = vmatprep.subr.bf16.mxu0 0
    %400 = vmatpush1.bf16.xpose.msra.mxu0 0
    %401 = vmatprep.subr.bf16.mxu0 0
    %402 = vmatpush1.bf16.xpose.msra.mxu0 0
    %403 = vmatprep.subr.bf16.mxu0 0
    %404 = vmatpush1.bf16.xpose.msra.mxu0 0
    %405 = vmatprep.subr.bf16.mxu0 0
    %406 = vmatpush1.bf16.xpose.msra.mxu0 0
    %407 = vmatprep.subr.bf16.mxu0 0
    %408 = vmatpush1.bf16.xpose.msra.mxu0 %v391
    %409 = vmatprep.subr.bf16.mxu0 0
    %410 = vmatpush2.bf16.xpose.msra.mxu0 0
    %411 = vmatprep.subr.bf16.mxu0 0
    %412 = vmatpush2.bf16.xpose.msra.mxu0 0
    %413 = vmatprep.subr.bf16.mxu0 0
    %414 = vmatpush2.bf16.xpose.msra.mxu0 0
    %415 = vmatprep.subr.bf16.mxu0 0
    %416 = vmatpush2.bf16.xpose.msra.mxu0 0
    %417 = vmatprep.subr.bf16.mxu0 0
    %418 = vmatpush2.bf16.xpose.msra.mxu0 0
    %419 = vmatprep.subr.bf16.mxu0 0
    %420 = vmatpush2.bf16.xpose.msra.mxu0 0
    %421 = vmatprep.subr.bf16.mxu0 0
    %422 = vmatpush2.bf16.xpose.msra.mxu0 0
    %423 = vmatprep.subr.bf16.mxu0 0
    %424 = vmatpush2.bf16.xpose.msra.mxu0 0
    %425 = vmatprep.mubr.bf16.mxu0 0
    %426 = vmatmul.mubr.bf16.gmra.mxu0 %v388
    %v427 = vpop.f32.mrf.mxu0
    %v428 = vadd.f32 0.0, %v427
    %v429 = vpop.f32.mrf.mxu0
    %v430 = vpop.f32.mrf.mxu0
    %v431 = vpop.f32.mrf.mxu0
    %432 = vdwg.mxu0
    %433 = vrot.lane.b32.xlu0 %v155, 88
    %v434 = vpop.permute.xlu0 %433
    %435 = vrot.lane.b32.xlu0 %v155, 120
    %v436 = vpop.permute.xlu0 %435
    %v438 = vsel %vm159, %v434, 0
    %v441 = vsel %vm159, %v436, 0
    %443 = vmatprep.subr.bf16.mxu0 0
    %444 = vmatpush1.bf16.xpose.msra.mxu0 0
    %445 = vmatprep.subr.bf16.mxu0 0
    %446 = vmatpush1.bf16.xpose.msra.mxu0 0
    %447 = vmatprep.subr.bf16.mxu0 0
    %448 = vmatpush1.bf16.xpose.msra.mxu0 0
    %449 = vmatprep.subr.bf16.mxu0 0
    %450 = vmatpush1.bf16.xpose.msra.mxu0 0
    %451 = vmatprep.subr.bf16.mxu0 0
    %452 = vmatpush1.bf16.xpose.msra.mxu0 0
    %453 = vmatprep.subr.bf16.mxu0 0
    %454 = vmatpush1.bf16.xpose.msra.mxu0 0
    %455 = vmatprep.subr.bf16.mxu0 0
    %456 = vmatpush1.bf16.xpose.msra.mxu0 0
    %457 = vmatprep.subr.bf16.mxu0 0
    %458 = vmatpush1.bf16.xpose.msra.mxu0 %v441
    %459 = vmatprep.subr.bf16.mxu0 0
    %460 = vmatpush2.bf16.xpose.msra.mxu0 0
    %461 = vmatprep.subr.bf16.mxu0 0
    %462 = vmatpush2.bf16.xpose.msra.mxu0 0
    %463 = vmatprep.subr.bf16.mxu0 0
    %464 = vmatpush2.bf16.xpose.msra.mxu0 0
    %465 = vmatprep.subr.bf16.mxu0 0
    %466 = vmatpush2.bf16.xpose.msra.mxu0 0
    %467 = vmatprep.subr.bf16.mxu0 0
    %468 = vmatpush2.bf16.xpose.msra.mxu0 0
    %469 = vmatprep.subr.bf16.mxu0 0
    %470 = vmatpush2.bf16.xpose.msra.mxu0 0
    %471 = vmatprep.subr.bf16.mxu0 0
    %472 = vmatpush2.bf16.xpose.msra.mxu0 0
    %473 = vmatprep.subr.bf16.mxu0 0
    %474 = vmatpush2.bf16.xpose.msra.mxu0 0
    %475 = vmatprep.mubr.bf16.mxu0 0
    %476 = vmatmul.mubr.bf16.gmra.mxu0 %v438
    %v477 = vpop.f32.mrf.mxu0
    %v478 = vadd.f32 0.0, %v477
    %v479 = vpop.f32.mrf.mxu0
    %v480 = vpop.f32.mrf.mxu0
    %v481 = vpop.f32.mrf.mxu0
    %482 = vdwg.mxu0
    %v483 = vmul.f32 %v428, 0.35355338
    %v484 = vmul.f32 %v478, 0.35355338
    %v485 = vsel %vm258, %v483, -1e+30
    %v486 = vsel %vm258, %v484, -1e+30
    %v487 = vsel %vm159, %v485, -inf
    %488 = vmax.xlane.f32.xlu0 %v487
    %v489 = vpop.xlane.xlu0 %488
    %v490 = vsel %vm159, %v486, -inf
    %491 = vmax.xlane.f32.xlu0 %v490
    %v492 = vpop.xlane.xlu0 %491
    %v493 = vsub.f32 %v485, %v489
    %v494 = vsub.f32 %v486, %v492
    %v495 = vmul.f32 %v493, 1.442695
    %v496 = vpow.pop %v495
    %v497 = vmul.f32 %v494, 1.442695
    %v498 = vpow.pop %v497
    %v499 = vsel %vm159, %v496, 0.0
    %500 = vadd.xlane.f32.xlu0 %v499
    %v501 = vpop.xlane.xlu0 %500
    %v502 = vsel %vm159, %v498, 0.0
    %503 = vadd.xlane.f32.xlu0 %v502
    %v504 = vpop.xlane.xlu0 %503
    %v505 = vrcp.pop %v501
    %v506 = vrcp.pop %v504
    %v507 = vmul.f32 %v496, %v505
    %v508 = vmul.f32 %v498, %v506
    %v509 = vpack.c.bf16 %v507, %v507
    %v510 = vpack.c.bf16 %v508, %v508
    %511 = vrot.lane.b32.xlu0 %v154, 56
    %v512 = vpop.permute.xlu0 %511
    %v514 = vsel %vm159, %v509, 0
    %v517 = vsel %vm290, %v512, 0
    %519 = vmatprep.subr.bf16.mxu0 0
    %520 = vmatpush1.bf16.msra.mxu0 0
    %521 = vmatprep.subr.bf16.mxu0 0
    %522 = vmatpush1.bf16.msra.mxu0 0
    %523 = vmatprep.subr.bf16.mxu0 0
    %524 = vmatpush1.bf16.msra.mxu0 0
    %525 = vmatprep.subr.bf16.mxu0 0
    %526 = vmatpush1.bf16.msra.mxu0 0
    %527 = vmatprep.subr.bf16.mxu0 0
    %528 = vmatpush1.bf16.msra.mxu0 0
    %529 = vmatprep.subr.bf16.mxu0 0
    %530 = vmatpush1.bf16.msra.mxu0 0
    %531 = vmatprep.subr.bf16.mxu0 0
    %532 = vmatpush1.bf16.msra.mxu0 0
    %533 = vmatprep.subr.bf16.mxu0 0
    %534 = vmatpush1.bf16.msra.mxu0 %v517
    %535 = vmatprep.subr.bf16.mxu0 0
    %536 = vmatpush2.bf16.msra.mxu0 0
    %537 = vmatprep.subr.bf16.mxu0 0
    %538 = vmatpush2.bf16.msra.mxu0 0
    %539 = vmatprep.subr.bf16.mxu0 0
    %540 = vmatpush2.bf16.msra.mxu0 0
    %541 = vmatprep.subr.bf16.mxu0 0
    %542 = vmatpush2.bf16.msra.mxu0 0
    %543 = vmatprep.subr.bf16.mxu0 0
    %544 = vmatpush2.bf16.msra.mxu0 0
    %545 = vmatprep.subr.bf16.mxu0 0
    %546 = vmatpush2.bf16.msra.mxu0 0
    %547 = vmatprep.subr.bf16.mxu0 0
    %548 = vmatpush2.bf16.msra.mxu0 0
    %549 = vmatprep.subr.bf16.mxu0 0
    %550 = vmatpush2.bf16.msra.mxu0 0
    %551 = vmatprep.mubr.bf16.mxu0 0
    %552 = vmatmul.mubr.bf16.gmra.mxu0 %v514
    %v553 = vpop.f32.mrf.mxu0
    %v554 = vadd.f32 0.0, %v553
    %v555 = vpop.f32.mrf.mxu0
    %v556 = vpop.f32.mrf.mxu0
    %v557 = vpop.f32.mrf.mxu0
    %558 = vdwg.mxu0
    %559 = vrot.lane.b32.xlu0 %v155, 56
    %v560 = vpop.permute.xlu0 %559
    %v562 = vsel %vm159, %v510, 0
    %v565 = vsel %vm290, %v560, 0
    %567 = vmatprep.subr.bf16.mxu0 0
    %568 = vmatpush1.bf16.msra.mxu0 0
    %569 = vmatprep.subr.bf16.mxu0 0
    %570 = vmatpush1.bf16.msra.mxu0 0
    %571 = vmatprep.subr.bf16.mxu0 0
    %572 = vmatpush1.bf16.msra.mxu0 0
    %573 = vmatprep.subr.bf16.mxu0 0
    %574 = vmatpush1.bf16.msra.mxu0 0
    %575 = vmatprep.subr.bf16.mxu0 0
    %576 = vmatpush1.bf16.msra.mxu0 0
    %577 = vmatprep.subr.bf16.mxu0 0
    %578 = vmatpush1.bf16.msra.mxu0 0
    %579 = vmatprep.subr.bf16.mxu0 0
    %580 = vmatpush1.bf16.msra.mxu0 0
    %581 = vmatprep.subr.bf16.mxu0 0
    %582 = vmatpush1.bf16.msra.mxu0 %v565
    %583 = vmatprep.subr.bf16.mxu0 0
    %584 = vmatpush2.bf16.msra.mxu0 0
    %585 = vmatprep.subr.bf16.mxu0 0
    %586 = vmatpush2.bf16.msra.mxu0 0
    %587 = vmatprep.subr.bf16.mxu0 0
    %588 = vmatpush2.bf16.msra.mxu0 0
    %589 = vmatprep.subr.bf16.mxu0 0
    %590 = vmatpush2.bf16.msra.mxu0 0
    %591 = vmatprep.subr.bf16.mxu0 0
    %592 = vmatpush2.bf16.msra.mxu0 0
    %593 = vmatprep.subr.bf16.mxu0 0
    %594 = vmatpush2.bf16.msra.mxu0 0
    %595 = vmatprep.subr.bf16.mxu0 0
    %596 = vmatpush2.bf16.msra.mxu0 0
    %597 = vmatprep.subr.bf16.mxu0 0
    %598 = vmatpush2.bf16.msra.mxu0 0
    %599 = vmatprep.mubr.bf16.mxu0 0
    %600 = vmatmul.mubr.bf16.gmra.mxu0 %v562
    %v601 = vpop.f32.mrf.mxu0
    %v602 = vadd.f32 0.0, %v601
    %v603 = vpop.f32.mrf.mxu0
    %v604 = vpop.f32.mrf.mxu0
    %v605 = vpop.f32.mrf.mxu0
    %606 = vdwg.mxu0
    %v607 = vpack.c.bf16 %v602, %v554
    %v608 = vpack.c.b16 %v103, %v103
    %609 = vrot.lane.b32.xlu0 %v608, 32
    %v610 = vpop.permute.xlu0 %609
    %v612 = vsel %vm159, %v607, 0
    %v615 = vsel %vm290, %v610, 0
    %617 = vmatprep.subr.bf16.mxu0 0
    %618 = vmatpush1.bf16.msra.mxu0 0
    %619 = vmatprep.subr.bf16.mxu0 0
    %620 = vmatpush1.bf16.msra.mxu0 0
    %621 = vmatprep.subr.bf16.mxu0 0
    %622 = vmatpush1.bf16.msra.mxu0 0
    %623 = vmatprep.subr.bf16.mxu0 0
    %624 = vmatpush1.bf16.msra.mxu0 0
    %625 = vmatprep.subr.bf16.mxu0 0
    %626 = vmatpush1.bf16.msra.mxu0 0
    %627 = vmatprep.subr.bf16.mxu0 0
    %628 = vmatpush1.bf16.msra.mxu0 0
    %629 = vmatprep.subr.bf16.mxu0 0
    %630 = vmatpush1.bf16.msra.mxu0 0
    %631 = vmatprep.subr.bf16.mxu0 0
    %632 = vmatpush1.bf16.msra.mxu0 %v615
    %633 = vmatprep.subr.bf16.mxu0 0
    %634 = vmatpush2.bf16.msra.mxu0 0
    %635 = vmatprep.subr.bf16.mxu0 0
    %636 = vmatpush2.bf16.msra.mxu0 0
    %637 = vmatprep.subr.bf16.mxu0 0
    %638 = vmatpush2.bf16.msra.mxu0 0
    %639 = vmatprep.subr.bf16.mxu0 0
    %640 = vmatpush2.bf16.msra.mxu0 0
    %641 = vmatprep.subr.bf16.mxu0 0
    %642 = vmatpush2.bf16.msra.mxu0 0
    %643 = vmatprep.subr.bf16.mxu0 0
    %644 = vmatpush2.bf16.msra.mxu0 0
    %645 = vmatprep.subr.bf16.mxu0 0
    %646 = vmatpush2.bf16.msra.mxu0 0
    %647 = vmatprep.subr.bf16.mxu0 0
    %648 = vmatpush2.bf16.msra.mxu0 0
    %649 = vmatprep.mubr.bf16.mxu0 0
    %650 = vmatmul.mubr.bf16.gmra.mxu0 %v612
    %v651 = vpop.f32.mrf.mxu0
    %v652 = vadd.f32 0.0, %v651
    %v653 = vpop.f32.mrf.mxu0
    %v654 = vpop.f32.mrf.mxu0
    %v655 = vadd.f32 0.0, %v654
    %v656 = vpop.f32.mrf.mxu0
    %657 = vdwg.mxu0
    %v658 = vpack.c.b16 %v102, %v102
    %659 = vrot.lane.b32.xlu0 %v658, 32
    %v660 = vpop.permute.xlu0 %659
    %v662 = vsel %vm159, %v382, 0
    %v665 = vsel %vm290, %v660, 0
    %667 = vmatprep.subr.bf16.mxu0 0
    %668 = vmatpush1.bf16.msra.mxu0 0
    %669 = vmatprep.subr.bf16.mxu0 0
    %670 = vmatpush1.bf16.msra.mxu0 0
    %671 = vmatprep.subr.bf16.mxu0 0
    %672 = vmatpush1.bf16.msra.mxu0 0
    %673 = vmatprep.subr.bf16.mxu0 0
    %674 = vmatpush1.bf16.msra.mxu0 0
    %675 = vmatprep.subr.bf16.mxu0 0
    %676 = vmatpush1.bf16.msra.mxu0 0
    %677 = vmatprep.subr.bf16.mxu0 0
    %678 = vmatpush1.bf16.msra.mxu0 0
    %679 = vmatprep.subr.bf16.mxu0 0
    %680 = vmatpush1.bf16.msra.mxu0 0
    %681 = vmatprep.subr.bf16.mxu0 0
    %682 = vmatpush1.bf16.msra.mxu0 %v665
    %683 = vmatprep.subr.bf16.mxu0 0
    %684 = vmatpush2.bf16.msra.mxu0 0
    %685 = vmatprep.subr.bf16.mxu0 0
    %686 = vmatpush2.bf16.msra.mxu0 0
    %687 = vmatprep.subr.bf16.mxu0 0
    %688 = vmatpush2.bf16.msra.mxu0 0
    %689 = vmatprep.subr.bf16.mxu0 0
    %690 = vmatpush2.bf16.msra.mxu0 0
    %691 = vmatprep.subr.bf16.mxu0 0
    %692 = vmatpush2.bf16.msra.mxu0 0
    %693 = vmatprep.subr.bf16.mxu0 0
    %694 = vmatpush2.bf16.msra.mxu0 0
    %695 = vmatprep.subr.bf16.mxu0 0
    %696 = vmatpush2.bf16.msra.mxu0 0
    %697 = vmatprep.subr.bf16.mxu0 0
    %698 = vmatpush2.bf16.msra.mxu0 0
    %699 = vmatprep.mubr.bf16.mxu0 0
    %700 = vmatmul.mubr.bf16.gmra.mxu0 %v662
    %v701 = vpop.f32.mrf.mxu0
    %v702 = vadd.f32 %v652, %v701
    %v703 = vpop.f32.mrf.mxu0
    %v704 = vpop.f32.mrf.mxu0
    %v705 = vadd.f32 %v655, %v704
    %v706 = vpop.f32.mrf.mxu0
    %707 = vdwg.mxu0
    %708 = vrot.lane.b32.xlu0 %v154, 80
    %v709 = vpop.permute.xlu0 %708
    %710 = vrot.lane.b32.xlu0 %v154, 112
    %v711 = vpop.permute.xlu0 %710
    %v713 = vsel %vm159, %v709, 0
    %v716 = vsel %vm159, %v711, 0
    %718 = vmatprep.subr.bf16.mxu0 0
    %719 = vmatpush1.bf16.xpose.msra.mxu0 0
    %720 = vmatprep.subr.bf16.mxu0 0
    %721 = vmatpush1.bf16.xpose.msra.mxu0 0
    %722 = vmatprep.subr.bf16.mxu0 0
    %723 = vmatpush1.bf16.xpose.msra.mxu0 0
    %724 = vmatprep.subr.bf16.mxu0 0
    %725 = vmatpush1.bf16.xpose.msra.mxu0 0
    %726 = vmatprep.subr.bf16.mxu0 0
    %727 = vmatpush1.bf16.xpose.msra.mxu0 0
    %728 = vmatprep.subr.bf16.mxu0 0
    %729 = vmatpush1.bf16.xpose.msra.mxu0 0
    %730 = vmatprep.subr.bf16.mxu0 0
    %731 = vmatpush1.bf16.xpose.msra.mxu0 0
    %732 = vmatprep.subr.bf16.mxu0 0
    %733 = vmatpush1.bf16.xpose.msra.mxu0 %v716
    %734 = vmatprep.subr.bf16.mxu0 0
    %735 = vmatpush2.bf16.xpose.msra.mxu0 0
    %736 = vmatprep.subr.bf16.mxu0 0
    %737 = vmatpush2.bf16.xpose.msra.mxu0 0
    %738 = vmatprep.subr.bf16.mxu0 0
    %739 = vmatpush2.bf16.xpose.msra.mxu0 0
    %740 = vmatprep.subr.bf16.mxu0 0
    %741 = vmatpush2.bf16.xpose.msra.mxu0 0
    %742 = vmatprep.subr.bf16.mxu0 0
    %743 = vmatpush2.bf16.xpose.msra.mxu0 0
    %744 = vmatprep.subr.bf16.mxu0 0
    %745 = vmatpush2.bf16.xpose.msra.mxu0 0
    %746 = vmatprep.subr.bf16.mxu0 0
    %747 = vmatpush2.bf16.xpose.msra.mxu0 0
    %748 = vmatprep.subr.bf16.mxu0 0
    %749 = vmatpush2.bf16.xpose.msra.mxu0 0
    %750 = vmatprep.mubr.bf16.mxu0 0
    %751 = vmatmul.mubr.bf16.gmra.mxu0 %v713
    %v752 = vpop.f32.mrf.mxu0
    %v753 = vadd.f32 0.0, %v752
    %v754 = vpop.f32.mrf.mxu0
    %v755 = vpop.f32.mrf.mxu0
    %v756 = vpop.f32.mrf.mxu0
    %757 = vdwg.mxu0
    %758 = vrot.lane.b32.xlu0 %v155, 80
    %v759 = vpop.permute.xlu0 %758
    %760 = vrot.lane.b32.xlu0 %v155, 112
    %v761 = vpop.permute.xlu0 %760
    %v763 = vsel %vm159, %v759, 0
    %v766 = vsel %vm159, %v761, 0
    %768 = vmatprep.subr.bf16.mxu0 0
    %769 = vmatpush1.bf16.xpose.msra.mxu0 0
    %770 = vmatprep.subr.bf16.mxu0 0
    %771 = vmatpush1.bf16.xpose.msra.mxu0 0
    %772 = vmatprep.subr.bf16.mxu0 0
    %773 = vmatpush1.bf16.xpose.msra.mxu0 0
    %774 = vmatprep.subr.bf16.mxu0 0
    %775 = vmatpush1.bf16.xpose.msra.mxu0 0
    %776 = vmatprep.subr.bf16.mxu0 0
    %777 = vmatpush1.bf16.xpose.msra.mxu0 0
    %778 = vmatprep.subr.bf16.mxu0 0
    %779 = vmatpush1.bf16.xpose.msra.mxu0 0
    %780 = vmatprep.subr.bf16.mxu0 0
    %781 = vmatpush1.bf16.xpose.msra.mxu0 0
    %782 = vmatprep.subr.bf16.mxu0 0
    %783 = vmatpush1.bf16.xpose.msra.mxu0 %v766
    %784 = vmatprep.subr.bf16.mxu0 0
    %785 = vmatpush2.bf16.xpose.msra.mxu0 0
    %786 = vmatprep.subr.bf16.mxu0 0
    %787 = vmatpush2.bf16.xpose.msra.mxu0 0
    %788 = vmatprep.subr.bf16.mxu0 0
    %789 = vmatpush2.bf16.xpose.msra.mxu0 0
    %790 = vmatprep.subr.bf16.mxu0 0
    %791 = vmatpush2.bf16.xpose.msra.mxu0 0
    %792 = vmatprep.subr.bf16.mxu0 0
    %793 = vmatpush2.bf16.xpose.msra.mxu0 0
    %794 = vmatprep.subr.bf16.mxu0 0
    %795 = vmatpush2.bf16.xpose.msra.mxu0 0
    %796 = vmatprep.subr.bf16.mxu0 0
    %797 = vmatpush2.bf16.xpose.msra.mxu0 0
    %798 = vmatprep.subr.bf16.mxu0 0
    %799 = vmatpush2.bf16.xpose.msra.mxu0 0
    %800 = vmatprep.mubr.bf16.mxu0 0
    %801 = vmatmul.mubr.bf16.gmra.mxu0 %v763
    %v802 = vpop.f32.mrf.mxu0
    %v803 = vadd.f32 0.0, %v802
    %v804 = vpop.f32.mrf.mxu0
    %v805 = vpop.f32.mrf.mxu0
    %v806 = vpop.f32.mrf.mxu0
    %807 = vdwg.mxu0
    %v808 = vmul.f32 %v753, 0.35355338
    %v809 = vmul.f32 %v803, 0.35355338
    %v810 = vsel %vm258, %v808, -1e+30
    %v811 = vsel %vm258, %v809, -1e+30
    %v812 = vsel %vm159, %v810, -inf
    %813 = vmax.xlane.f32.xlu0 %v812
    %v814 = vpop.xlane.xlu0 %813
    %v815 = vsel %vm159, %v811, -inf
    %816 = vmax.xlane.f32.xlu0 %v815
    %v817 = vpop.xlane.xlu0 %816
    %v818 = vsub.f32 %v810, %v814
    %v819 = vsub.f32 %v811, %v817
    %v820 = vmul.f32 %v818, 1.442695
    %v821 = vpow.pop %v820
    %v822 = vmul.f32 %v819, 1.442695
    %v823 = vpow.pop %v822
    %v824 = vsel %vm159, %v821, 0.0
    %825 = vadd.xlane.f32.xlu0 %v824
    %v826 = vpop.xlane.xlu0 %825
    %v827 = vsel %vm159, %v823, 0.0
    %828 = vadd.xlane.f32.xlu0 %v827
    %v829 = vpop.xlane.xlu0 %828
    %v830 = vrcp.pop %v826
    %v831 = vrcp.pop %v829
    %v832 = vmul.f32 %v821, %v830
    %v833 = vmul.f32 %v823, %v831
    %v834 = vpack.c.bf16 %v832, %v832
    %v835 = vpack.c.bf16 %v833, %v833
    %836 = vrot.lane.b32.xlu0 %v154, 48
    %v837 = vpop.permute.xlu0 %836
    %v839 = vsel %vm159, %v834, 0
    %v842 = vsel %vm290, %v837, 0
    %844 = vmatprep.subr.bf16.mxu0 0
    %845 = vmatpush1.bf16.msra.mxu0 0
    %846 = vmatprep.subr.bf16.mxu0 0
    %847 = vmatpush1.bf16.msra.mxu0 0
    %848 = vmatprep.subr.bf16.mxu0 0
    %849 = vmatpush1.bf16.msra.mxu0 0
    %850 = vmatprep.subr.bf16.mxu0 0
    %851 = vmatpush1.bf16.msra.mxu0 0
    %852 = vmatprep.subr.bf16.mxu0 0
    %853 = vmatpush1.bf16.msra.mxu0 0
    %854 = vmatprep.subr.bf16.mxu0 0
    %855 = vmatpush1.bf16.msra.mxu0 0
    %856 = vmatprep.subr.bf16.mxu0 0
    %857 = vmatpush1.bf16.msra.mxu0 0
    %858 = vmatprep.subr.bf16.mxu0 0
    %859 = vmatpush1.bf16.msra.mxu0 %v842
    %860 = vmatprep.subr.bf16.mxu0 0
    %861 = vmatpush2.bf16.msra.mxu0 0
    %862 = vmatprep.subr.bf16.mxu0 0
    %863 = vmatpush2.bf16.msra.mxu0 0
    %864 = vmatprep.subr.bf16.mxu0 0
    %865 = vmatpush2.bf16.msra.mxu0 0
    %866 = vmatprep.subr.bf16.mxu0 0
    %867 = vmatpush2.bf16.msra.mxu0 0
    %868 = vmatprep.subr.bf16.mxu0 0
    %869 = vmatpush2.bf16.msra.mxu0 0
    %870 = vmatprep.subr.bf16.mxu0 0
    %871 = vmatpush2.bf16.msra.mxu0 0
    %872 = vmatprep.subr.bf16.mxu0 0
    %873 = vmatpush2.bf16.msra.mxu0 0
    %874 = vmatprep.subr.bf16.mxu0 0
    %875 = vmatpush2.bf16.msra.mxu0 0
    %876 = vmatprep.mubr.bf16.mxu0 0
    %877 = vmatmul.mubr.bf16.gmra.mxu0 %v839
    %v878 = vpop.f32.mrf.mxu0
    %v879 = vadd.f32 0.0, %v878
    %v880 = vpop.f32.mrf.mxu0
    %v881 = vpop.f32.mrf.mxu0
    %v882 = vpop.f32.mrf.mxu0
    %883 = vdwg.mxu0
    %884 = vrot.lane.b32.xlu0 %v155, 48
    %v885 = vpop.permute.xlu0 %884
    %v887 = vsel %vm159, %v835, 0
    %v890 = vsel %vm290, %v885, 0
    %892 = vmatprep.subr.bf16.mxu0 0
    %893 = vmatpush1.bf16.msra.mxu0 0
    %894 = vmatprep.subr.bf16.mxu0 0
    %895 = vmatpush1.bf16.msra.mxu0 0
    %896 = vmatprep.subr.bf16.mxu0 0
    %897 = vmatpush1.bf16.msra.mxu0 0
    %898 = vmatprep.subr.bf16.mxu0 0
    %899 = vmatpush1.bf16.msra.mxu0 0
    %900 = vmatprep.subr.bf16.mxu0 0
    %901 = vmatpush1.bf16.msra.mxu0 0
    %902 = vmatprep.subr.bf16.mxu0 0
    %903 = vmatpush1.bf16.msra.mxu0 0
    %904 = vmatprep.subr.bf16.mxu0 0
    %905 = vmatpush1.bf16.msra.mxu0 0
    %906 = vmatprep.subr.bf16.mxu0 0
    %907 = vmatpush1.bf16.msra.mxu0 %v890
    %908 = vmatprep.subr.bf16.mxu0 0
    %909 = vmatpush2.bf16.msra.mxu0 0
    %910 = vmatprep.subr.bf16.mxu0 0
    %911 = vmatpush2.bf16.msra.mxu0 0
    %912 = vmatprep.subr.bf16.mxu0 0
    %913 = vmatpush2.bf16.msra.mxu0 0
    %914 = vmatprep.subr.bf16.mxu0 0
    %915 = vmatpush2.bf16.msra.mxu0 0
    %916 = vmatprep.subr.bf16.mxu0 0
    %917 = vmatpush2.bf16.msra.mxu0 0
    %918 = vmatprep.subr.bf16.mxu0 0
    %919 = vmatpush2.bf16.msra.mxu0 0
    %920 = vmatprep.subr.bf16.mxu0 0
    %921 = vmatpush2.bf16.msra.mxu0 0
    %922 = vmatprep.subr.bf16.mxu0 0
    %923 = vmatpush2.bf16.msra.mxu0 0
    %924 = vmatprep.mubr.bf16.mxu0 0
    %925 = vmatmul.mubr.bf16.gmra.mxu0 %v887
    %v926 = vpop.f32.mrf.mxu0
    %v927 = vadd.f32 0.0, %v926
    %v928 = vpop.f32.mrf.mxu0
    %v929 = vpop.f32.mrf.mxu0
    %v930 = vpop.f32.mrf.mxu0
    %931 = vdwg.mxu0
    %v932 = vpack.c.bf16 %v927, %v879
    %v933 = vpack.c.b16 %v104, %v104
    %934 = vrot.lane.b32.xlu0 %v933, 32
    %v935 = vpop.permute.xlu0 %934
    %v937 = vsel %vm159, %v932, 0
    %v940 = vsel %vm290, %v935, 0
    %942 = vmatprep.subr.bf16.mxu0 0
    %943 = vmatpush1.bf16.msra.mxu0 0
    %944 = vmatprep.subr.bf16.mxu0 0
    %945 = vmatpush1.bf16.msra.mxu0 0
    %946 = vmatprep.subr.bf16.mxu0 0
    %947 = vmatpush1.bf16.msra.mxu0 0
    %948 = vmatprep.subr.bf16.mxu0 0
    %949 = vmatpush1.bf16.msra.mxu0 0
    %950 = vmatprep.subr.bf16.mxu0 0
    %951 = vmatpush1.bf16.msra.mxu0 0
    %952 = vmatprep.subr.bf16.mxu0 0
    %953 = vmatpush1.bf16.msra.mxu0 0
    %954 = vmatprep.subr.bf16.mxu0 0
    %955 = vmatpush1.bf16.msra.mxu0 0
    %956 = vmatprep.subr.bf16.mxu0 0
    %957 = vmatpush1.bf16.msra.mxu0 %v940
    %958 = vmatprep.subr.bf16.mxu0 0
    %959 = vmatpush2.bf16.msra.mxu0 0
    %960 = vmatprep.subr.bf16.mxu0 0
    %961 = vmatpush2.bf16.msra.mxu0 0
    %962 = vmatprep.subr.bf16.mxu0 0
    %963 = vmatpush2.bf16.msra.mxu0 0
    %964 = vmatprep.subr.bf16.mxu0 0
    %965 = vmatpush2.bf16.msra.mxu0 0
    %966 = vmatprep.subr.bf16.mxu0 0
    %967 = vmatpush2.bf16.msra.mxu0 0
    %968 = vmatprep.subr.bf16.mxu0 0
    %969 = vmatpush2.bf16.msra.mxu0 0
    %970 = vmatprep.subr.bf16.mxu0 0
    %971 = vmatpush2.bf16.msra.mxu0 0
    %972 = vmatprep.subr.bf16.mxu0 0
    %973 = vmatpush2.bf16.msra.mxu0 0
    %974 = vmatprep.mubr.bf16.mxu0 0
    %975 = vmatmul.mubr.bf16.gmra.mxu0 %v937
    %v976 = vpop.f32.mrf.mxu0
    %v977 = vadd.f32 0.0, %v976
    %v978 = vpop.f32.mrf.mxu0
    %v979 = vpop.f32.mrf.mxu0
    %v980 = vadd.f32 0.0, %v979
    %v981 = vpop.f32.mrf.mxu0
    %982 = vdwg.mxu0
    %v983 = vadd.f32 %v702, %v977
    %v984 = vadd.f32 %v705, %v980
    %985 = vrot.lane.b32.xlu0 %v154, 72
    %v986 = vpop.permute.xlu0 %985
    %987 = vrot.lane.b32.xlu0 %v154, 104
    %v988 = vpop.permute.xlu0 %987
    %v990 = vsel %vm159, %v986, 0
    %v993 = vsel %vm159, %v988, 0
    %995 = vmatprep.subr.bf16.mxu0 0
    %996 = vmatpush1.bf16.xpose.msra.mxu0 0
    %997 = vmatprep.subr.bf16.mxu0 0
    %998 = vmatpush1.bf16.xpose.msra.mxu0 0
    %999 = vmatprep.subr.bf16.mxu0 0
    %1000 = vmatpush1.bf16.xpose.msra.mxu0 0
    %1001 = vmatprep.subr.bf16.mxu0 0
    %1002 = vmatpush1.bf16.xpose.msra.mxu0 0
    %1003 = vmatprep.subr.bf16.mxu0 0
    %1004 = vmatpush1.bf16.xpose.msra.mxu0 0
    %1005 = vmatprep.subr.bf16.mxu0 0
    %1006 = vmatpush1.bf16.xpose.msra.mxu0 0
    %1007 = vmatprep.subr.bf16.mxu0 0
    %1008 = vmatpush1.bf16.xpose.msra.mxu0 0
    %1009 = vmatprep.subr.bf16.mxu0 0
    %1010 = vmatpush1.bf16.xpose.msra.mxu0 %v993
    %1011 = vmatprep.subr.bf16.mxu0 0
    %1012 = vmatpush2.bf16.xpose.msra.mxu0 0
    %1013 = vmatprep.subr.bf16.mxu0 0
    %1014 = vmatpush2.bf16.xpose.msra.mxu0 0
    %1015 = vmatprep.subr.bf16.mxu0 0
    %1016 = vmatpush2.bf16.xpose.msra.mxu0 0
    %1017 = vmatprep.subr.bf16.mxu0 0
    %1018 = vmatpush2.bf16.xpose.msra.mxu0 0
    %1019 = vmatprep.subr.bf16.mxu0 0
    %1020 = vmatpush2.bf16.xpose.msra.mxu0 0
    %1021 = vmatprep.subr.bf16.mxu0 0
    %1022 = vmatpush2.bf16.xpose.msra.mxu0 0
    %1023 = vmatprep.subr.bf16.mxu0 0
    %1024 = vmatpush2.bf16.xpose.msra.mxu0 0
    %1025 = vmatprep.subr.bf16.mxu0 0
    %1026 = vmatpush2.bf16.xpose.msra.mxu0 0
    %1027 = vmatprep.mubr.bf16.mxu0 0
    %1028 = vmatmul.mubr.bf16.gmra.mxu0 %v990
    %v1029 = vpop.f32.mrf.mxu0
    %v1030 = vadd.f32 0.0, %v1029
    %v1031 = vpop.f32.mrf.mxu0
    %v1032 = vpop.f32.mrf.mxu0
    %v1033 = vpop.f32.mrf.mxu0
    %1034 = vdwg.mxu0
    %1035 = vrot.lane.b32.xlu0 %v155, 72
    %v1036 = vpop.permute.xlu0 %1035
    %1037 = vrot.lane.b32.xlu0 %v155, 104
    %v1038 = vpop.permute.xlu0 %1037
    %v1040 = vsel %vm159, %v1036, 0
    %v1043 = vsel %vm159, %v1038, 0
    %1045 = vmatprep.subr.bf16.mxu0 0
    %1046 = vmatpush1.bf16.xpose.msra.mxu0 0
    %1047 = vmatprep.subr.bf16.mxu0 0
    %1048 = vmatpush1.bf16.xpose.msra.mxu0 0
    %1049 = vmatprep.subr.bf16.mxu0 0
    %1050 = vmatpush1.bf16.xpose.msra.mxu0 0
    %1051 = vmatprep.subr.bf16.mxu0 0
    %1052 = vmatpush1.bf16.xpose.msra.mxu0 0
    %1053 = vmatprep.subr.bf16.mxu0 0
    %1054 = vmatpush1.bf16.xpose.msra.mxu0 0
    %1055 = vmatprep.subr.bf16.mxu0 0
    %1056 = vmatpush1.bf16.xpose.msra.mxu0 0
    %1057 = vmatprep.subr.bf16.mxu0 0
    %1058 = vmatpush1.bf16.xpose.msra.mxu0 0
    %1059 = vmatprep.subr.bf16.mxu0 0
    %1060 = vmatpush1.bf16.xpose.msra.mxu0 %v1043
    %1061 = vmatprep.subr.bf16.mxu0 0
    %1062 = vmatpush2.bf16.xpose.msra.mxu0 0
    %1063 = vmatprep.subr.bf16.mxu0 0
    %1064 = vmatpush2.bf16.xpose.msra.mxu0 0
    %1065 = vmatprep.subr.bf16.mxu0 0
    %1066 = vmatpush2.bf16.xpose.msra.mxu0 0
    %1067 = vmatprep.subr.bf16.mxu0 0
    %1068 = vmatpush2.bf16.xpose.msra.mxu0 0
    %1069 = vmatprep.subr.bf16.mxu0 0
    %1070 = vmatpush2.bf16.xpose.msra.mxu0 0
    %1071 = vmatprep.subr.bf16.mxu0 0
    %1072 = vmatpush2.bf16.xpose.msra.mxu0 0
    %1073 = vmatprep.subr.bf16.mxu0 0
    %1074 = vmatpush2.bf16.xpose.msra.mxu0 0
    %1075 = vmatprep.subr.bf16.mxu0 0
    %1076 = vmatpush2.bf16.xpose.msra.mxu0 0
    %1077 = vmatprep.mubr.bf16.mxu0 0
    %1078 = vmatmul.mubr.bf16.gmra.mxu0 %v1040
    %v1079 = vpop.f32.mrf.mxu0
    %v1080 = vadd.f32 0.0, %v1079
    %v1081 = vpop.f32.mrf.mxu0
    %v1082 = vpop.f32.mrf.mxu0
    %v1083 = vpop.f32.mrf.mxu0
    %1084 = vdwg.mxu0
    %v1085 = vmul.f32 %v1030, 0.35355338
    %v1086 = vmul.f32 %v1080, 0.35355338
    %v1087 = vsel %vm258, %v1085, -1e+30
    %v1088 = vsel %vm258, %v1086, -1e+30
    %v1089 = vsel %vm159, %v1087, -inf
    %1090 = vmax.xlane.f32.xlu0 %v1089
    %v1091 = vpop.xlane.xlu0 %1090
    %v1092 = vsel %vm159, %v1088, -inf
    %1093 = vmax.xlane.f32.xlu0 %v1092
    %v1094 = vpop.xlane.xlu0 %1093
    %v1095 = vsub.f32 %v1087, %v1091
    %v1096 = vsub.f32 %v1088, %v1094
    %v1097 = vmul.f32 %v1095, 1.442695
    %v1098 = vpow.pop %v1097
    %v1099 = vmul.f32 %v1096, 1.442695
    %v1100 = vpow.pop %v1099
    %v1101 = vsel %vm159, %v1098, 0.0
    %1102 = vadd.xlane.f32.xlu0 %v1101
    %v1103 = vpop.xlane.xlu0 %1102
    %v1104 = vsel %vm159, %v1100, 0.0
    %1105 = vadd.xlane.f32.xlu0 %v1104
    %v1106 = vpop.xlane.xlu0 %1105
    %v1107 = vrcp.pop %v1103
    %v1108 = vrcp.pop %v1106
    %v1109 = vmul.f32 %v1098, %v1107
    %v1110 = vmul.f32 %v1100, %v1108
    %v1111 = vpack.c.bf16 %v1109, %v1109
    %v1112 = vpack.c.bf16 %v1110, %v1110
    %1113 = vrot.lane.b32.xlu0 %v154, 40
    %v1114 = vpop.permute.xlu0 %1113
    %v1116 = vsel %vm159, %v1111, 0
    %v1119 = vsel %vm290, %v1114, 0
    %1121 = vmatprep.subr.bf16.mxu0 0
    %1122 = vmatpush1.bf16.msra.mxu0 0
    %1123 = vmatprep.subr.bf16.mxu0 0
    %1124 = vmatpush1.bf16.msra.mxu0 0
    %1125 = vmatprep.subr.bf16.mxu0 0
    %1126 = vmatpush1.bf16.msra.mxu0 0
    %1127 = vmatprep.subr.bf16.mxu0 0
    %1128 = vmatpush1.bf16.msra.mxu0 0
    %1129 = vmatprep.subr.bf16.mxu0 0
    %1130 = vmatpush1.bf16.msra.mxu0 0
    %1131 = vmatprep.subr.bf16.mxu0 0
    %1132 = vmatpush1.bf16.msra.mxu0 0
    %1133 = vmatprep.subr.bf16.mxu0 0
    %1134 = vmatpush1.bf16.msra.mxu0 0
    %1135 = vmatprep.subr.bf16.mxu0 0
    %1136 = vmatpush1.bf16.msra.mxu0 %v1119
    %1137 = vmatprep.subr.bf16.mxu0 0
    %1138 = vmatpush2.bf16.msra.mxu0 0
    %1139 = vmatprep.subr.bf16.mxu0 0
    %1140 = vmatpush2.bf16.msra.mxu0 0
    %1141 = vmatprep.subr.bf16.mxu0 0
    %1142 = vmatpush2.bf16.msra.mxu0 0
    %1143 = vmatprep.subr.bf16.mxu0 0
    %1144 = vmatpush2.bf16.msra.mxu0 0
    %1145 = vmatprep.subr.bf16.mxu0 0
    %1146 = vmatpush2.bf16.msra.mxu0 0
    %1147 = vmatprep.subr.bf16.mxu0 0
    %1148 = vmatpush2.bf16.msra.mxu0 0
    %1149 = vmatprep.subr.bf16.mxu0 0
    %1150 = vmatpush2.bf16.msra.mxu0 0
    %1151 = vmatprep.subr.bf16.mxu0 0
    %1152 = vmatpush2.bf16.msra.mxu0 0
    %1153 = vmatprep.mubr.bf16.mxu0 0
    %1154 = vmatmul.mubr.bf16.gmra.mxu0 %v1116
    %v1155 = vpop.f32.mrf.mxu0
    %v1156 = vadd.f32 0.0, %v1155
    %v1157 = vpop.f32.mrf.mxu0
    %v1158 = vpop.f32.mrf.mxu0
    %v1159 = vpop.f32.mrf.mxu0
    %1160 = vdwg.mxu0
    %1161 = vrot.lane.b32.xlu0 %v155, 40
    %v1162 = vpop.permute.xlu0 %1161
    %v1164 = vsel %vm159, %v1112, 0
    %v1167 = vsel %vm290, %v1162, 0
    %1169 = vmatprep.subr.bf16.mxu0 0
    %1170 = vmatpush1.bf16.msra.mxu0 0
    %1171 = vmatprep.subr.bf16.mxu0 0
    %1172 = vmatpush1.bf16.msra.mxu0 0
    %1173 = vmatprep.subr.bf16.mxu0 0
    %1174 = vmatpush1.bf16.msra.mxu0 0
    %1175 = vmatprep.subr.bf16.mxu0 0
    %1176 = vmatpush1.bf16.msra.mxu0 0
    %1177 = vmatprep.subr.bf16.mxu0 0
    %1178 = vmatpush1.bf16.msra.mxu0 0
    %1179 = vmatprep.subr.bf16.mxu0 0
    %1180 = vmatpush1.bf16.msra.mxu0 0
    %1181 = vmatprep.subr.bf16.mxu0 0
    %1182 = vmatpush1.bf16.msra.mxu0 0
    %1183 = vmatprep.subr.bf16.mxu0 0
    %1184 = vmatpush1.bf16.msra.mxu0 %v1167
    %1185 = vmatprep.subr.bf16.mxu0 0
    %1186 = vmatpush2.bf16.msra.mxu0 0
    %1187 = vmatprep.subr.bf16.mxu0 0
    %1188 = vmatpush2.bf16.msra.mxu0 0
    %1189 = vmatprep.subr.bf16.mxu0 0
    %1190 = vmatpush2.bf16.msra.mxu0 0
    %1191 = vmatprep.subr.bf16.mxu0 0
    %1192 = vmatpush2.bf16.msra.mxu0 0
    %1193 = vmatprep.subr.bf16.mxu0 0
    %1194 = vmatpush2.bf16.msra.mxu0 0
    %1195 = vmatprep.subr.bf16.mxu0 0
    %1196 = vmatpush2.bf16.msra.mxu0 0
    %1197 = vmatprep.subr.bf16.mxu0 0
    %1198 = vmatpush2.bf16.msra.mxu0 0
    %1199 = vmatprep.subr.bf16.mxu0 0
    %1200 = vmatpush2.bf16.msra.mxu0 0
    %1201 = vmatprep.mubr.bf16.mxu0 0
    %1202 = vmatmul.mubr.bf16.gmra.mxu0 %v1164
    %v1203 = vpop.f32.mrf.mxu0
    %v1204 = vadd.f32 0.0, %v1203
    %v1205 = vpop.f32.mrf.mxu0
    %v1206 = vpop.f32.mrf.mxu0
    %v1207 = vpop.f32.mrf.mxu0
    %1208 = vdwg.mxu0
    %v1209 = vpack.c.bf16 %v1204, %v1156
    %v1210 = vpack.c.b16 %v105, %v105
    %1211 = vrot.lane.b32.xlu0 %v1210, 32
    %v1212 = vpop.permute.xlu0 %1211
    %v1214 = vsel %vm159, %v1209, 0
    %v1217 = vsel %vm290, %v1212, 0
    %1219 = vmatprep.subr.bf16.mxu0 0
    %1220 = vmatpush1.bf16.msra.mxu0 0
    %1221 = vmatprep.subr.bf16.mxu0 0
    %1222 = vmatpush1.bf16.msra.mxu0 0
    %1223 = vmatprep.subr.bf16.mxu0 0
    %1224 = vmatpush1.bf16.msra.mxu0 0
    %1225 = vmatprep.subr.bf16.mxu0 0
    %1226 = vmatpush1.bf16.msra.mxu0 0
    %1227 = vmatprep.subr.bf16.mxu0 0
    %1228 = vmatpush1.bf16.msra.mxu0 0
    %1229 = vmatprep.subr.bf16.mxu0 0
    %1230 = vmatpush1.bf16.msra.mxu0 0
    %1231 = vmatprep.subr.bf16.mxu0 0
    %1232 = vmatpush1.bf16.msra.mxu0 0
    %1233 = vmatprep.subr.bf16.mxu0 0
    %1234 = vmatpush1.bf16.msra.mxu0 %v1217
    %1235 = vmatprep.subr.bf16.mxu0 0
    %1236 = vmatpush2.bf16.msra.mxu0 0
    %1237 = vmatprep.subr.bf16.mxu0 0
    %1238 = vmatpush2.bf16.msra.mxu0 0
    %1239 = vmatprep.subr.bf16.mxu0 0
    %1240 = vmatpush2.bf16.msra.mxu0 0
    %1241 = vmatprep.subr.bf16.mxu0 0
    %1242 = vmatpush2.bf16.msra.mxu0 0
    %1243 = vmatprep.subr.bf16.mxu0 0
    %1244 = vmatpush2.bf16.msra.mxu0 0
    %1245 = vmatprep.subr.bf16.mxu0 0
    %1246 = vmatpush2.bf16.msra.mxu0 0
    %1247 = vmatprep.subr.bf16.mxu0 0
    %1248 = vmatpush2.bf16.msra.mxu0 0
    %1249 = vmatprep.subr.bf16.mxu0 0
    %1250 = vmatpush2.bf16.msra.mxu0 0
    %1251 = vmatprep.mubr.bf16.mxu0 0
    %1252 = vmatmul.mubr.bf16.gmra.mxu0 %v1214
    %v1253 = vpop.f32.mrf.mxu0
    %v1254 = vadd.f32 0.0, %v1253
    %v1255 = vpop.f32.mrf.mxu0
    %v1256 = vpop.f32.mrf.mxu0
    %v1257 = vadd.f32 0.0, %v1256
    %v1258 = vpop.f32.mrf.mxu0
    %1259 = vdwg.mxu0
    %v1260 = vadd.f32 %v983, %v1254
    %v1261 = vadd.f32 %v984, %v1257
    %v1262 = vadd.f32 %v25, %v1260
    %v1263 = vadd.f32 %v26, %v1261
    %v1264 = vlaneseq
    %v1265 = vshrl.u32 %v1264, 7
    %v1266 = vsub.s32 5, %v1265
    %v1267 = vrot.slane %v52, %v1266
    %v1268 = vadd.f32 %v1262, %v1267
    %v1269 = vadd.f32 %v1263, %v1267
    %v1270 = vsel %vm53, %v1268, 0.0
    %1271 = vadd.xlane.f32.xlu0 %v1270
    %v1272 = vpop.xlane.xlu0 %1271
    %v1273 = vsel %vm53, %v1269, 0.0
    %1274 = vadd.xlane.f32.xlu0 %v1273
    %v1275 = vpop.xlane.xlu0 %1274
    %v1276 = vmul.f32 %v1272, %v60
    %v1277 = vmul.f32 %v1275, %v60
    %v1278 = vsub.f32 %v1268, %v1276
    %v1279 = vsub.f32 %v1269, %v1277
    %v1280 = vmul.f32 %v1278, %v1278
    %v1281 = vmul.f32 %v1279, %v1279
    %v1282 = vsel %vm53, %v1280, 0.0
    %1283 = vadd.xlane.f32.xlu0 %v1282
    %v1284 = vpop.xlane.xlu0 %1283
    %v1285 = vsel %vm53, %v1281, 0.0
    %1286 = vadd.xlane.f32.xlu0 %v1285
    %v1287 = vpop.xlane.xlu0 %1286
    %v1288 = vmul.f32 %v1284, %v60
    %v1289 = vmul.f32 %v1287, %v60
    %v1290 = vadd.f32 %v1288, 1e-05
    %v1291 = vadd.f32 %v1289, 1e-05
    %v1292 = vrsqrt.pop %v1290
    %v1293 = vrsqrt.pop %v1291
    %v1294 = vmul.f32 %v1278, %v1292
    %v1295 = vmul.f32 %v1279, %v1293
    %v1296 = vlaneseq
    %v1297 = vshrl.u32 %v1296, 7
    %v1298 = vsub.s32 2, %v1297
    %v1299 = vrot.slane %v52, %v1298
    %v1300 = vmul.f32 %v1294, %v1299
    %v1301 = vmul.f32 %v1295, %v1299
    %v1302 = vlaneseq
    %v1303 = vshrl.u32 %v1302, 7
    %v1304 = vsub.s32 3, %v1303
    %v1305 = vrot.slane %v52, %v1304
    %v1306 = vadd.f32 %v1300, %v1305
    %v1307 = vadd.f32 %v1301, %v1305
    %v1308 = vpack.c.bf16 %v1307, %v1306
    %v1309 = vlaneseq
    %v1310 = vshrl.u32 %v1309, 7
    %v1311 = vsub.s32 6, %v1310
    %v1312 = vrot.slane %v52, %v1311
    %v1313 = vunpack.c.h.b16 %v32
    %v1314 = vunpack.c.h.b16 %v33
    %v1315 = vunpack.c.h.b16 %v34
    %v1316 = vunpack.c.h.b16 %v35
    %v1317 = vpack.c.b16 %v1314, %v1313
    %v1318 = vpack.c.b16 %v1316, %v1315
    %v1322 = vsel %vm53, %v1308, 0
    %1324 = vmatprep.subr.bf16.mxu0 0
    %1325 = vmatpush1.bf16.msra.mxu0 0
    %1326 = vmatprep.subr.bf16.mxu0 0
    %1327 = vmatpush1.bf16.msra.mxu0 0
    %1328 = vmatprep.subr.bf16.mxu0 0
    %1329 = vmatpush1.bf16.msra.mxu0 0
    %1330 = vmatprep.subr.bf16.mxu0 0
    %1331 = vmatpush1.bf16.msra.mxu0 0
    %1332 = vmatprep.subr.bf16.mxu0 0
    %1333 = vmatpush1.bf16.msra.mxu0 0
    %1334 = vmatprep.subr.bf16.mxu0 0
    %1335 = vmatpush1.bf16.msra.mxu0 0
    %1336 = vmatprep.subr.bf16.mxu0 0
    %1337 = vmatpush1.bf16.msra.mxu0 %v1318
    %1338 = vmatprep.subr.bf16.mxu0 0
    %1339 = vmatpush1.bf16.msra.mxu0 %v1317
    %1340 = vmatprep.subr.bf16.mxu0 0
    %1341 = vmatpush2.bf16.msra.mxu0 0
    %1342 = vmatprep.subr.bf16.mxu0 0
    %1343 = vmatpush2.bf16.msra.mxu0 0
    %1344 = vmatprep.subr.bf16.mxu0 0
    %1345 = vmatpush2.bf16.msra.mxu0 0
    %1346 = vmatprep.subr.bf16.mxu0 0
    %1347 = vmatpush2.bf16.msra.mxu0 0
    %1348 = vmatprep.subr.bf16.mxu0 0
    %1349 = vmatpush2.bf16.msra.mxu0 0
    %1350 = vmatprep.subr.bf16.mxu0 0
    %1351 = vmatpush2.bf16.msra.mxu0 0
    %1352 = vmatprep.subr.bf16.mxu0 0
    %1353 = vmatpush2.bf16.msra.mxu0 0
    %1354 = vmatprep.subr.bf16.mxu0 0
    %1355 = vmatpush2.bf16.msra.mxu0 0
    %1356 = vmatprep.mubr.bf16.mxu0 0
    %1357 = vmatmul.mubr.bf16.gmra.mxu0 %v1322
    %v1358 = vpop.f32.mrf.mxu0
    %v1359 = vadd.f32 %v1312, %v1358
    %v1360 = vpop.f32.mrf.mxu0
    %v1361 = vpop.f32.mrf.mxu0
    %v1362 = vadd.f32 %v1312, %v1361
    %v1363 = vpop.f32.mrf.mxu0
    %1364 = vdwg.mxu0
    %v1365 = vmax.f32 %v1359, 0.0
    %v1366 = vmax.f32 %v1362, 0.0
    %v1367 = vpack.c.bf16 %v1366, %v1365
    %v1368 = vlaneseq
    %v1369 = vshrl.u32 %v1368, 7
    %v1370 = vsub.s32 7, %v1369
    %v1371 = vrot.slane %v52, %v1370
    %v1388 = vunpack.c.l.b16 %v36
    %v1389 = vunpack.c.l.b16 %v37
    %v1390 = vunpack.c.l.b16 %v38
    %v1391 = vunpack.c.l.b16 %v39
    %v1392 = vunpack.c.l.b16 %v40
    %v1393 = vunpack.c.l.b16 %v41
    %v1394 = vunpack.c.l.b16 %v42
    %v1395 = vunpack.c.l.b16 %v43
    %v1396 = vunpack.c.l.b16 %v44
    %v1397 = vunpack.c.l.b16 %v45
    %v1398 = vunpack.c.l.b16 %v46
    %v1399 = vunpack.c.l.b16 %v47
    %v1400 = vunpack.c.l.b16 %v48
    %v1401 = vunpack.c.l.b16 %v49
    %v1402 = vunpack.c.l.b16 %v50
    %v1403 = vunpack.c.l.b16 %v51
    %v1404 = vpack.c.b16 %v1389, %v1388
    %v1405 = vpack.c.b16 %v1391, %v1390
    %v1406 = vpack.c.b16 %v1393, %v1392
    %v1407 = vpack.c.b16 %v1395, %v1394
    %v1408 = vpack.c.b16 %v1397, %v1396
    %v1409 = vpack.c.b16 %v1399, %v1398
    %v1410 = vpack.c.b16 %v1401, %v1400
    %v1411 = vpack.c.b16 %v1403, %v1402
    %1420 = vmatprep.subr.bf16.mxu0 0
    %1421 = vmatpush1.bf16.msra.mxu0 %v1411
    %1422 = vmatprep.subr.bf16.mxu0 0
    %1423 = vmatpush1.bf16.msra.mxu0 %v1410
    %1424 = vmatprep.subr.bf16.mxu0 0
    %1425 = vmatpush1.bf16.msra.mxu0 %v1409
    %1426 = vmatprep.subr.bf16.mxu0 0
    %1427 = vmatpush1.bf16.msra.mxu0 %v1408
    %1428 = vmatprep.subr.bf16.mxu0 0
    %1429 = vmatpush1.bf16.msra.mxu0 %v1407
    %1430 = vmatprep.subr.bf16.mxu0 0
    %1431 = vmatpush1.bf16.msra.mxu0 %v1406
    %1432 = vmatprep.subr.bf16.mxu0 0
    %1433 = vmatpush1.bf16.msra.mxu0 %v1405
    %1434 = vmatprep.subr.bf16.mxu0 0
    %1435 = vmatpush1.bf16.msra.mxu0 %v1404
    %1436 = vmatprep.subr.bf16.mxu0 0
    %1437 = vmatpush2.bf16.msra.mxu0 0
    %1438 = vmatprep.subr.bf16.mxu0 0
    %1439 = vmatpush2.bf16.msra.mxu0 0
    %1440 = vmatprep.subr.bf16.mxu0 0
    %1441 = vmatpush2.bf16.msra.mxu0 0
    %1442 = vmatprep.subr.bf16.mxu0 0
    %1443 = vmatpush2.bf16.msra.mxu0 0
    %1444 = vmatprep.subr.bf16.mxu0 0
    %1445 = vmatpush2.bf16.msra.mxu0 0
    %1446 = vmatprep.subr.bf16.mxu0 0
    %1447 = vmatpush2.bf16.msra.mxu0 0
    %1448 = vmatprep.subr.bf16.mxu0 0
    %1449 = vmatpush2.bf16.msra.mxu0 0
    %1450 = vmatprep.subr.bf16.mxu0 0
    %1451 = vmatpush2.bf16.msra.mxu0 0
    %1452 = vmatprep.mubr.bf16.mxu0 0
    %1453 = vmatmul.mubr.bf16.gmra.mxu0 %v1367
    %v1454 = vpop.f32.mrf.mxu0
    %v1455 = vadd.f32 %v1371, %v1454
    %v1456 = vpop.f32.mrf.mxu0
    %v1457 = vpop.f32.mrf.mxu0
    %v1458 = vadd.f32 %v1371, %v1457
    %v1459 = vpop.f32.mrf.mxu0
    %1460 = vdwg.mxu0
    %v1461 = vadd.f32 %v1268, %v1455
    %v1462 = vadd.f32 %v1269, %v1458
    %s1463 = scalar_lea.vmem %s1, 32
    %v1464 = vld [vmem:[%s1463] sm:$0xff]
    %v1465 = vld [vmem:[%s1463 + $0x8] sm:$0xff]
    %v1466 = vld [vmem:[%s1463 + $0x10] sm:$0xff]
    %v1467 = vld [vmem:[%s1463 + $0x18] sm:$0xff]
    %s1468 = scalar_lea.vmem %s2, 64
    %v1469 = vld [vmem:[%s1468] sm:$0xf]
    %v1470 = vld [vmem:[%s1468 + $0x4] sm:$0xf]
    %v1471 = vld [vmem:[%s1468 + $0x8] sm:$0xf]
    %v1472 = vld [vmem:[%s1468 + $0xc] sm:$0xf]
    %v1473 = vld [vmem:[%s1468 + $0x10] sm:$0xf]
    %v1474 = vld [vmem:[%s1468 + $0x14] sm:$0xf]
    %v1475 = vld [vmem:[%s1468 + $0x18] sm:$0xf]
    %v1476 = vld [vmem:[%s1468 + $0x1c] sm:$0xf]
    %v1477 = vld [vmem:[%s1468 + $0x20] sm:$0xf]
    %v1478 = vld [vmem:[%s1468 + $0x24] sm:$0xf]
    %v1479 = vld [vmem:[%s1468 + $0x28] sm:$0xf]
    %v1480 = vld [vmem:[%s1468 + $0x2c] sm:$0xf]
    %v1481 = vld [vmem:[%s1468 + $0x30] sm:$0xf]
    %v1482 = vld [vmem:[%s1468 + $0x34] sm:$0xf]
    %v1483 = vld [vmem:[%s1468 + $0x38] sm:$0xf]
    %v1484 = vld [vmem:[%s1468 + $0x3c] sm:$0xf]
    %s1485 = scalar_lea.vmem %s3, 8
    %v1486 = vld [vmem:[%s1485] sm:$0xff]
    %v1487 = vsel %vm53, %v1461, 0.0
    %1488 = vadd.xlane.f32.xlu0 %v1487
    %v1489 = vpop.xlane.xlu0 %1488
    %v1490 = vsel %vm53, %v1462, 0.0
    %1491 = vadd.xlane.f32.xlu0 %v1490
    %v1492 = vpop.xlane.xlu0 %1491
    %v1493 = vmul.f32 %v1489, %v60
    %v1494 = vmul.f32 %v1492, %v60
    %v1495 = vsub.f32 %v1461, %v1493
    %v1496 = vsub.f32 %v1462, %v1494
    %v1497 = vmul.f32 %v1495, %v1495
    %v1498 = vmul.f32 %v1496, %v1496
    %v1499 = vsel %vm53, %v1497, 0.0
    %1500 = vadd.xlane.f32.xlu0 %v1499
    %v1501 = vpop.xlane.xlu0 %1500
    %v1502 = vsel %vm53, %v1498, 0.0
    %1503 = vadd.xlane.f32.xlu0 %v1502
    %v1504 = vpop.xlane.xlu0 %1503
    %v1505 = vmul.f32 %v1501, %v60
    %v1506 = vmul.f32 %v1504, %v60
    %v1507 = vadd.f32 %v1505, 1e-05
    %v1508 = vadd.f32 %v1506, 1e-05
    %v1509 = vrsqrt.pop %v1507
    %v1510 = vrsqrt.pop %v1508
    %v1511 = vmul.f32 %v1495, %v1509
    %v1512 = vmul.f32 %v1496, %v1510
    %v1513 = vlaneseq
    %v1514 = vshrl.u32 %v1513, 7
    %v1515 = vsub.s32 0, %v1514
    %v1516 = vrot.slane %v1486, %v1515
    %v1517 = vmul.f32 %v1511, %v1516
    %v1518 = vmul.f32 %v1512, %v1516
    %v1519 = vlaneseq
    %v1520 = vshrl.u32 %v1519, 7
    %v1521 = vsub.s32 1, %v1520
    %v1522 = vrot.slane %v1486, %v1521
    %v1523 = vadd.f32 %v1517, %v1522
    %v1524 = vadd.f32 %v1518, %v1522
    %v1525 = vpack.c.bf16 %v1524, %v1523
    %v1526 = vlaneseq
    %v1527 = vshrl.u32 %v1526, 7
    %v1528 = vsub.s32 4, %v1527
    %v1529 = vrot.slane %v1486, %v1528
    %v1534 = vunpack.c.l.b16 %v1464
    %v1535 = vunpack.c.l.b16 %v1465
    %v1536 = vunpack.c.l.b16 %v1466
    %v1537 = vunpack.c.l.b16 %v1467
    %v1538 = vpack.c.b16 %v1535, %v1534
    %v1539 = vpack.c.b16 %v1537, %v1536
    %v1543 = vsel %vm53, %v1525, 0
    %1545 = vmatprep.subr.bf16.mxu0 0
    %1546 = vmatpush1.bf16.msra.mxu0 0
    %1547 = vmatprep.subr.bf16.mxu0 0
    %1548 = vmatpush1.bf16.msra.mxu0 0
    %1549 = vmatprep.subr.bf16.mxu0 0
    %1550 = vmatpush1.bf16.msra.mxu0 0
    %1551 = vmatprep.subr.bf16.mxu0 0
    %1552 = vmatpush1.bf16.msra.mxu0 0
    %1553 = vmatprep.subr.bf16.mxu0 0
    %1554 = vmatpush1.bf16.msra.mxu0 0
    %1555 = vmatprep.subr.bf16.mxu0 0
    %1556 = vmatpush1.bf16.msra.mxu0 0
    %1557 = vmatprep.subr.bf16.mxu0 0
    %1558 = vmatpush1.bf16.msra.mxu0 %v1539
    %1559 = vmatprep.subr.bf16.mxu0 0
    %1560 = vmatpush1.bf16.msra.mxu0 %v1538
    %1561 = vmatprep.subr.bf16.mxu0 0
    %1562 = vmatpush2.bf16.msra.mxu0 0
    %1563 = vmatprep.subr.bf16.mxu0 0
    %1564 = vmatpush2.bf16.msra.mxu0 0
    %1565 = vmatprep.subr.bf16.mxu0 0
    %1566 = vmatpush2.bf16.msra.mxu0 0
    %1567 = vmatprep.subr.bf16.mxu0 0
    %1568 = vmatpush2.bf16.msra.mxu0 0
    %1569 = vmatprep.subr.bf16.mxu0 0
    %1570 = vmatpush2.bf16.msra.mxu0 0
    %1571 = vmatprep.subr.bf16.mxu0 0
    %1572 = vmatpush2.bf16.msra.mxu0 0
    %1573 = vmatprep.subr.bf16.mxu0 0
    %1574 = vmatpush2.bf16.msra.mxu0 0
    %1575 = vmatprep.subr.bf16.mxu0 0
    %1576 = vmatpush2.bf16.msra.mxu0 0
    %1577 = vmatprep.mubr.bf16.mxu0 0
    %1578 = vmatmul.mubr.bf16.gmra.mxu0 %v1543
    %v1579 = vpop.f32.mrf.mxu0
    %v1580 = vadd.f32 %v1529, %v1579
    %v1581 = vpop.f32.mrf.mxu0
    %v1582 = vpop.f32.mrf.mxu0
    %v1583 = vadd.f32 %v1529, %v1582
    %v1584 = vpop.f32.mrf.mxu0
    %1585 = vdwg.mxu0
    %v1586 = vpack.c.bf16 %v1580, %v1580
    %v1587 = vpack.c.bf16 %v1583, %v1583
    %1589 = vrot.lane.b32.xlu0 %v1586, 96
    %v1590 = vpop.permute.xlu0 %1589
    %v1592 = vsel %vm159, %v1590, 0
    %v1595 = vsel %vm159, %v1586, 0
    %1597 = vmatprep.subr.bf16.mxu0 0
    %1598 = vmatpush1.bf16.xpose.msra.mxu0 0
    %1599 = vmatprep.subr.bf16.mxu0 0
    %1600 = vmatpush1.bf16.xpose.msra.mxu0 0
    %1601 = vmatprep.subr.bf16.mxu0 0
    %1602 = vmatpush1.bf16.xpose.msra.mxu0 0
    %1603 = vmatprep.subr.bf16.mxu0 0
    %1604 = vmatpush1.bf16.xpose.msra.mxu0 0
    %1605 = vmatprep.subr.bf16.mxu0 0
    %1606 = vmatpush1.bf16.xpose.msra.mxu0 0
    %1607 = vmatprep.subr.bf16.mxu0 0
    %1608 = vmatpush1.bf16.xpose.msra.mxu0 0
    %1609 = vmatprep.subr.bf16.mxu0 0
    %1610 = vmatpush1.bf16.xpose.msra.mxu0 0
    %1611 = vmatprep.subr.bf16.mxu0 0
    %1612 = vmatpush1.bf16.xpose.msra.mxu0 %v1595
    %1613 = vmatprep.subr.bf16.mxu0 0
    %1614 = vmatpush2.bf16.xpose.msra.mxu0 0
    %1615 = vmatprep.subr.bf16.mxu0 0
    %1616 = vmatpush2.bf16.xpose.msra.mxu0 0
    %1617 = vmatprep.subr.bf16.mxu0 0
    %1618 = vmatpush2.bf16.xpose.msra.mxu0 0
    %1619 = vmatprep.subr.bf16.mxu0 0
    %1620 = vmatpush2.bf16.xpose.msra.mxu0 0
    %1621 = vmatprep.subr.bf16.mxu0 0
    %1622 = vmatpush2.bf16.xpose.msra.mxu0 0
    %1623 = vmatprep.subr.bf16.mxu0 0
    %1624 = vmatpush2.bf16.xpose.msra.mxu0 0
    %1625 = vmatprep.subr.bf16.mxu0 0
    %1626 = vmatpush2.bf16.xpose.msra.mxu0 0
    %1627 = vmatprep.subr.bf16.mxu0 0
    %1628 = vmatpush2.bf16.xpose.msra.mxu0 0
    %1629 = vmatprep.mubr.bf16.mxu0 0
    %1630 = vmatmul.mubr.bf16.gmra.mxu0 %v1592
    %v1631 = vpop.f32.mrf.mxu0
    %v1632 = vadd.f32 0.0, %v1631
    %v1633 = vpop.f32.mrf.mxu0
    %v1634 = vpop.f32.mrf.mxu0
    %v1635 = vpop.f32.mrf.mxu0
    %1636 = vdwg.mxu0
    %1638 = vrot.lane.b32.xlu0 %v1587, 96
    %v1639 = vpop.permute.xlu0 %1638
    %v1641 = vsel %vm159, %v1639, 0
    %v1644 = vsel %vm159, %v1587, 0
    %1646 = vmatprep.subr.bf16.mxu0 0
    %1647 = vmatpush1.bf16.xpose.msra.mxu0 0
    %1648 = vmatprep.subr.bf16.mxu0 0
    %1649 = vmatpush1.bf16.xpose.msra.mxu0 0
    %1650 = vmatprep.subr.bf16.mxu0 0
    %1651 = vmatpush1.bf16.xpose.msra.mxu0 0
    %1652 = vmatprep.subr.bf16.mxu0 0
    %1653 = vmatpush1.bf16.xpose.msra.mxu0 0
    %1654 = vmatprep.subr.bf16.mxu0 0
    %1655 = vmatpush1.bf16.xpose.msra.mxu0 0
    %1656 = vmatprep.subr.bf16.mxu0 0
    %1657 = vmatpush1.bf16.xpose.msra.mxu0 0
    %1658 = vmatprep.subr.bf16.mxu0 0
    %1659 = vmatpush1.bf16.xpose.msra.mxu0 0
    %1660 = vmatprep.subr.bf16.mxu0 0
    %1661 = vmatpush1.bf16.xpose.msra.mxu0 %v1644
    %1662 = vmatprep.subr.bf16.mxu0 0
    %1663 = vmatpush2.bf16.xpose.msra.mxu0 0
    %1664 = vmatprep.subr.bf16.mxu0 0
    %1665 = vmatpush2.bf16.xpose.msra.mxu0 0
    %1666 = vmatprep.subr.bf16.mxu0 0
    %1667 = vmatpush2.bf16.xpose.msra.mxu0 0
    %1668 = vmatprep.subr.bf16.mxu0 0
    %1669 = vmatpush2.bf16.xpose.msra.mxu0 0
    %1670 = vmatprep.subr.bf16.mxu0 0
    %1671 = vmatpush2.bf16.xpose.msra.mxu0 0
    %1672 = vmatprep.subr.bf16.mxu0 0
    %1673 = vmatpush2.bf16.xpose.msra.mxu0 0
    %1674 = vmatprep.subr.bf16.mxu0 0
    %1675 = vmatpush2.bf16.xpose.msra.mxu0 0
    %1676 = vmatprep.subr.bf16.mxu0 0
    %1677 = vmatpush2.bf16.xpose.msra.mxu0 0
    %1678 = vmatprep.mubr.bf16.mxu0 0
    %1679 = vmatmul.mubr.bf16.gmra.mxu0 %v1641
    %v1680 = vpop.f32.mrf.mxu0
    %v1681 = vadd.f32 0.0, %v1680
    %v1682 = vpop.f32.mrf.mxu0
    %v1683 = vpop.f32.mrf.mxu0
    %v1684 = vpop.f32.mrf.mxu0
    %1685 = vdwg.mxu0
    %v1686 = vmul.f32 %v1632, 0.35355338
    %v1687 = vmul.f32 %v1681, 0.35355338
    %v1688 = vsel %vm258, %v1686, -1e+30
    %v1689 = vsel %vm258, %v1687, -1e+30
    %v1690 = vsel %vm159, %v1688, -inf
    %1691 = vmax.xlane.f32.xlu0 %v1690
    %v1692 = vpop.xlane.xlu0 %1691
    %v1693 = vsel %vm159, %v1689, -inf
    %1694 = vmax.xlane.f32.xlu0 %v1693
    %v1695 = vpop.xlane.xlu0 %1694
    %v1696 = vsub.f32 %v1688, %v1692
    %v1697 = vsub.f32 %v1689, %v1695
    %v1698 = vmul.f32 %v1696, 1.442695
    %v1699 = vpow.pop %v1698
    %v1700 = vmul.f32 %v1697, 1.442695
    %v1701 = vpow.pop %v1700
    %v1702 = vsel %vm159, %v1699, 0.0
    %1703 = vadd.xlane.f32.xlu0 %v1702
    %v1704 = vpop.xlane.xlu0 %1703
    %v1705 = vsel %vm159, %v1701, 0.0
    %1706 = vadd.xlane.f32.xlu0 %v1705
    %v1707 = vpop.xlane.xlu0 %1706
    %v1708 = vrcp.pop %v1704
    %v1709 = vrcp.pop %v1707
    %v1710 = vmul.f32 %v1699, %v1708
    %v1711 = vmul.f32 %v1701, %v1709
    %v1712 = vpack.c.bf16 %v1710, %v1710
    %v1713 = vpack.c.bf16 %v1711, %v1711
    %1714 = vrot.lane.b32.xlu0 %v1586, 64
    %v1715 = vpop.permute.xlu0 %1714
    %v1717 = vsel %vm159, %v1712, 0
    %v1720 = vsel %vm290, %v1715, 0
    %1722 = vmatprep.subr.bf16.mxu0 0
    %1723 = vmatpush1.bf16.msra.mxu0 0
    %1724 = vmatprep.subr.bf16.mxu0 0
    %1725 = vmatpush1.bf16.msra.mxu0 0
    %1726 = vmatprep.subr.bf16.mxu0 0
    %1727 = vmatpush1.bf16.msra.mxu0 0
    %1728 = vmatprep.subr.bf16.mxu0 0
    %1729 = vmatpush1.bf16.msra.mxu0 0
    %1730 = vmatprep.subr.bf16.mxu0 0
    %1731 = vmatpush1.bf16.msra.mxu0 0
    %1732 = vmatprep.subr.bf16.mxu0 0
    %1733 = vmatpush1.bf16.msra.mxu0 0
    %1734 = vmatprep.subr.bf16.mxu0 0
    %1735 = vmatpush1.bf16.msra.mxu0 0
    %1736 = vmatprep.subr.bf16.mxu0 0
    %1737 = vmatpush1.bf16.msra.mxu0 %v1720
    %1738 = vmatprep.subr.bf16.mxu0 0
    %1739 = vmatpush2.bf16.msra.mxu0 0
    %1740 = vmatprep.subr.bf16.mxu0 0
    %1741 = vmatpush2.bf16.msra.mxu0 0
    %1742 = vmatprep.subr.bf16.mxu0 0
    %1743 = vmatpush2.bf16.msra.mxu0 0
    %1744 = vmatprep.subr.bf16.mxu0 0
    %1745 = vmatpush2.bf16.msra.mxu0 0
    %1746 = vmatprep.subr.bf16.mxu0 0
    %1747 = vmatpush2.bf16.msra.mxu0 0
    %1748 = vmatprep.subr.bf16.mxu0 0
    %1749 = vmatpush2.bf16.msra.mxu0 0
    %1750 = vmatprep.subr.bf16.mxu0 0
    %1751 = vmatpush2.bf16.msra.mxu0 0
    %1752 = vmatprep.subr.bf16.mxu0 0
    %1753 = vmatpush2.bf16.msra.mxu0 0
    %1754 = vmatprep.mubr.bf16.mxu0 0
    %1755 = vmatmul.mubr.bf16.gmra.mxu0 %v1717
    %v1756 = vpop.f32.mrf.mxu0
    %v1757 = vadd.f32 0.0, %v1756
    %v1758 = vpop.f32.mrf.mxu0
    %v1759 = vpop.f32.mrf.mxu0
    %v1760 = vpop.f32.mrf.mxu0
    %1761 = vdwg.mxu0
    %1762 = vrot.lane.b32.xlu0 %v1587, 64
    %v1763 = vpop.permute.xlu0 %1762
    %v1765 = vsel %vm159, %v1713, 0
    %v1768 = vsel %vm290, %v1763, 0
    %1770 = vmatprep.subr.bf16.mxu0 0
    %1771 = vmatpush1.bf16.msra.mxu0 0
    %1772 = vmatprep.subr.bf16.mxu0 0
    %1773 = vmatpush1.bf16.msra.mxu0 0
    %1774 = vmatprep.subr.bf16.mxu0 0
    %1775 = vmatpush1.bf16.msra.mxu0 0
    %1776 = vmatprep.subr.bf16.mxu0 0
    %1777 = vmatpush1.bf16.msra.mxu0 0
    %1778 = vmatprep.subr.bf16.mxu0 0
    %1779 = vmatpush1.bf16.msra.mxu0 0
    %1780 = vmatprep.subr.bf16.mxu0 0
    %1781 = vmatpush1.bf16.msra.mxu0 0
    %1782 = vmatprep.subr.bf16.mxu0 0
    %1783 = vmatpush1.bf16.msra.mxu0 0
    %1784 = vmatprep.subr.bf16.mxu0 0
    %1785 = vmatpush1.bf16.msra.mxu0 %v1768
    %1786 = vmatprep.subr.bf16.mxu0 0
    %1787 = vmatpush2.bf16.msra.mxu0 0
    %1788 = vmatprep.subr.bf16.mxu0 0
    %1789 = vmatpush2.bf16.msra.mxu0 0
    %1790 = vmatprep.subr.bf16.mxu0 0
    %1791 = vmatpush2.bf16.msra.mxu0 0
    %1792 = vmatprep.subr.bf16.mxu0 0
    %1793 = vmatpush2.bf16.msra.mxu0 0
    %1794 = vmatprep.subr.bf16.mxu0 0
    %1795 = vmatpush2.bf16.msra.mxu0 0
    %1796 = vmatprep.subr.bf16.mxu0 0
    %1797 = vmatpush2.bf16.msra.mxu0 0
    %1798 = vmatprep.subr.bf16.mxu0 0
    %1799 = vmatpush2.bf16.msra.mxu0 0
    %1800 = vmatprep.subr.bf16.mxu0 0
    %1801 = vmatpush2.bf16.msra.mxu0 0
    %1802 = vmatprep.mubr.bf16.mxu0 0
    %1803 = vmatmul.mubr.bf16.gmra.mxu0 %v1765
    %v1804 = vpop.f32.mrf.mxu0
    %v1805 = vadd.f32 0.0, %v1804
    %v1806 = vpop.f32.mrf.mxu0
    %v1807 = vpop.f32.mrf.mxu0
    %v1808 = vpop.f32.mrf.mxu0
    %1809 = vdwg.mxu0
    %v1810 = vpack.c.bf16 %v1805, %v1757
    %1811 = vrot.lane.b32.xlu0 %v1586, 88
    %v1812 = vpop.permute.xlu0 %1811
    %1813 = vrot.lane.b32.xlu0 %v1586, 120
    %v1814 = vpop.permute.xlu0 %1813
    %v1816 = vsel %vm159, %v1812, 0
    %v1819 = vsel %vm159, %v1814, 0
    %1821 = vmatprep.subr.bf16.mxu0 0
    %1822 = vmatpush1.bf16.xpose.msra.mxu0 0
    %1823 = vmatprep.subr.bf16.mxu0 0
    %1824 = vmatpush1.bf16.xpose.msra.mxu0 0
    %1825 = vmatprep.subr.bf16.mxu0 0
    %1826 = vmatpush1.bf16.xpose.msra.mxu0 0
    %1827 = vmatprep.subr.bf16.mxu0 0
    %1828 = vmatpush1.bf16.xpose.msra.mxu0 0
    %1829 = vmatprep.subr.bf16.mxu0 0
    %1830 = vmatpush1.bf16.xpose.msra.mxu0 0
    %1831 = vmatprep.subr.bf16.mxu0 0
    %1832 = vmatpush1.bf16.xpose.msra.mxu0 0
    %1833 = vmatprep.subr.bf16.mxu0 0
    %1834 = vmatpush1.bf16.xpose.msra.mxu0 0
    %1835 = vmatprep.subr.bf16.mxu0 0
    %1836 = vmatpush1.bf16.xpose.msra.mxu0 %v1819
    %1837 = vmatprep.subr.bf16.mxu0 0
    %1838 = vmatpush2.bf16.xpose.msra.mxu0 0
    %1839 = vmatprep.subr.bf16.mxu0 0
    %1840 = vmatpush2.bf16.xpose.msra.mxu0 0
    %1841 = vmatprep.subr.bf16.mxu0 0
    %1842 = vmatpush2.bf16.xpose.msra.mxu0 0
    %1843 = vmatprep.subr.bf16.mxu0 0
    %1844 = vmatpush2.bf16.xpose.msra.mxu0 0
    %1845 = vmatprep.subr.bf16.mxu0 0
    %1846 = vmatpush2.bf16.xpose.msra.mxu0 0
    %1847 = vmatprep.subr.bf16.mxu0 0
    %1848 = vmatpush2.bf16.xpose.msra.mxu0 0
    %1849 = vmatprep.subr.bf16.mxu0 0
    %1850 = vmatpush2.bf16.xpose.msra.mxu0 0
    %1851 = vmatprep.subr.bf16.mxu0 0
    %1852 = vmatpush2.bf16.xpose.msra.mxu0 0
    %1853 = vmatprep.mubr.bf16.mxu0 0
    %1854 = vmatmul.mubr.bf16.gmra.mxu0 %v1816
    %v1855 = vpop.f32.mrf.mxu0
    %v1856 = vadd.f32 0.0, %v1855
    %v1857 = vpop.f32.mrf.mxu0
    %v1858 = vpop.f32.mrf.mxu0
    %v1859 = vpop.f32.mrf.mxu0
    %1860 = vdwg.mxu0
    %1861 = vrot.lane.b32.xlu0 %v1587, 88
    %v1862 = vpop.permute.xlu0 %1861
    %1863 = vrot.lane.b32.xlu0 %v1587, 120
    %v1864 = vpop.permute.xlu0 %1863
    %v1866 = vsel %vm159, %v1862, 0
    %v1869 = vsel %vm159, %v1864, 0
    %1871 = vmatprep.subr.bf16.mxu0 0
    %1872 = vmatpush1.bf16.xpose.msra.mxu0 0
    %1873 = vmatprep.subr.bf16.mxu0 0
    %1874 = vmatpush1.bf16.xpose.msra.mxu0 0
    %1875 = vmatprep.subr.bf16.mxu0 0
    %1876 = vmatpush1.bf16.xpose.msra.mxu0 0
    %1877 = vmatprep.subr.bf16.mxu0 0
    %1878 = vmatpush1.bf16.xpose.msra.mxu0 0
    %1879 = vmatprep.subr.bf16.mxu0 0
    %1880 = vmatpush1.bf16.xpose.msra.mxu0 0
    %1881 = vmatprep.subr.bf16.mxu0 0
    %1882 = vmatpush1.bf16.xpose.msra.mxu0 0
    %1883 = vmatprep.subr.bf16.mxu0 0
    %1884 = vmatpush1.bf16.xpose.msra.mxu0 0
    %1885 = vmatprep.subr.bf16.mxu0 0
    %1886 = vmatpush1.bf16.xpose.msra.mxu0 %v1869
    %1887 = vmatprep.subr.bf16.mxu0 0
    %1888 = vmatpush2.bf16.xpose.msra.mxu0 0
    %1889 = vmatprep.subr.bf16.mxu0 0
    %1890 = vmatpush2.bf16.xpose.msra.mxu0 0
    %1891 = vmatprep.subr.bf16.mxu0 0
    %1892 = vmatpush2.bf16.xpose.msra.mxu0 0
    %1893 = vmatprep.subr.bf16.mxu0 0
    %1894 = vmatpush2.bf16.xpose.msra.mxu0 0
    %1895 = vmatprep.subr.bf16.mxu0 0
    %1896 = vmatpush2.bf16.xpose.msra.mxu0 0
    %1897 = vmatprep.subr.bf16.mxu0 0
    %1898 = vmatpush2.bf16.xpose.msra.mxu0 0
    %1899 = vmatprep.subr.bf16.mxu0 0
    %1900 = vmatpush2.bf16.xpose.msra.mxu0 0
    %1901 = vmatprep.subr.bf16.mxu0 0
    %1902 = vmatpush2.bf16.xpose.msra.mxu0 0
    %1903 = vmatprep.mubr.bf16.mxu0 0
    %1904 = vmatmul.mubr.bf16.gmra.mxu0 %v1866
    %v1905 = vpop.f32.mrf.mxu0
    %v1906 = vadd.f32 0.0, %v1905
    %v1907 = vpop.f32.mrf.mxu0
    %v1908 = vpop.f32.mrf.mxu0
    %v1909 = vpop.f32.mrf.mxu0
    %1910 = vdwg.mxu0
    %v1911 = vmul.f32 %v1856, 0.35355338
    %v1912 = vmul.f32 %v1906, 0.35355338
    %v1913 = vsel %vm258, %v1911, -1e+30
    %v1914 = vsel %vm258, %v1912, -1e+30
    %v1915 = vsel %vm159, %v1913, -inf
    %1916 = vmax.xlane.f32.xlu0 %v1915
    %v1917 = vpop.xlane.xlu0 %1916
    %v1918 = vsel %vm159, %v1914, -inf
    %1919 = vmax.xlane.f32.xlu0 %v1918
    %v1920 = vpop.xlane.xlu0 %1919
    %v1921 = vsub.f32 %v1913, %v1917
    %v1922 = vsub.f32 %v1914, %v1920
    %v1923 = vmul.f32 %v1921, 1.442695
    %v1924 = vpow.pop %v1923
    %v1925 = vmul.f32 %v1922, 1.442695
    %v1926 = vpow.pop %v1925
    %v1927 = vsel %vm159, %v1924, 0.0
    %1928 = vadd.xlane.f32.xlu0 %v1927
    %v1929 = vpop.xlane.xlu0 %1928
    %v1930 = vsel %vm159, %v1926, 0.0
    %1931 = vadd.xlane.f32.xlu0 %v1930
    %v1932 = vpop.xlane.xlu0 %1931
    %v1933 = vrcp.pop %v1929
    %v1934 = vrcp.pop %v1932
    %v1935 = vmul.f32 %v1924, %v1933
    %v1936 = vmul.f32 %v1926, %v1934
    %v1937 = vpack.c.bf16 %v1935, %v1935
    %v1938 = vpack.c.bf16 %v1936, %v1936
    %1939 = vrot.lane.b32.xlu0 %v1586, 56
    %v1940 = vpop.permute.xlu0 %1939
    %v1942 = vsel %vm159, %v1937, 0
    %v1945 = vsel %vm290, %v1940, 0
    %1947 = vmatprep.subr.bf16.mxu0 0
    %1948 = vmatpush1.bf16.msra.mxu0 0
    %1949 = vmatprep.subr.bf16.mxu0 0
    %1950 = vmatpush1.bf16.msra.mxu0 0
    %1951 = vmatprep.subr.bf16.mxu0 0
    %1952 = vmatpush1.bf16.msra.mxu0 0
    %1953 = vmatprep.subr.bf16.mxu0 0
    %1954 = vmatpush1.bf16.msra.mxu0 0
    %1955 = vmatprep.subr.bf16.mxu0 0
    %1956 = vmatpush1.bf16.msra.mxu0 0
    %1957 = vmatprep.subr.bf16.mxu0 0
    %1958 = vmatpush1.bf16.msra.mxu0 0
    %1959 = vmatprep.subr.bf16.mxu0 0
    %1960 = vmatpush1.bf16.msra.mxu0 0
    %1961 = vmatprep.subr.bf16.mxu0 0
    %1962 = vmatpush1.bf16.msra.mxu0 %v1945
    %1963 = vmatprep.subr.bf16.mxu0 0
    %1964 = vmatpush2.bf16.msra.mxu0 0
    %1965 = vmatprep.subr.bf16.mxu0 0
    %1966 = vmatpush2.bf16.msra.mxu0 0
    %1967 = vmatprep.subr.bf16.mxu0 0
    %1968 = vmatpush2.bf16.msra.mxu0 0
    %1969 = vmatprep.subr.bf16.mxu0 0
    %1970 = vmatpush2.bf16.msra.mxu0 0
    %1971 = vmatprep.subr.bf16.mxu0 0
    %1972 = vmatpush2.bf16.msra.mxu0 0
    %1973 = vmatprep.subr.bf16.mxu0 0
    %1974 = vmatpush2.bf16.msra.mxu0 0
    %1975 = vmatprep.subr.bf16.mxu0 0
    %1976 = vmatpush2.bf16.msra.mxu0 0
    %1977 = vmatprep.subr.bf16.mxu0 0
    %1978 = vmatpush2.bf16.msra.mxu0 0
    %1979 = vmatprep.mubr.bf16.mxu0 0
    %1980 = vmatmul.mubr.bf16.gmra.mxu0 %v1942
    %v1981 = vpop.f32.mrf.mxu0
    %v1982 = vadd.f32 0.0, %v1981
    %v1983 = vpop.f32.mrf.mxu0
    %v1984 = vpop.f32.mrf.mxu0
    %v1985 = vpop.f32.mrf.mxu0
    %1986 = vdwg.mxu0
    %1987 = vrot.lane.b32.xlu0 %v1587, 56
    %v1988 = vpop.permute.xlu0 %1987
    %v1990 = vsel %vm159, %v1938, 0
    %v1993 = vsel %vm290, %v1988, 0
    %1995 = vmatprep.subr.bf16.mxu0 0
    %1996 = vmatpush1.bf16.msra.mxu0 0
    %1997 = vmatprep.subr.bf16.mxu0 0
    %1998 = vmatpush1.bf16.msra.mxu0 0
    %1999 = vmatprep.subr.bf16.mxu0 0
    %2000 = vmatpush1.bf16.msra.mxu0 0
    %2001 = vmatprep.subr.bf16.mxu0 0
    %2002 = vmatpush1.bf16.msra.mxu0 0
    %2003 = vmatprep.subr.bf16.mxu0 0
    %2004 = vmatpush1.bf16.msra.mxu0 0
    %2005 = vmatprep.subr.bf16.mxu0 0
    %2006 = vmatpush1.bf16.msra.mxu0 0
    %2007 = vmatprep.subr.bf16.mxu0 0
    %2008 = vmatpush1.bf16.msra.mxu0 0
    %2009 = vmatprep.subr.bf16.mxu0 0
    %2010 = vmatpush1.bf16.msra.mxu0 %v1993
    %2011 = vmatprep.subr.bf16.mxu0 0
    %2012 = vmatpush2.bf16.msra.mxu0 0
    %2013 = vmatprep.subr.bf16.mxu0 0
    %2014 = vmatpush2.bf16.msra.mxu0 0
    %2015 = vmatprep.subr.bf16.mxu0 0
    %2016 = vmatpush2.bf16.msra.mxu0 0
    %2017 = vmatprep.subr.bf16.mxu0 0
    %2018 = vmatpush2.bf16.msra.mxu0 0
    %2019 = vmatprep.subr.bf16.mxu0 0
    %2020 = vmatpush2.bf16.msra.mxu0 0
    %2021 = vmatprep.subr.bf16.mxu0 0
    %2022 = vmatpush2.bf16.msra.mxu0 0
    %2023 = vmatprep.subr.bf16.mxu0 0
    %2024 = vmatpush2.bf16.msra.mxu0 0
    %2025 = vmatprep.subr.bf16.mxu0 0
    %2026 = vmatpush2.bf16.msra.mxu0 0
    %2027 = vmatprep.mubr.bf16.mxu0 0
    %2028 = vmatmul.mubr.bf16.gmra.mxu0 %v1990
    %v2029 = vpop.f32.mrf.mxu0
    %v2030 = vadd.f32 0.0, %v2029
    %v2031 = vpop.f32.mrf.mxu0
    %v2032 = vpop.f32.mrf.mxu0
    %v2033 = vpop.f32.mrf.mxu0
    %2034 = vdwg.mxu0
    %v2035 = vpack.c.bf16 %v2030, %v1982
    %v2036 = vpack.c.b16 %v1535, %v1535
    %2037 = vrot.lane.b32.xlu0 %v2036, 32
    %v2038 = vpop.permute.xlu0 %2037
    %v2040 = vsel %vm159, %v2035, 0
    %v2043 = vsel %vm290, %v2038, 0
    %2045 = vmatprep.subr.bf16.mxu0 0
    %2046 = vmatpush1.bf16.msra.mxu0 0
    %2047 = vmatprep.subr.bf16.mxu0 0
    %2048 = vmatpush1.bf16.msra.mxu0 0
    %2049 = vmatprep.subr.bf16.mxu0 0
    %2050 = vmatpush1.bf16.msra.mxu0 0
    %2051 = vmatprep.subr.bf16.mxu0 0
    %2052 = vmatpush1.bf16.msra.mxu0 0
    %2053 = vmatprep.subr.bf16.mxu0 0
    %2054 = vmatpush1.bf16.msra.mxu0 0
    %2055 = vmatprep.subr.bf16.mxu0 0
    %2056 = vmatpush1.bf16.msra.mxu0 0
    %2057 = vmatprep.subr.bf16.mxu0 0
    %2058 = vmatpush1.bf16.msra.mxu0 0
    %2059 = vmatprep.subr.bf16.mxu0 0
    %2060 = vmatpush1.bf16.msra.mxu0 %v2043
    %2061 = vmatprep.subr.bf16.mxu0 0
    %2062 = vmatpush2.bf16.msra.mxu0 0
    %2063 = vmatprep.subr.bf16.mxu0 0
    %2064 = vmatpush2.bf16.msra.mxu0 0
    %2065 = vmatprep.subr.bf16.mxu0 0
    %2066 = vmatpush2.bf16.msra.mxu0 0
    %2067 = vmatprep.subr.bf16.mxu0 0
    %2068 = vmatpush2.bf16.msra.mxu0 0
    %2069 = vmatprep.subr.bf16.mxu0 0
    %2070 = vmatpush2.bf16.msra.mxu0 0
    %2071 = vmatprep.subr.bf16.mxu0 0
    %2072 = vmatpush2.bf16.msra.mxu0 0
    %2073 = vmatprep.subr.bf16.mxu0 0
    %2074 = vmatpush2.bf16.msra.mxu0 0
    %2075 = vmatprep.subr.bf16.mxu0 0
    %2076 = vmatpush2.bf16.msra.mxu0 0
    %2077 = vmatprep.mubr.bf16.mxu0 0
    %2078 = vmatmul.mubr.bf16.gmra.mxu0 %v2040
    %v2079 = vpop.f32.mrf.mxu0
    %v2080 = vadd.f32 0.0, %v2079
    %v2081 = vpop.f32.mrf.mxu0
    %v2082 = vpop.f32.mrf.mxu0
    %v2083 = vadd.f32 0.0, %v2082
    %v2084 = vpop.f32.mrf.mxu0
    %2085 = vdwg.mxu0
    %v2086 = vpack.c.b16 %v1534, %v1534
    %2087 = vrot.lane.b32.xlu0 %v2086, 32
    %v2088 = vpop.permute.xlu0 %2087
    %v2090 = vsel %vm159, %v1810, 0
    %v2093 = vsel %vm290, %v2088, 0
    %2095 = vmatprep.subr.bf16.mxu0 0
    %2096 = vmatpush1.bf16.msra.mxu0 0
    %2097 = vmatprep.subr.bf16.mxu0 0
    %2098 = vmatpush1.bf16.msra.mxu0 0
    %2099 = vmatprep.subr.bf16.mxu0 0
    %2100 = vmatpush1.bf16.msra.mxu0 0
    %2101 = vmatprep.subr.bf16.mxu0 0
    %2102 = vmatpush1.bf16.msra.mxu0 0
    %2103 = vmatprep.subr.bf16.mxu0 0
    %2104 = vmatpush1.bf16.msra.mxu0 0
    %2105 = vmatprep.subr.bf16.mxu0 0
    %2106 = vmatpush1.bf16.msra.mxu0 0
    %2107 = vmatprep.subr.bf16.mxu0 0
    %2108 = vmatpush1.bf16.msra.mxu0 0
    %2109 = vmatprep.subr.bf16.mxu0 0
    %2110 = vmatpush1.bf16.msra.mxu0 %v2093
    %2111 = vmatprep.subr.bf16.mxu0 0
    %2112 = vmatpush2.bf16.msra.mxu0 0
    %2113 = vmatprep.subr.bf16.mxu0 0
    %2114 = vmatpush2.bf16.msra.mxu0 0
    %2115 = vmatprep.subr.bf16.mxu0 0
    %2116 = vmatpush2.bf16.msra.mxu0 0
    %2117 = vmatprep.subr.bf16.mxu0 0
    %2118 = vmatpush2.bf16.msra.mxu0 0
    %2119 = vmatprep.subr.bf16.mxu0 0
    %2120 = vmatpush2.bf16.msra.mxu0 0
    %2121 = vmatprep.subr.bf16.mxu0 0
    %2122 = vmatpush2.bf16.msra.mxu0 0
    %2123 = vmatprep.subr.bf16.mxu0 0
    %2124 = vmatpush2.bf16.msra.mxu0 0
    %2125 = vmatprep.subr.bf16.mxu0 0
    %2126 = vmatpush2.bf16.msra.mxu0 0
    %2127 = vmatprep.mubr.bf16.mxu0 0
    %2128 = vmatmul.mubr.bf16.gmra.mxu0 %v2090
    %v2129 = vpop.f32.mrf.mxu0
    %v2130 = vadd.f32 %v2080, %v2129
    %v2131 = vpop.f32.mrf.mxu0
    %v2132 = vpop.f32.mrf.mxu0
    %v2133 = vadd.f32 %v2083, %v2132
    %v2134 = vpop.f32.mrf.mxu0
    %2135 = vdwg.mxu0
    %2136 = vrot.lane.b32.xlu0 %v1586, 80
    %v2137 = vpop.permute.xlu0 %2136
    %2138 = vrot.lane.b32.xlu0 %v1586, 112
    %v2139 = vpop.permute.xlu0 %2138
    %v2141 = vsel %vm159, %v2137, 0
    %v2144 = vsel %vm159, %v2139, 0
    %2146 = vmatprep.subr.bf16.mxu0 0
    %2147 = vmatpush1.bf16.xpose.msra.mxu0 0
    %2148 = vmatprep.subr.bf16.mxu0 0
    %2149 = vmatpush1.bf16.xpose.msra.mxu0 0
    %2150 = vmatprep.subr.bf16.mxu0 0
    %2151 = vmatpush1.bf16.xpose.msra.mxu0 0
    %2152 = vmatprep.subr.bf16.mxu0 0
    %2153 = vmatpush1.bf16.xpose.msra.mxu0 0
    %2154 = vmatprep.subr.bf16.mxu0 0
    %2155 = vmatpush1.bf16.xpose.msra.mxu0 0
    %2156 = vmatprep.subr.bf16.mxu0 0
    %2157 = vmatpush1.bf16.xpose.msra.mxu0 0
    %2158 = vmatprep.subr.bf16.mxu0 0
    %2159 = vmatpush1.bf16.xpose.msra.mxu0 0
    %2160 = vmatprep.subr.bf16.mxu0 0
    %2161 = vmatpush1.bf16.xpose.msra.mxu0 %v2144
    %2162 = vmatprep.subr.bf16.mxu0 0
    %2163 = vmatpush2.bf16.xpose.msra.mxu0 0
    %2164 = vmatprep.subr.bf16.mxu0 0
    %2165 = vmatpush2.bf16.xpose.msra.mxu0 0
    %2166 = vmatprep.subr.bf16.mxu0 0
    %2167 = vmatpush2.bf16.xpose.msra.mxu0 0
    %2168 = vmatprep.subr.bf16.mxu0 0
    %2169 = vmatpush2.bf16.xpose.msra.mxu0 0
    %2170 = vmatprep.subr.bf16.mxu0 0
    %2171 = vmatpush2.bf16.xpose.msra.mxu0 0
    %2172 = vmatprep.subr.bf16.mxu0 0
    %2173 = vmatpush2.bf16.xpose.msra.mxu0 0
    %2174 = vmatprep.subr.bf16.mxu0 0
    %2175 = vmatpush2.bf16.xpose.msra.mxu0 0
    %2176 = vmatprep.subr.bf16.mxu0 0
    %2177 = vmatpush2.bf16.xpose.msra.mxu0 0
    %2178 = vmatprep.mubr.bf16.mxu0 0
    %2179 = vmatmul.mubr.bf16.gmra.mxu0 %v2141
    %v2180 = vpop.f32.mrf.mxu0
    %v2181 = vadd.f32 0.0, %v2180
    %v2182 = vpop.f32.mrf.mxu0
    %v2183 = vpop.f32.mrf.mxu0
    %v2184 = vpop.f32.mrf.mxu0
    %2185 = vdwg.mxu0
    %2186 = vrot.lane.b32.xlu0 %v1587, 80
    %v2187 = vpop.permute.xlu0 %2186
    %2188 = vrot.lane.b32.xlu0 %v1587, 112
    %v2189 = vpop.permute.xlu0 %2188
    %v2191 = vsel %vm159, %v2187, 0
    %v2194 = vsel %vm159, %v2189, 0
    %2196 = vmatprep.subr.bf16.mxu0 0
    %2197 = vmatpush1.bf16.xpose.msra.mxu0 0
    %2198 = vmatprep.subr.bf16.mxu0 0
    %2199 = vmatpush1.bf16.xpose.msra.mxu0 0
    %2200 = vmatprep.subr.bf16.mxu0 0
    %2201 = vmatpush1.bf16.xpose.msra.mxu0 0
    %2202 = vmatprep.subr.bf16.mxu0 0
    %2203 = vmatpush1.bf16.xpose.msra.mxu0 0
    %2204 = vmatprep.subr.bf16.mxu0 0
    %2205 = vmatpush1.bf16.xpose.msra.mxu0 0
    %2206 = vmatprep.subr.bf16.mxu0 0
    %2207 = vmatpush1.bf16.xpose.msra.mxu0 0
    %2208 = vmatprep.subr.bf16.mxu0 0
    %2209 = vmatpush1.bf16.xpose.msra.mxu0 0
    %2210 = vmatprep.subr.bf16.mxu0 0
    %2211 = vmatpush1.bf16.xpose.msra.mxu0 %v2194
    %2212 = vmatprep.subr.bf16.mxu0 0
    %2213 = vmatpush2.bf16.xpose.msra.mxu0 0
    %2214 = vmatprep.subr.bf16.mxu0 0
    %2215 = vmatpush2.bf16.xpose.msra.mxu0 0
    %2216 = vmatprep.subr.bf16.mxu0 0
    %2217 = vmatpush2.bf16.xpose.msra.mxu0 0
    %2218 = vmatprep.subr.bf16.mxu0 0
    %2219 = vmatpush2.bf16.xpose.msra.mxu0 0
    %2220 = vmatprep.subr.bf16.mxu0 0
    %2221 = vmatpush2.bf16.xpose.msra.mxu0 0
    %2222 = vmatprep.subr.bf16.mxu0 0
    %2223 = vmatpush2.bf16.xpose.msra.mxu0 0
    %2224 = vmatprep.subr.bf16.mxu0 0
    %2225 = vmatpush2.bf16.xpose.msra.mxu0 0
    %2226 = vmatprep.subr.bf16.mxu0 0
    %2227 = vmatpush2.bf16.xpose.msra.mxu0 0
    %2228 = vmatprep.mubr.bf16.mxu0 0
    %2229 = vmatmul.mubr.bf16.gmra.mxu0 %v2191
    %v2230 = vpop.f32.mrf.mxu0
    %v2231 = vadd.f32 0.0, %v2230
    %v2232 = vpop.f32.mrf.mxu0
    %v2233 = vpop.f32.mrf.mxu0
    %v2234 = vpop.f32.mrf.mxu0
    %2235 = vdwg.mxu0
    %v2236 = vmul.f32 %v2181, 0.35355338
    %v2237 = vmul.f32 %v2231, 0.35355338
    %v2238 = vsel %vm258, %v2236, -1e+30
    %v2239 = vsel %vm258, %v2237, -1e+30
    %v2240 = vsel %vm159, %v2238, -inf
    %2241 = vmax.xlane.f32.xlu0 %v2240
    %v2242 = vpop.xlane.xlu0 %2241
    %v2243 = vsel %vm159, %v2239, -inf
    %2244 = vmax.xlane.f32.xlu0 %v2243
    %v2245 = vpop.xlane.xlu0 %2244
    %v2246 = vsub.f32 %v2238, %v2242
    %v2247 = vsub.f32 %v2239, %v2245
    %v2248 = vmul.f32 %v2246, 1.442695
    %v2249 = vpow.pop %v2248
    %v2250 = vmul.f32 %v2247, 1.442695
    %v2251 = vpow.pop %v2250
    %v2252 = vsel %vm159, %v2249, 0.0
    %2253 = vadd.xlane.f32.xlu0 %v2252
    %v2254 = vpop.xlane.xlu0 %2253
    %v2255 = vsel %vm159, %v2251, 0.0
    %2256 = vadd.xlane.f32.xlu0 %v2255
    %v2257 = vpop.xlane.xlu0 %2256
    %v2258 = vrcp.pop %v2254
    %v2259 = vrcp.pop %v2257
    %v2260 = vmul.f32 %v2249, %v2258
    %v2261 = vmul.f32 %v2251, %v2259
    %v2262 = vpack.c.bf16 %v2260, %v2260
    %v2263 = vpack.c.bf16 %v2261, %v2261
    %2264 = vrot.lane.b32.xlu0 %v1586, 48
    %v2265 = vpop.permute.xlu0 %2264
    %v2267 = vsel %vm159, %v2262, 0
    %v2270 = vsel %vm290, %v2265, 0
    %2272 = vmatprep.subr.bf16.mxu0 0
    %2273 = vmatpush1.bf16.msra.mxu0 0
    %2274 = vmatprep.subr.bf16.mxu0 0
    %2275 = vmatpush1.bf16.msra.mxu0 0
    %2276 = vmatprep.subr.bf16.mxu0 0
    %2277 = vmatpush1.bf16.msra.mxu0 0
    %2278 = vmatprep.subr.bf16.mxu0 0
    %2279 = vmatpush1.bf16.msra.mxu0 0
    %2280 = vmatprep.subr.bf16.mxu0 0
    %2281 = vmatpush1.bf16.msra.mxu0 0
    %2282 = vmatprep.subr.bf16.mxu0 0
    %2283 = vmatpush1.bf16.msra.mxu0 0
    %2284 = vmatprep.subr.bf16.mxu0 0
    %2285 = vmatpush1.bf16.msra.mxu0 0
    %2286 = vmatprep.subr.bf16.mxu0 0
    %2287 = vmatpush1.bf16.msra.mxu0 %v2270
    %2288 = vmatprep.subr.bf16.mxu0 0
    %2289 = vmatpush2.bf16.msra.mxu0 0
    %2290 = vmatprep.subr.bf16.mxu0 0
    %2291 = vmatpush2.bf16.msra.mxu0 0
    %2292 = vmatprep.subr.bf16.mxu0 0
    %2293 = vmatpush2.bf16.msra.mxu0 0
    %2294 = vmatprep.subr.bf16.mxu0 0
    %2295 = vmatpush2.bf16.msra.mxu0 0
    %2296 = vmatprep.subr.bf16.mxu0 0
    %2297 = vmatpush2.bf16.msra.mxu0 0
    %2298 = vmatprep.subr.bf16.mxu0 0
    %2299 = vmatpush2.bf16.msra.mxu0 0
    %2300 = vmatprep.subr.bf16.mxu0 0
    %2301 = vmatpush2.bf16.msra.mxu0 0
    %2302 = vmatprep.subr.bf16.mxu0 0
    %2303 = vmatpush2.bf16.msra.mxu0 0
    %2304 = vmatprep.mubr.bf16.mxu0 0
    %2305 = vmatmul.mubr.bf16.gmra.mxu0 %v2267
    %v2306 = vpop.f32.mrf.mxu0
    %v2307 = vadd.f32 0.0, %v2306
    %v2308 = vpop.f32.mrf.mxu0
    %v2309 = vpop.f32.mrf.mxu0
    %v2310 = vpop.f32.mrf.mxu0
    %2311 = vdwg.mxu0
    %2312 = vrot.lane.b32.xlu0 %v1587, 48
    %v2313 = vpop.permute.xlu0 %2312
    %v2315 = vsel %vm159, %v2263, 0
    %v2318 = vsel %vm290, %v2313, 0
    %2320 = vmatprep.subr.bf16.mxu0 0
    %2321 = vmatpush1.bf16.msra.mxu0 0
    %2322 = vmatprep.subr.bf16.mxu0 0
    %2323 = vmatpush1.bf16.msra.mxu0 0
    %2324 = vmatprep.subr.bf16.mxu0 0
    %2325 = vmatpush1.bf16.msra.mxu0 0
    %2326 = vmatprep.subr.bf16.mxu0 0
    %2327 = vmatpush1.bf16.msra.mxu0 0
    %2328 = vmatprep.subr.bf16.mxu0 0
    %2329 = vmatpush1.bf16.msra.mxu0 0
    %2330 = vmatprep.subr.bf16.mxu0 0
    %2331 = vmatpush1.bf16.msra.mxu0 0
    %2332 = vmatprep.subr.bf16.mxu0 0
    %2333 = vmatpush1.bf16.msra.mxu0 0
    %2334 = vmatprep.subr.bf16.mxu0 0
    %2335 = vmatpush1.bf16.msra.mxu0 %v2318
    %2336 = vmatprep.subr.bf16.mxu0 0
    %2337 = vmatpush2.bf16.msra.mxu0 0
    %2338 = vmatprep.subr.bf16.mxu0 0
    %2339 = vmatpush2.bf16.msra.mxu0 0
    %2340 = vmatprep.subr.bf16.mxu0 0
    %2341 = vmatpush2.bf16.msra.mxu0 0
    %2342 = vmatprep.subr.bf16.mxu0 0
    %2343 = vmatpush2.bf16.msra.mxu0 0
    %2344 = vmatprep.subr.bf16.mxu0 0
    %2345 = vmatpush2.bf16.msra.mxu0 0
    %2346 = vmatprep.subr.bf16.mxu0 0
    %2347 = vmatpush2.bf16.msra.mxu0 0
    %2348 = vmatprep.subr.bf16.mxu0 0
    %2349 = vmatpush2.bf16.msra.mxu0 0
    %2350 = vmatprep.subr.bf16.mxu0 0
    %2351 = vmatpush2.bf16.msra.mxu0 0
    %2352 = vmatprep.mubr.bf16.mxu0 0
    %2353 = vmatmul.mubr.bf16.gmra.mxu0 %v2315
    %v2354 = vpop.f32.mrf.mxu0
    %v2355 = vadd.f32 0.0, %v2354
    %v2356 = vpop.f32.mrf.mxu0
    %v2357 = vpop.f32.mrf.mxu0
    %v2358 = vpop.f32.mrf.mxu0
    %2359 = vdwg.mxu0
    %v2360 = vpack.c.bf16 %v2355, %v2307
    %v2361 = vpack.c.b16 %v1536, %v1536
    %2362 = vrot.lane.b32.xlu0 %v2361, 32
    %v2363 = vpop.permute.xlu0 %2362
    %v2365 = vsel %vm159, %v2360, 0
    %v2368 = vsel %vm290, %v2363, 0
    %2370 = vmatprep.subr.bf16.mxu0 0
    %2371 = vmatpush1.bf16.msra.mxu0 0
    %2372 = vmatprep.subr.bf16.mxu0 0
    %2373 = vmatpush1.bf16.msra.mxu0 0
    %2374 = vmatprep.subr.bf16.mxu0 0
    %2375 = vmatpush1.bf16.msra.mxu0 0
    %2376 = vmatprep.subr.bf16.mxu0 0
    %2377 = vmatpush1.bf16.msra.mxu0 0
    %2378 = vmatprep.subr.bf16.mxu0 0
    %2379 = vmatpush1.bf16.msra.mxu0 0
    %2380 = vmatprep.subr.bf16.mxu0 0
    %2381 = vmatpush1.bf16.msra.mxu0 0
    %2382 = vmatprep.subr.bf16.mxu0 0
    %2383 = vmatpush1.bf16.msra.mxu0 0
    %2384 = vmatprep.subr.bf16.mxu0 0
    %2385 = vmatpush1.bf16.msra.mxu0 %v2368
    %2386 = vmatprep.subr.bf16.mxu0 0
    %2387 = vmatpush2.bf16.msra.mxu0 0
    %2388 = vmatprep.subr.bf16.mxu0 0
    %2389 = vmatpush2.bf16.msra.mxu0 0
    %2390 = vmatprep.subr.bf16.mxu0 0
    %2391 = vmatpush2.bf16.msra.mxu0 0
    %2392 = vmatprep.subr.bf16.mxu0 0
    %2393 = vmatpush2.bf16.msra.mxu0 0
    %2394 = vmatprep.subr.bf16.mxu0 0
    %2395 = vmatpush2.bf16.msra.mxu0 0
    %2396 = vmatprep.subr.bf16.mxu0 0
    %2397 = vmatpush2.bf16.msra.mxu0 0
    %2398 = vmatprep.subr.bf16.mxu0 0
    %2399 = vmatpush2.bf16.msra.mxu0 0
    %2400 = vmatprep.subr.bf16.mxu0 0
    %2401 = vmatpush2.bf16.msra.mxu0 0
    %2402 = vmatprep.mubr.bf16.mxu0 0
    %2403 = vmatmul.mubr.bf16.gmra.mxu0 %v2365
    %v2404 = vpop.f32.mrf.mxu0
    %v2405 = vadd.f32 0.0, %v2404
    %v2406 = vpop.f32.mrf.mxu0
    %v2407 = vpop.f32.mrf.mxu0
    %v2408 = vadd.f32 0.0, %v2407
    %v2409 = vpop.f32.mrf.mxu0
    %2410 = vdwg.mxu0
    %v2411 = vadd.f32 %v2130, %v2405
    %v2412 = vadd.f32 %v2133, %v2408
    %2413 = vrot.lane.b32.xlu0 %v1586, 72
    %v2414 = vpop.permute.xlu0 %2413
    %2415 = vrot.lane.b32.xlu0 %v1586, 104
    %v2416 = vpop.permute.xlu0 %2415
    %v2418 = vsel %vm159, %v2414, 0
    %v2421 = vsel %vm159, %v2416, 0
    %2423 = vmatprep.subr.bf16.mxu0 0
    %2424 = vmatpush1.bf16.xpose.msra.mxu0 0
    %2425 = vmatprep.subr.bf16.mxu0 0
    %2426 = vmatpush1.bf16.xpose.msra.mxu0 0
    %2427 = vmatprep.subr.bf16.mxu0 0
    %2428 = vmatpush1.bf16.xpose.msra.mxu0 0
    %2429 = vmatprep.subr.bf16.mxu0 0
    %2430 = vmatpush1.bf16.xpose.msra.mxu0 0
    %2431 = vmatprep.subr.bf16.mxu0 0
    %2432 = vmatpush1.bf16.xpose.msra.mxu0 0
    %2433 = vmatprep.subr.bf16.mxu0 0
    %2434 = vmatpush1.bf16.xpose.msra.mxu0 0
    %2435 = vmatprep.subr.bf16.mxu0 0
    %2436 = vmatpush1.bf16.xpose.msra.mxu0 0
    %2437 = vmatprep.subr.bf16.mxu0 0
    %2438 = vmatpush1.bf16.xpose.msra.mxu0 %v2421
    %2439 = vmatprep.subr.bf16.mxu0 0
    %2440 = vmatpush2.bf16.xpose.msra.mxu0 0
    %2441 = vmatprep.subr.bf16.mxu0 0
    %2442 = vmatpush2.bf16.xpose.msra.mxu0 0
    %2443 = vmatprep.subr.bf16.mxu0 0
    %2444 = vmatpush2.bf16.xpose.msra.mxu0 0
    %2445 = vmatprep.subr.bf16.mxu0 0
    %2446 = vmatpush2.bf16.xpose.msra.mxu0 0
    %2447 = vmatprep.subr.bf16.mxu0 0
    %2448 = vmatpush2.bf16.xpose.msra.mxu0 0
    %2449 = vmatprep.subr.bf16.mxu0 0
    %2450 = vmatpush2.bf16.xpose.msra.mxu0 0
    %2451 = vmatprep.subr.bf16.mxu0 0
    %2452 = vmatpush2.bf16.xpose.msra.mxu0 0
    %2453 = vmatprep.subr.bf16.mxu0 0
    %2454 = vmatpush2.bf16.xpose.msra.mxu0 0
    %2455 = vmatprep.mubr.bf16.mxu0 0
    %2456 = vmatmul.mubr.bf16.gmra.mxu0 %v2418
    %v2457 = vpop.f32.mrf.mxu0
    %v2458 = vadd.f32 0.0, %v2457
    %v2459 = vpop.f32.mrf.mxu0
    %v2460 = vpop.f32.mrf.mxu0
    %v2461 = vpop.f32.mrf.mxu0
    %2462 = vdwg.mxu0
    %2463 = vrot.lane.b32.xlu0 %v1587, 72
    %v2464 = vpop.permute.xlu0 %2463
    %2465 = vrot.lane.b32.xlu0 %v1587, 104
    %v2466 = vpop.permute.xlu0 %2465
    %v2468 = vsel %vm159, %v2464, 0
    %v2471 = vsel %vm159, %v2466, 0
    %2473 = vmatprep.subr.bf16.mxu0 0
    %2474 = vmatpush1.bf16.xpose.msra.mxu0 0
    %2475 = vmatprep.subr.bf16.mxu0 0
    %2476 = vmatpush1.bf16.xpose.msra.mxu0 0
    %2477 = vmatprep.subr.bf16.mxu0 0
    %2478 = vmatpush1.bf16.xpose.msra.mxu0 0
    %2479 = vmatprep.subr.bf16.mxu0 0
    %2480 = vmatpush1.bf16.xpose.msra.mxu0 0
    %2481 = vmatprep.subr.bf16.mxu0 0
    %2482 = vmatpush1.bf16.xpose.msra.mxu0 0
    %2483 = vmatprep.subr.bf16.mxu0 0
    %2484 = vmatpush1.bf16.xpose.msra.mxu0 0
    %2485 = vmatprep.subr.bf16.mxu0 0
    %2486 = vmatpush1.bf16.xpose.msra.mxu0 0
    %2487 = vmatprep.subr.bf16.mxu0 0
    %2488 = vmatpush1.bf16.xpose.msra.mxu0 %v2471
    %2489 = vmatprep.subr.bf16.mxu0 0
    %2490 = vmatpush2.bf16.xpose.msra.mxu0 0
    %2491 = vmatprep.subr.bf16.mxu0 0
    %2492 = vmatpush2.bf16.xpose.msra.mxu0 0
    %2493 = vmatprep.subr.bf16.mxu0 0
    %2494 = vmatpush2.bf16.xpose.msra.mxu0 0
    %2495 = vmatprep.subr.bf16.mxu0 0
    %2496 = vmatpush2.bf16.xpose.msra.mxu0 0
    %2497 = vmatprep.subr.bf16.mxu0 0
    %2498 = vmatpush2.bf16.xpose.msra.mxu0 0
    %2499 = vmatprep.subr.bf16.mxu0 0
    %2500 = vmatpush2.bf16.xpose.msra.mxu0 0
    %2501 = vmatprep.subr.bf16.mxu0 0
    %2502 = vmatpush2.bf16.xpose.msra.mxu0 0
    %2503 = vmatprep.subr.bf16.mxu0 0
    %2504 = vmatpush2.bf16.xpose.msra.mxu0 0
    %2505 = vmatprep.mubr.bf16.mxu0 0
    %2506 = vmatmul.mubr.bf16.gmra.mxu0 %v2468
    %v2507 = vpop.f32.mrf.mxu0
    %v2508 = vadd.f32 0.0, %v2507
    %v2509 = vpop.f32.mrf.mxu0
    %v2510 = vpop.f32.mrf.mxu0
    %v2511 = vpop.f32.mrf.mxu0
    %2512 = vdwg.mxu0
    %v2513 = vmul.f32 %v2458, 0.35355338
    %v2514 = vmul.f32 %v2508, 0.35355338
    %v2515 = vsel %vm258, %v2513, -1e+30
    %v2516 = vsel %vm258, %v2514, -1e+30
    %v2517 = vsel %vm159, %v2515, -inf
    %2518 = vmax.xlane.f32.xlu0 %v2517
    %v2519 = vpop.xlane.xlu0 %2518
    %v2520 = vsel %vm159, %v2516, -inf
    %2521 = vmax.xlane.f32.xlu0 %v2520
    %v2522 = vpop.xlane.xlu0 %2521
    %v2523 = vsub.f32 %v2515, %v2519
    %v2524 = vsub.f32 %v2516, %v2522
    %v2525 = vmul.f32 %v2523, 1.442695
    %v2526 = vpow.pop %v2525
    %v2527 = vmul.f32 %v2524, 1.442695
    %v2528 = vpow.pop %v2527
    %v2529 = vsel %vm159, %v2526, 0.0
    %2530 = vadd.xlane.f32.xlu0 %v2529
    %v2531 = vpop.xlane.xlu0 %2530
    %v2532 = vsel %vm159, %v2528, 0.0
    %2533 = vadd.xlane.f32.xlu0 %v2532
    %v2534 = vpop.xlane.xlu0 %2533
    %v2535 = vrcp.pop %v2531
    %v2536 = vrcp.pop %v2534
    %v2537 = vmul.f32 %v2526, %v2535
    %v2538 = vmul.f32 %v2528, %v2536
    %v2539 = vpack.c.bf16 %v2537, %v2537
    %v2540 = vpack.c.bf16 %v2538, %v2538
    %2541 = vrot.lane.b32.xlu0 %v1586, 40
    %v2542 = vpop.permute.xlu0 %2541
    %v2544 = vsel %vm159, %v2539, 0
    %v2547 = vsel %vm290, %v2542, 0
    %2549 = vmatprep.subr.bf16.mxu0 0
    %2550 = vmatpush1.bf16.msra.mxu0 0
    %2551 = vmatprep.subr.bf16.mxu0 0
    %2552 = vmatpush1.bf16.msra.mxu0 0
    %2553 = vmatprep.subr.bf16.mxu0 0
    %2554 = vmatpush1.bf16.msra.mxu0 0
    %2555 = vmatprep.subr.bf16.mxu0 0
    %2556 = vmatpush1.bf16.msra.mxu0 0
    %2557 = vmatprep.subr.bf16.mxu0 0
    %2558 = vmatpush1.bf16.msra.mxu0 0
    %2559 = vmatprep.subr.bf16.mxu0 0
    %2560 = vmatpush1.bf16.msra.mxu0 0
    %2561 = vmatprep.subr.bf16.mxu0 0
    %2562 = vmatpush1.bf16.msra.mxu0 0
    %2563 = vmatprep.subr.bf16.mxu0 0
    %2564 = vmatpush1.bf16.msra.mxu0 %v2547
    %2565 = vmatprep.subr.bf16.mxu0 0
    %2566 = vmatpush2.bf16.msra.mxu0 0
    %2567 = vmatprep.subr.bf16.mxu0 0
    %2568 = vmatpush2.bf16.msra.mxu0 0
    %2569 = vmatprep.subr.bf16.mxu0 0
    %2570 = vmatpush2.bf16.msra.mxu0 0
    %2571 = vmatprep.subr.bf16.mxu0 0
    %2572 = vmatpush2.bf16.msra.mxu0 0
    %2573 = vmatprep.subr.bf16.mxu0 0
    %2574 = vmatpush2.bf16.msra.mxu0 0
    %2575 = vmatprep.subr.bf16.mxu0 0
    %2576 = vmatpush2.bf16.msra.mxu0 0
    %2577 = vmatprep.subr.bf16.mxu0 0
    %2578 = vmatpush2.bf16.msra.mxu0 0
    %2579 = vmatprep.subr.bf16.mxu0 0
    %2580 = vmatpush2.bf16.msra.mxu0 0
    %2581 = vmatprep.mubr.bf16.mxu0 0
    %2582 = vmatmul.mubr.bf16.gmra.mxu0 %v2544
    %v2583 = vpop.f32.mrf.mxu0
    %v2584 = vadd.f32 0.0, %v2583
    %v2585 = vpop.f32.mrf.mxu0
    %v2586 = vpop.f32.mrf.mxu0
    %v2587 = vpop.f32.mrf.mxu0
    %2588 = vdwg.mxu0
    %2589 = vrot.lane.b32.xlu0 %v1587, 40
    %v2590 = vpop.permute.xlu0 %2589
    %v2592 = vsel %vm159, %v2540, 0
    %v2595 = vsel %vm290, %v2590, 0
    %2597 = vmatprep.subr.bf16.mxu0 0
    %2598 = vmatpush1.bf16.msra.mxu0 0
    %2599 = vmatprep.subr.bf16.mxu0 0
    %2600 = vmatpush1.bf16.msra.mxu0 0
    %2601 = vmatprep.subr.bf16.mxu0 0
    %2602 = vmatpush1.bf16.msra.mxu0 0
    %2603 = vmatprep.subr.bf16.mxu0 0
    %2604 = vmatpush1.bf16.msra.mxu0 0
    %2605 = vmatprep.subr.bf16.mxu0 0
    %2606 = vmatpush1.bf16.msra.mxu0 0
    %2607 = vmatprep.subr.bf16.mxu0 0
    %2608 = vmatpush1.bf16.msra.mxu0 0
    %2609 = vmatprep.subr.bf16.mxu0 0
    %2610 = vmatpush1.bf16.msra.mxu0 0
    %2611 = vmatprep.subr.bf16.mxu0 0
    %2612 = vmatpush1.bf16.msra.mxu0 %v2595
    %2613 = vmatprep.subr.bf16.mxu0 0
    %2614 = vmatpush2.bf16.msra.mxu0 0
    %2615 = vmatprep.subr.bf16.mxu0 0
    %2616 = vmatpush2.bf16.msra.mxu0 0
    %2617 = vmatprep.subr.bf16.mxu0 0
    %2618 = vmatpush2.bf16.msra.mxu0 0
    %2619 = vmatprep.subr.bf16.mxu0 0
    %2620 = vmatpush2.bf16.msra.mxu0 0
    %2621 = vmatprep.subr.bf16.mxu0 0
    %2622 = vmatpush2.bf16.msra.mxu0 0
    %2623 = vmatprep.subr.bf16.mxu0 0
    %2624 = vmatpush2.bf16.msra.mxu0 0
    %2625 = vmatprep.subr.bf16.mxu0 0
    %2626 = vmatpush2.bf16.msra.mxu0 0
    %2627 = vmatprep.subr.bf16.mxu0 0
    %2628 = vmatpush2.bf16.msra.mxu0 0
    %2629 = vmatprep.mubr.bf16.mxu0 0
    %2630 = vmatmul.mubr.bf16.gmra.mxu0 %v2592
    %v2631 = vpop.f32.mrf.mxu0
    %v2632 = vadd.f32 0.0, %v2631
    %v2633 = vpop.f32.mrf.mxu0
    %v2634 = vpop.f32.mrf.mxu0
    %v2635 = vpop.f32.mrf.mxu0
    %2636 = vdwg.mxu0
    %v2637 = vpack.c.bf16 %v2632, %v2584
    %v2638 = vpack.c.b16 %v1537, %v1537
    %2639 = vrot.lane.b32.xlu0 %v2638, 32
    %v2640 = vpop.permute.xlu0 %2639
    %v2642 = vsel %vm159, %v2637, 0
    %v2645 = vsel %vm290, %v2640, 0
    %2647 = vmatprep.subr.bf16.mxu0 0
    %2648 = vmatpush1.bf16.msra.mxu0 0
    %2649 = vmatprep.subr.bf16.mxu0 0
    %2650 = vmatpush1.bf16.msra.mxu0 0
    %2651 = vmatprep.subr.bf16.mxu0 0
    %2652 = vmatpush1.bf16.msra.mxu0 0
    %2653 = vmatprep.subr.bf16.mxu0 0
    %2654 = vmatpush1.bf16.msra.mxu0 0
    %2655 = vmatprep.subr.bf16.mxu0 0
    %2656 = vmatpush1.bf16.msra.mxu0 0
    %2657 = vmatprep.subr.bf16.mxu0 0
    %2658 = vmatpush1.bf16.msra.mxu0 0
    %2659 = vmatprep.subr.bf16.mxu0 0
    %2660 = vmatpush1.bf16.msra.mxu0 0
    %2661 = vmatprep.subr.bf16.mxu0 0
    %2662 = vmatpush1.bf16.msra.mxu0 %v2645
    %2663 = vmatprep.subr.bf16.mxu0 0
    %2664 = vmatpush2.bf16.msra.mxu0 0
    %2665 = vmatprep.subr.bf16.mxu0 0
    %2666 = vmatpush2.bf16.msra.mxu0 0
    %2667 = vmatprep.subr.bf16.mxu0 0
    %2668 = vmatpush2.bf16.msra.mxu0 0
    %2669 = vmatprep.subr.bf16.mxu0 0
    %2670 = vmatpush2.bf16.msra.mxu0 0
    %2671 = vmatprep.subr.bf16.mxu0 0
    %2672 = vmatpush2.bf16.msra.mxu0 0
    %2673 = vmatprep.subr.bf16.mxu0 0
    %2674 = vmatpush2.bf16.msra.mxu0 0
    %2675 = vmatprep.subr.bf16.mxu0 0
    %2676 = vmatpush2.bf16.msra.mxu0 0
    %2677 = vmatprep.subr.bf16.mxu0 0
    %2678 = vmatpush2.bf16.msra.mxu0 0
    %2679 = vmatprep.mubr.bf16.mxu0 0
    %2680 = vmatmul.mubr.bf16.gmra.mxu0 %v2642
    %v2681 = vpop.f32.mrf.mxu0
    %v2682 = vadd.f32 0.0, %v2681
    %v2683 = vpop.f32.mrf.mxu0
    %v2684 = vpop.f32.mrf.mxu0
    %v2685 = vadd.f32 0.0, %v2684
    %v2686 = vpop.f32.mrf.mxu0
    %2687 = vdwg.mxu0
    %v2688 = vadd.f32 %v2411, %v2682
    %v2689 = vadd.f32 %v2412, %v2685
    %v2690 = vadd.f32 %v1461, %v2688
    %v2691 = vadd.f32 %v1462, %v2689
    %v2692 = vlaneseq
    %v2693 = vshrl.u32 %v2692, 7
    %v2694 = vsub.s32 5, %v2693
    %v2695 = vrot.slane %v1486, %v2694
    %v2696 = vadd.f32 %v2690, %v2695
    %v2697 = vadd.f32 %v2691, %v2695
    %v2698 = vsel %vm53, %v2696, 0.0
    %2699 = vadd.xlane.f32.xlu0 %v2698
    %v2700 = vpop.xlane.xlu0 %2699
    %v2701 = vsel %vm53, %v2697, 0.0
    %2702 = vadd.xlane.f32.xlu0 %v2701
    %v2703 = vpop.xlane.xlu0 %2702
    %v2704 = vmul.f32 %v2700, %v60
    %v2705 = vmul.f32 %v2703, %v60
    %v2706 = vsub.f32 %v2696, %v2704
    %v2707 = vsub.f32 %v2697, %v2705
    %v2708 = vmul.f32 %v2706, %v2706
    %v2709 = vmul.f32 %v2707, %v2707
    %v2710 = vsel %vm53, %v2708, 0.0
    %2711 = vadd.xlane.f32.xlu0 %v2710
    %v2712 = vpop.xlane.xlu0 %2711
    %v2713 = vsel %vm53, %v2709, 0.0
    %2714 = vadd.xlane.f32.xlu0 %v2713
    %v2715 = vpop.xlane.xlu0 %2714
    %v2716 = vmul.f32 %v2712, %v60
    %v2717 = vmul.f32 %v2715, %v60
    %v2718 = vadd.f32 %v2716, 1e-05
    %v2719 = vadd.f32 %v2717, 1e-05
    %v2720 = vrsqrt.pop %v2718
    %v2721 = vrsqrt.pop %v2719
    %v2722 = vmul.f32 %v2706, %v2720
    %v2723 = vmul.f32 %v2707, %v2721
    %v2724 = vlaneseq
    %v2725 = vshrl.u32 %v2724, 7
    %v2726 = vsub.s32 2, %v2725
    %v2727 = vrot.slane %v1486, %v2726
    %v2728 = vmul.f32 %v2722, %v2727
    %v2729 = vmul.f32 %v2723, %v2727
    %v2730 = vlaneseq
    %v2731 = vshrl.u32 %v2730, 7
    %v2732 = vsub.s32 3, %v2731
    %v2733 = vrot.slane %v1486, %v2732
    %v2734 = vadd.f32 %v2728, %v2733
    %v2735 = vadd.f32 %v2729, %v2733
    %v2736 = vpack.c.bf16 %v2735, %v2734
    %v2737 = vlaneseq
    %v2738 = vshrl.u32 %v2737, 7
    %v2739 = vsub.s32 6, %v2738
    %v2740 = vrot.slane %v1486, %v2739
    %v2741 = vunpack.c.h.b16 %v1464
    %v2742 = vunpack.c.h.b16 %v1465
    %v2743 = vunpack.c.h.b16 %v1466
    %v2744 = vunpack.c.h.b16 %v1467
    %v2745 = vpack.c.b16 %v2742, %v2741
    %v2746 = vpack.c.b16 %v2744, %v2743
    %v2750 = vsel %vm53, %v2736, 0
    %2752 = vmatprep.subr.bf16.mxu0 0
    %2753 = vmatpush1.bf16.msra.mxu0 0
    %2754 = vmatprep.subr.bf16.mxu0 0
    %2755 = vmatpush1.bf16.msra.mxu0 0
    %2756 = vmatprep.subr.bf16.mxu0 0
    %2757 = vmatpush1.bf16.msra.mxu0 0
    %2758 = vmatprep.subr.bf16.mxu0 0
    %2759 = vmatpush1.bf16.msra.mxu0 0
    %2760 = vmatprep.subr.bf16.mxu0 0
    %2761 = vmatpush1.bf16.msra.mxu0 0
    %2762 = vmatprep.subr.bf16.mxu0 0
    %2763 = vmatpush1.bf16.msra.mxu0 0
    %2764 = vmatprep.subr.bf16.mxu0 0
    %2765 = vmatpush1.bf16.msra.mxu0 %v2746
    %2766 = vmatprep.subr.bf16.mxu0 0
    %2767 = vmatpush1.bf16.msra.mxu0 %v2745
    %2768 = vmatprep.subr.bf16.mxu0 0
    %2769 = vmatpush2.bf16.msra.mxu0 0
    %2770 = vmatprep.subr.bf16.mxu0 0
    %2771 = vmatpush2.bf16.msra.mxu0 0
    %2772 = vmatprep.subr.bf16.mxu0 0
    %2773 = vmatpush2.bf16.msra.mxu0 0
    %2774 = vmatprep.subr.bf16.mxu0 0
    %2775 = vmatpush2.bf16.msra.mxu0 0
    %2776 = vmatprep.subr.bf16.mxu0 0
    %2777 = vmatpush2.bf16.msra.mxu0 0
    %2778 = vmatprep.subr.bf16.mxu0 0
    %2779 = vmatpush2.bf16.msra.mxu0 0
    %2780 = vmatprep.subr.bf16.mxu0 0
    %2781 = vmatpush2.bf16.msra.mxu0 0
    %2782 = vmatprep.subr.bf16.mxu0 0
    %2783 = vmatpush2.bf16.msra.mxu0 0
    %2784 = vmatprep.mubr.bf16.mxu0 0
    %2785 = vmatmul.mubr.bf16.gmra.mxu0 %v2750
    %v2786 = vpop.f32.mrf.mxu0
    %v2787 = vadd.f32 %v2740, %v2786
    %v2788 = vpop.f32.mrf.mxu0
    %v2789 = vpop.f32.mrf.mxu0
    %v2790 = vadd.f32 %v2740, %v2789
    %v2791 = vpop.f32.mrf.mxu0
    %2792 = vdwg.mxu0
    %v2793 = vmax.f32 %v2787, 0.0
    %v2794 = vmax.f32 %v2790, 0.0
    %v2795 = vpack.c.bf16 %v2794, %v2793
    %v2796 = vlaneseq
    %v2797 = vshrl.u32 %v2796, 7
    %v2798 = vsub.s32 7, %v2797
    %v2799 = vrot.slane %v1486, %v2798
    %v2816 = vunpack.c.l.b16 %v1469
    %v2817 = vunpack.c.l.b16 %v1470
    %v2818 = vunpack.c.l.b16 %v1471
    %v2819 = vunpack.c.l.b16 %v1472
    %v2820 = vunpack.c.l.b16 %v1473
    %v2821 = vunpack.c.l.b16 %v1474
    %v2822 = vunpack.c.l.b16 %v1475
    %v2823 = vunpack.c.l.b16 %v1476
    %v2824 = vunpack.c.l.b16 %v1477
    %v2825 = vunpack.c.l.b16 %v1478
    %v2826 = vunpack.c.l.b16 %v1479
    %v2827 = vunpack.c.l.b16 %v1480
    %v2828 = vunpack.c.l.b16 %v1481
    %v2829 = vunpack.c.l.b16 %v1482
    %v2830 = vunpack.c.l.b16 %v1483
    %v2831 = vunpack.c.l.b16 %v1484
    %v2832 = vpack.c.b16 %v2817, %v2816
    %v2833 = vpack.c.b16 %v2819, %v2818
    %v2834 = vpack.c.b16 %v2821, %v2820
    %v2835 = vpack.c.b16 %v2823, %v2822
    %v2836 = vpack.c.b16 %v2825, %v2824
    %v2837 = vpack.c.b16 %v2827, %v2826
    %v2838 = vpack.c.b16 %v2829, %v2828
    %v2839 = vpack.c.b16 %v2831, %v2830
    %2848 = vmatprep.subr.bf16.mxu0 0
    %2849 = vmatpush1.bf16.msra.mxu0 %v2839
    %2850 = vmatprep.subr.bf16.mxu0 0
    %2851 = vmatpush1.bf16.msra.mxu0 %v2838
    %2852 = vmatprep.subr.bf16.mxu0 0
    %2853 = vmatpush1.bf16.msra.mxu0 %v2837
    %2854 = vmatprep.subr.bf16.mxu0 0
    %2855 = vmatpush1.bf16.msra.mxu0 %v2836
    %2856 = vmatprep.subr.bf16.mxu0 0
    %2857 = vmatpush1.bf16.msra.mxu0 %v2835
    %2858 = vmatprep.subr.bf16.mxu0 0
    %2859 = vmatpush1.bf16.msra.mxu0 %v2834
    %2860 = vmatprep.subr.bf16.mxu0 0
    %2861 = vmatpush1.bf16.msra.mxu0 %v2833
    %2862 = vmatprep.subr.bf16.mxu0 0
    %2863 = vmatpush1.bf16.msra.mxu0 %v2832
    %2864 = vmatprep.subr.bf16.mxu0 0
    %2865 = vmatpush2.bf16.msra.mxu0 0
    %2866 = vmatprep.subr.bf16.mxu0 0
    %2867 = vmatpush2.bf16.msra.mxu0 0
    %2868 = vmatprep.subr.bf16.mxu0 0
    %2869 = vmatpush2.bf16.msra.mxu0 0
    %2870 = vmatprep.subr.bf16.mxu0 0
    %2871 = vmatpush2.bf16.msra.mxu0 0
    %2872 = vmatprep.subr.bf16.mxu0 0
    %2873 = vmatpush2.bf16.msra.mxu0 0
    %2874 = vmatprep.subr.bf16.mxu0 0
    %2875 = vmatpush2.bf16.msra.mxu0 0
    %2876 = vmatprep.subr.bf16.mxu0 0
    %2877 = vmatpush2.bf16.msra.mxu0 0
    %2878 = vmatprep.subr.bf16.mxu0 0
    %2879 = vmatpush2.bf16.msra.mxu0 0
    %2880 = vmatprep.mubr.bf16.mxu0 0
    %2881 = vmatmul.mubr.bf16.gmra.mxu0 %v2795
    %v2882 = vpop.f32.mrf.mxu0
    %v2883 = vadd.f32 %v2799, %v2882
    %v2884 = vpop.f32.mrf.mxu0
    %v2885 = vpop.f32.mrf.mxu0
    %v2886 = vadd.f32 %v2799, %v2885
    %v2887 = vpop.f32.mrf.mxu0
    %2888 = vdwg.mxu0
    %v2889 = vadd.f32 %v2696, %v2883
    %v2890 = vadd.f32 %v2697, %v2886
    %v2891 = vld [vmem:[%s5] sm:$0xff]
    %v2892 = vsel %vm53, %v2889, 0.0
    %2893 = vadd.xlane.f32.xlu0 %v2892
    %v2894 = vpop.xlane.xlu0 %2893
    %v2895 = vsel %vm53, %v2890, 0.0
    %2896 = vadd.xlane.f32.xlu0 %v2895
    %v2897 = vpop.xlane.xlu0 %2896
    %v2898 = vmul.f32 %v2894, %v60
    %v2899 = vmul.f32 %v2897, %v60
    %v2900 = vsub.f32 %v2889, %v2898
    %v2901 = vsub.f32 %v2890, %v2899
    %v2902 = vmul.f32 %v2900, %v2900
    %v2903 = vmul.f32 %v2901, %v2901
    %v2904 = vsel %vm53, %v2902, 0.0
    %2905 = vadd.xlane.f32.xlu0 %v2904
    %v2906 = vpop.xlane.xlu0 %2905
    %v2907 = vsel %vm53, %v2903, 0.0
    %2908 = vadd.xlane.f32.xlu0 %v2907
    %v2909 = vpop.xlane.xlu0 %2908
    %v2910 = vmul.f32 %v2906, %v60
    %v2911 = vmul.f32 %v2909, %v60
    %v2912 = vadd.f32 %v2910, 1e-05
    %v2913 = vadd.f32 %v2911, 1e-05
    %v2914 = vrsqrt.pop %v2912
    %v2915 = vrsqrt.pop %v2913
    %v2916 = vmul.f32 %v2900, %v2914
    %v2917 = vmul.f32 %v2901, %v2915
    %v2918 = vlaneseq
    %v2919 = vshrl.u32 %v2918, 7
    %v2920 = vsub.s32 0, %v2919
    %v2921 = vrot.slane %v2891, %v2920
    %v2922 = vmul.f32 %v2916, %v2921
    %v2923 = vmul.f32 %v2917, %v2921
    %v2924 = vlaneseq
    %v2925 = vshrl.u32 %v2924, 7
    %v2926 = vsub.s32 1, %v2925
    %v2927 = vrot.slane %v2891, %v2926
    %v2928 = vadd.f32 %v2922, %v2927
    %v2929 = vadd.f32 %v2923, %v2927
    %v2930 = vpack.c.bf16 %v2929, %v2928
    %v2931 = vld [vmem:[%s4] sm:$0xf]
    %v2932 = vld [vmem:[%s4 + $0x4] sm:$0xf]
    %v2933 = vld [vmem:[%s4 + $0x8] sm:$0xf]
    %v2934 = vld [vmem:[%s4 + $0xc] sm:$0xf]
    %v2935 = vlaneseq
    %v2936 = vshrl.u32 %v2935, 7
    %v2937 = vsub.s32 2, %v2936
    %v2938 = vrot.slane %v2891, %v2937
    %v2943 = vunpack.c.l.b16 %v2931
    %v2944 = vunpack.c.l.b16 %v2932
    %v2945 = vunpack.c.l.b16 %v2933
    %v2946 = vunpack.c.l.b16 %v2934
    %v2947 = vpack.c.b16 %v2944, %v2943
    %v2948 = vpack.c.b16 %v2946, %v2945
    %v2952 = vsel %vm53, %v2930, 0
    %2954 = vmatprep.subr.bf16.mxu0 0
    %2955 = vmatpush1.bf16.msra.mxu0 0
    %2956 = vmatprep.subr.bf16.mxu0 0
    %2957 = vmatpush1.bf16.msra.mxu0 0
    %2958 = vmatprep.subr.bf16.mxu0 0
    %2959 = vmatpush1.bf16.msra.mxu0 0
    %2960 = vmatprep.subr.bf16.mxu0 0
    %2961 = vmatpush1.bf16.msra.mxu0 0
    %2962 = vmatprep.subr.bf16.mxu0 0
    %2963 = vmatpush1.bf16.msra.mxu0 0
    %2964 = vmatprep.subr.bf16.mxu0 0
    %2965 = vmatpush1.bf16.msra.mxu0 0
    %2966 = vmatprep.subr.bf16.mxu0 0
    %2967 = vmatpush1.bf16.msra.mxu0 %v2948
    %2968 = vmatprep.subr.bf16.mxu0 0
    %2969 = vmatpush1.bf16.msra.mxu0 %v2947
    %2970 = vmatprep.subr.bf16.mxu0 0
    %2971 = vmatpush2.bf16.msra.mxu0 0
    %2972 = vmatprep.subr.bf16.mxu0 0
    %2973 = vmatpush2.bf16.msra.mxu0 0
    %2974 = vmatprep.subr.bf16.mxu0 0
    %2975 = vmatpush2.bf16.msra.mxu0 0
    %2976 = vmatprep.subr.bf16.mxu0 0
    %2977 = vmatpush2.bf16.msra.mxu0 0
    %2978 = vmatprep.subr.bf16.mxu0 0
    %2979 = vmatpush2.bf16.msra.mxu0 0
    %2980 = vmatprep.subr.bf16.mxu0 0
    %2981 = vmatpush2.bf16.msra.mxu0 0
    %2982 = vmatprep.subr.bf16.mxu0 0
    %2983 = vmatpush2.bf16.msra.mxu0 0
    %2984 = vmatprep.subr.bf16.mxu0 0
    %2985 = vmatpush2.bf16.msra.mxu0 0
    %2986 = vmatprep.mubr.bf16.mxu0 0
    %2987 = vmatmul.mubr.bf16.gmra.mxu0 %v2952
    %v2988 = vpop.f32.mrf.mxu0
    %v2989 = vadd.f32 %v2938, %v2988
    %v2990 = vpop.f32.mrf.mxu0
    %v2991 = vpop.f32.mrf.mxu0
    %v2992 = vadd.f32 %v2938, %v2991
    %v2993 = vpop.f32.mrf.mxu0
    %2994 = vdwg.mxu0
    %2995 = vst [vmem:[#allocation2] sm:$0xff] %v2989
    %2996 = vst [vmem:[#allocation2 + $0x8] sm:$0xff] %v2992
    // Predicated region
    $region26: #{tpu_custom_call.1} parent=1 // pred_check
      _
    $region27: #{tpu_custom_call.1} parent=1 // pred_check_branch
      %2998 = sbr.rel (0) target = $region29
    $region28: #{tpu_custom_call.1} parent=1 // pred_region
      %s3000 = ssub.s32 256, 256
      %3001 = vsyncadd [#allocation3], %s3000
      %s3002 = sshll.u32 [#allocation2], 4
      %s3003 = int_to_ptr.vmem [resolvable:$true] %s3002
      %3008 = dma.vmem_to_hbm [thread:$0]  %s3003, 256, %s6, [#allocation3], 128, 128, 8
    $region29: #{tpu_custom_call.1} parent=1 // pred_fallthru
      _
    // Predicated region
    $region30: #{tpu_custom_call.1} parent=1 // pred_check
      _
    $region31: #{tpu_custom_call.1} parent=1 // pred_check_branch
      %3010 = sbr.rel (0) target = $region33
    $region32: #{tpu_custom_call.1} parent=1 // pred_region
      %3011 = dma.done [#allocation3], 256
    $region33: #{tpu_custom_call.1} parent=1 // pred_fallthru
      _
    %3012 = vsyncpa [#allocation3], 1

</llo_original>
